<compile_context>
chip_gen: v6e
topology: v6e:2x2x1
jax: 0.10.0
libtpu: 0.0.40
codegen_flags: <defaults>
</compile_context>

<pallas_src>
import functools

import jax
import jax.numpy as jnp
from jax import lax
from jax.experimental import pallas as pl
from jax.experimental.pallas import tpu as pltpu


# --------------------------- LSTM cell math ---------------------------------

def _lstm_gates(gates, c_prev, H):
    """gates: (B, 4H) pre-activation in PyTorch (i, f, g, o) order."""
    i_g = jax.nn.sigmoid(gates[:, 0 * H:1 * H])
    f_g = jax.nn.sigmoid(gates[:, 1 * H:2 * H])
    g_g = jnp.tanh(gates[:, 2 * H:3 * H])
    o_g = jax.nn.sigmoid(gates[:, 3 * H:4 * H])
    c_new = f_g * c_prev + i_g * g_g
    h_new = o_g * jnp.tanh(c_new)
    return h_new, c_new


# --------------------- fully fused BiRNN forward kernel ----------------------

def _birnn_kernel(*refs, S, B, E, H, V, L, matmul_dtype):
    """Embedding gather + L bidirectional LSTM layers + Linear(4H,2), fused.

    refs = [idx (S*B,1) i32, emb (V,E),
            per layer: w_in (Din,8H), w_hh_f (H,4H), w_hh_b (H,4H), b (1,8H),
            dec_w (4H,2), dec_b (1,2),
            dec_out (B,2),
            x_buf scratch (S*B, 2H) f32]
    """
    md = matmul_dtype
    idx_ref, emb_ref = refs[0], refs[1]
    layer_refs = [refs[2 + 4 * l: 2 + 4 * (l + 1)] for l in range(L)]
    dec_w_ref = refs[2 + 4 * L]
    dec_b_ref = refs[3 + 4 * L]
    dec_ref = refs[4 + 4 * L]
    x_buf = refs[5 + 4 * L]

    # ---- Embedding lookup as a one-hot gather matmul on the MXU -------------
    lane_ids = lax.broadcasted_iota(jnp.int32, (S * B, V), 1)
    onehot = (lane_ids == idx_ref[...]).astype(md)                 # (S*B, V)
    x0 = jnp.dot(onehot, emb_ref[...].astype(md),
                 preferred_element_type=jnp.float32)               # (S*B, E)

    def run_layer(x_in, w_in_ref, w_hh_f_ref, w_hh_b_ref, b_ref):
        # Input projection of BOTH directions hoisted out of the recurrence
        # (no sequential dependence); bias added exactly once.
        gin = jnp.dot(x_in.astype(md), w_in_ref[...],
                      preferred_element_type=jnp.float32) + b_ref[...]  # (S*B, 8H)
        w_hh_f = w_hh_f_ref[...]
        w_hh_b = w_hh_b_ref[...]
        h_f = jnp.zeros((B, H), jnp.float32)
        c_f = jnp.zeros((B, H), jnp.float32)
        h_b = jnp.zeros((B, H), jnp.float32)
        c_b = jnp.zeros((B, H), jnp.float32)
        for t in range(S):  # static unroll: S is small, all offsets constant
            # forward direction, sequence position t
            g_f = gin[t * B:(t + 1) * B, 0:4 * H] + jnp.dot(
                h_f.astype(md), w_hh_f, preferred_element_type=jnp.float32)
            h_f, c_f = _lstm_gates(g_f, c_f, H)
            x_buf[t * B:(t + 1) * B, 0:H] = h_f
            # backward direction, sequence position S-1-t (no reversed copies)
            p = S - 1 - t
            g_b = gin[p * B:(p + 1) * B, 4 * H:8 * H] + jnp.dot(
                h_b.astype(md), w_hh_b, preferred_element_type=jnp.float32)
            h_b, c_b = _lstm_gates(g_b, c_b, H)
            x_buf[p * B:(p + 1) * B, H:2 * H] = h_b

    # Layer 0 consumes the embedded tokens; layers >= 1 consume x_buf. The
    # full x_buf read is issued before that layer's writes (program order on
    # the ref), so a single ping buffer is sufficient.
    run_layer(x0, *layer_refs[0])
    for l in range(1, L):
        run_layer(x_buf[...], *layer_refs[l])

    # ---- Fused decoder: encoding = cat(out[0], out[S-1], -1) @ W_d + b_d ----
    dec_w = dec_w_ref[...]
    out0_f = x_buf[0:B, 0:H]                   # fwd output at position 0
    out0_b = x_buf[0:B, H:2 * H]               # bwd output at position 0
    outL_f = x_buf[(S - 1) * B:S * B, 0:H]     # fwd output at position S-1
    outL_b = x_buf[(S - 1) * B:S * B, H:2 * H]
    dec_ref[...] = (
        jnp.dot(out0_f.astype(md), dec_w[0 * H:1 * H, :],
                preferred_element_type=jnp.float32)
        + jnp.dot(out0_b.astype(md), dec_w[1 * H:2 * H, :],
                  preferred_element_type=jnp.float32)
        + jnp.dot(outL_f.astype(md), dec_w[2 * H:3 * H, :],
                  preferred_element_type=jnp.float32)
        + jnp.dot(outL_b.astype(md), dec_w[3 * H:4 * H, :],
                  preferred_element_type=jnp.float32)
        + dec_b_ref[...]
    )


def birnn_forward_pallas(params, inputs, matmul_dtype=jnp.float32):
    """inputs: (batch, seq_len) int32 -> (batch, 2) float32 logits."""
    B, S = inputs.shape
    emb = params["embedding"]
    V, E = emb.shape
    layers = params["lstm"]
    L = len(layers)
    H = layers[0]["w_hh_f"].shape[0]

    # Pad the vocab axis to a 128-lane multiple so the one-hot gather matmul
    # is lane-aligned; padded rows are never selected (all idx < V).
    V_pad = ((V + 127) // 128) * 128
    emb_pad = jnp.pad(emb, ((0, V_pad - V), (0, 0)))

    # Time-major flatten: row t*B + b of idx2 is token (t, b), matching the
    # (S, B, feature) -> (S*B, feature) activation layout used in the kernel.
    idx2 = inputs.T.reshape(S * B, 1).astype(jnp.int32)

    operands = [idx2, emb_pad.astype(matmul_dtype)]
    in_specs = [
        pl.BlockSpec((S * B, 1), lambda: (0, 0)),
        pl.BlockSpec((V_pad, E), lambda: (0, 0)),
    ]
    for lp in layers:
        Din = lp["w_in"].shape[0]
        operands += [lp["w_in"].astype(matmul_dtype),
                     lp["w_hh_f"].astype(matmul_dtype),
                     lp["w_hh_b"].astype(matmul_dtype),
                     lp["b"]]
        in_specs += [
            pl.BlockSpec((Din, 8 * H), lambda: (0, 0)),
            pl.BlockSpec((H, 4 * H), lambda: (0, 0)),
            pl.BlockSpec((H, 4 * H), lambda: (0, 0)),
            pl.BlockSpec((1, 8 * H), lambda: (0, 0)),
        ]
    operands += [params["decoder_w_t"].astype(matmul_dtype),
                 params["decoder_b"]]
    in_specs += [
        pl.BlockSpec((4 * H, 2), lambda: (0, 0)),
        pl.BlockSpec((1, 2), lambda: (0, 0)),
    ]

    kernel = functools.partial(
        _birnn_kernel, S=S, B=B, E=E, H=H, V=V_pad, L=L,
        matmul_dtype=matmul_dtype)

    return pl.pallas_call(
        kernel,
        out_shape=jax.ShapeDtypeStruct((B, 2), jnp.float32),
        in_specs=in_specs,
        out_specs=pl.BlockSpec((B, 2), lambda: (0, 0)),
        scratch_shapes=[pltpu.VMEM((S * B, 2 * H), jnp.float32)],
    )(*operands)


# ------------------------------ parameters -----------------------------------

def init_params(key, vocab_size, embed_size, num_hiddens, num_layers):
    """Deterministic init; shapes/semantics match torch Embedding/LSTM/Linear,
    stored in the fused layout the kernel expects."""
    params = {}
    k_embed, key = jax.random.split(key)
    params["embedding"] = jax.random.normal(
        k_embed, (vocab_size, embed_size), jnp.float32)

    bound = 1.0 / (num_hiddens ** 0.5)
    layers = []
    for layer in range(num_layers):
        in_size = embed_size if layer == 0 else 2 * num_hiddens
        w_ih_t, w_hh_t, biases = [], [], []
        for _ in range(2):  # forward, backward
            key, k1, k2, k3, k4 = jax.random.split(key, 5)
            w_ih = jax.random.uniform(
                k1, (4 * num_hiddens, in_size), jnp.float32, -bound, bound)
            w_hh = jax.random.uniform(
                k2, (4 * num_hiddens, num_hiddens), jnp.float32, -bound, bound)
            b_ih = jax.random.uniform(
                k3, (4 * num_hiddens,), jnp.float32, -bound, bound)
            b_hh = jax.random.uniform(
                k4, (4 * num_hiddens,), jnp.float32, -bound, bound)
            w_ih_t.append(w_ih.T)              # (in, 4H)
            w_hh_t.append(w_hh.T)              # (H, 4H)
            biases.append(b_ih + b_hh)         # (4H,)
        layers.append({
            "w_in": jnp.concatenate(w_ih_t, axis=1),     # (in, 8H) [fwd|bwd]
            "w_hh_f": w_hh_t[0],                         # (H, 4H)
            "w_hh_b": w_hh_t[1],                         # (H, 4H)
            "b": jnp.concatenate(biases)[None, :],       # (1, 8H)
        })
    params["lstm"] = layers

    key, k1, k2 = jax.random.split(key, 3)
    dec_in = 4 * num_hiddens
    dec_bound = 1.0 / (dec_in ** 0.5)
    dec_w = jax.random.uniform(k1, (2, dec_in), jnp.float32, -dec_bound, dec_bound)
    dec_b = jax.random.uniform(k2, (2,), jnp.float32, -dec_bound, dec_bound)
    params["decoder_w_t"] = dec_w.T            # (4H, 2)
    params["decoder_b"] = dec_b[None, :]       # (1, 2)
    return params


# --------------------------- pure-JAX reference ------------------------------

def birnn_forward_reference(params, inputs):
    """Straightforward XLA implementation mirroring the PyTorch forward."""
    idx = inputs.T                                          # (S, B)
    x = jnp.take(params["embedding"], idx, axis=0)          # (S, B, E)
    H = params["lstm"][0]["w_hh_f"].shape[0]
    S, B, _ = x.shape
    for lp in params["lstm"]:
        gin = jnp.einsum("sbi,ij->sbj", x, lp["w_in"]) + lp["b"][0]  # (S,B,8H)

        def scan_dir(g_seq, w_hh):
            h = jnp.zeros((B, H), jnp.float32)
            c = jnp.zeros((B, H), jnp.float32)
            outs = []
            for t in range(S):
                gates = g_seq[t] + h @ w_hh
                h, c = _lstm_gates(gates, c, H)
                outs.append(h)
            return jnp.stack(outs)

        fwd = scan_dir(gin[:, :, :4 * H], lp["w_hh_f"])
        bwd = scan_dir(gin[::-1, :, 4 * H:], lp["w_hh_b"])[::-1]
        x = jnp.concatenate([fwd, bwd], axis=-1)            # (S, B, 2H)
    enc = jnp.concatenate([x[0], x[-1]], axis=-1)            # (B, 4H)
    return enc @ params["decoder_w_t"] + params["decoder_b"][0]


# ----------------------------------- main ------------------------------------

if __name__ == "__main__":
    vocab_size = 50
    embed_size = 32
    num_hiddens = 32
    num_layers = 2
    batch = 2
    seq_len = 8

    key = jax.random.PRNGKey(0)
    k_params, k_inputs = jax.random.split(key)

    params = init_params(k_params, vocab_size, embed_size, num_hiddens, num_layers)
    inputs = jax.random.randint(k_inputs, (batch, seq_len), 0, vocab_size, jnp.int32)

    out = jax.jit(birnn_forward_pallas)(params, inputs)
    jax.block_until_ready(out)
    assert out.shape == (batch, 2), out.shape

    ref = birnn_forward_reference(params, inputs)
    assert jnp.allclose(out, ref, rtol=2e-2, atol=2e-2), (out, ref)
    print("KERNEL_OK")
</pallas_src>

<mosaic_0001>
module attributes {stable_mosaic.version = 11 : i64} {
  func.func @_birnn_kernel(%arg0: memref<16x1xi32, #tpu.memory_space<vmem>>, %arg1: memref<128x32xf32, #tpu.memory_space<vmem>>, %arg2: memref<32x256xf32, #tpu.memory_space<vmem>>, %arg3: memref<32x128xf32, #tpu.memory_space<vmem>>, %arg4: memref<32x128xf32, #tpu.memory_space<vmem>>, %arg5: memref<1x256xf32, #tpu.memory_space<vmem>>, %arg6: memref<64x256xf32, #tpu.memory_space<vmem>>, %arg7: memref<32x128xf32, #tpu.memory_space<vmem>>, %arg8: memref<32x128xf32, #tpu.memory_space<vmem>>, %arg9: memref<1x256xf32, #tpu.memory_space<vmem>>, %arg10: memref<128x2xf32, #tpu.memory_space<vmem>>, %arg11: memref<1x2xf32, #tpu.memory_space<vmem>>, %arg12: memref<2x2xf32, #tpu.memory_space<vmem>>, %arg13: memref<16x64xf32, #tpu.memory_space<vmem>>) attributes {dimension_semantics = [], scalar_prefetch = 0 : i64, scratch_operands = 1 : i64, tpu.core_type = #tpu.core_type<tc>} {
    %0 = tpu.iota {dimensions = array<i32: 1>} : vector<16x128xi32>
    %c0 = arith.constant 0 : index
    %c0_0 = arith.constant 0 : index
    %1 = vector.load %arg0[%c0, %c0_0] : memref<16x1xi32, #tpu.memory_space<vmem>>, vector<16x1xi32>
    %2 = vector.broadcast %1 : vector<16x1xi32> to vector<16x128xi32>
    %3 = arith.cmpi eq, %0, %2 : vector<16x128xi32>
    %4 = arith.extui %3 : vector<16x128xi1> to vector<16x128xi32>
    %5 = arith.sitofp %4 : vector<16x128xi32> to vector<16x128xf32>
    %c0_1 = arith.constant 0 : index
    %c0_2 = arith.constant 0 : index
    %6 = vector.load %arg1[%c0_1, %c0_2] : memref<128x32xf32, #tpu.memory_space<vmem>>, vector<128x32xf32>
    %cst = arith.constant dense<0.000000e+00> : vector<16x32xf32>
    %7 = tpu.matmul %5, %6, %cst {dimension_numbers = #tpu.dot_dimension_numbers<[1], [0], [0], [1], [0, 0, 1, 1], [], []>} : vector<16x128xf32>, vector<128x32xf32>, vector<16x32xf32> -> vector<16x32xf32>
    %c0_3 = arith.constant 0 : index
    %c0_4 = arith.constant 0 : index
    %8 = vector.load %arg2[%c0_3, %c0_4] : memref<32x256xf32, #tpu.memory_space<vmem>>, vector<32x256xf32>
    %cst_5 = arith.constant dense<0.000000e+00> : vector<16x256xf32>
    %9 = tpu.matmul %7, %8, %cst_5 {dimension_numbers = #tpu.dot_dimension_numbers<[1], [0], [0], [1], [0, 0, 1, 1], [], []>} : vector<16x32xf32>, vector<32x256xf32>, vector<16x256xf32> -> vector<16x256xf32>
    %c0_6 = arith.constant 0 : index
    %c0_7 = arith.constant 0 : index
    %10 = vector.load %arg5[%c0_6, %c0_7] : memref<1x256xf32, #tpu.memory_space<vmem>>, vector<1x256xf32>
    %11 = vector.broadcast %10 : vector<1x256xf32> to vector<16x256xf32>
    %12 = arith.addf %9, %11 : vector<16x256xf32>
    %c0_8 = arith.constant 0 : index
    %c0_9 = arith.constant 0 : index
    %13 = vector.load %arg3[%c0_8, %c0_9] : memref<32x128xf32, #tpu.memory_space<vmem>>, vector<32x128xf32>
    %c0_10 = arith.constant 0 : index
    %c0_11 = arith.constant 0 : index
    %14 = vector.load %arg4[%c0_10, %c0_11] : memref<32x128xf32, #tpu.memory_space<vmem>>, vector<32x128xf32>
    %cst_12 = arith.constant 0.000000e+00 : f32
    %15 = vector.broadcast %cst_12 : f32 to vector<2x32xf32>
    %cst_13 = arith.constant 0.000000e+00 : f32
    %16 = vector.broadcast %cst_13 : f32 to vector<2x32xf32>
    %cst_14 = arith.constant 0.000000e+00 : f32
    %17 = vector.broadcast %cst_14 : f32 to vector<2x32xf32>
    %cst_15 = arith.constant 0.000000e+00 : f32
    %18 = vector.broadcast %cst_15 : f32 to vector<2x32xf32>
    %19 = vector.extract_strided_slice %12 {offsets = [0, 0], sizes = [2, 128], strides = [1, 1]} : vector<16x256xf32> to vector<2x128xf32>
    %cst_16 = arith.constant dense<0.000000e+00> : vector<2x128xf32>
    %20 = tpu.matmul %15, %13, %cst_16 {dimension_numbers = #tpu.dot_dimension_numbers<[1], [0], [0], [1], [0, 0, 1, 1], [], []>} : vector<2x32xf32>, vector<32x128xf32>, vector<2x128xf32> -> vector<2x128xf32>
    %21 = arith.addf %19, %20 : vector<2x128xf32>
    %22 = vector.extract_strided_slice %21 {offsets = [0, 0], sizes = [2, 32], strides = [1, 1]} : vector<2x128xf32> to vector<2x32xf32>
    %23 = arith.negf %22 : vector<2x32xf32>
    %24 = math.exp %23 : vector<2x32xf32>
    %cst_17 = arith.constant 1.000000e+00 : f32
    %25 = vector.broadcast %cst_17 : f32 to vector<2x32xf32>
    %26 = arith.addf %25, %24 : vector<2x32xf32>
    %27 = arith.divf %25, %26 : vector<2x32xf32>
    %28 = vector.extract_strided_slice %21 {offsets = [0, 32], sizes = [2, 32], strides = [1, 1]} : vector<2x128xf32> to vector<2x32xf32>
    %29 = arith.negf %28 : vector<2x32xf32>
    %30 = math.exp %29 : vector<2x32xf32>
    %cst_18 = arith.constant 1.000000e+00 : f32
    %31 = vector.broadcast %cst_18 : f32 to vector<2x32xf32>
    %32 = arith.addf %31, %30 : vector<2x32xf32>
    %33 = arith.divf %31, %32 : vector<2x32xf32>
    %34 = vector.extract_strided_slice %21 {offsets = [0, 64], sizes = [2, 32], strides = [1, 1]} : vector<2x128xf32> to vector<2x32xf32>
    %35 = math.tanh %34 : vector<2x32xf32>
    %36 = vector.extract_strided_slice %21 {offsets = [0, 96], sizes = [2, 32], strides = [1, 1]} : vector<2x128xf32> to vector<2x32xf32>
    %37 = arith.negf %36 : vector<2x32xf32>
    %38 = math.exp %37 : vector<2x32xf32>
    %cst_19 = arith.constant 1.000000e+00 : f32
    %39 = vector.broadcast %cst_19 : f32 to vector<2x32xf32>
    %40 = arith.addf %39, %38 : vector<2x32xf32>
    %41 = arith.divf %39, %40 : vector<2x32xf32>
    %42 = arith.mulf %33, %16 : vector<2x32xf32>
    %43 = arith.mulf %27, %35 : vector<2x32xf32>
    %44 = arith.addf %42, %43 : vector<2x32xf32>
    %45 = math.tanh %44 : vector<2x32xf32>
    %46 = arith.mulf %41, %45 : vector<2x32xf32>
    %c0_20 = arith.constant 0 : index
    %c0_21 = arith.constant 0 : index
    %47 = vector.load %arg13[%c0_20, %c0_21] : memref<16x64xf32, #tpu.memory_space<vmem>>, vector<2x32xf32>
    tpu.vector_store %arg13[%c0_20, %c0_21], %46 {strides = array<i32>} : memref<16x64xf32, #tpu.memory_space<vmem>>, vector<2x32xf32>,
    %48 = vector.extract_strided_slice %12 {offsets = [14, 128], sizes = [2, 128], strides = [1, 1]} : vector<16x256xf32> to vector<2x128xf32>
    %cst_22 = arith.constant dense<0.000000e+00> : vector<2x128xf32>
    %49 = tpu.matmul %17, %14, %cst_22 {dimension_numbers = #tpu.dot_dimension_numbers<[1], [0], [0], [1], [0, 0, 1, 1], [], []>} : vector<2x32xf32>, vector<32x128xf32>, vector<2x128xf32> -> vector<2x128xf32>
    %50 = arith.addf %48, %49 : vector<2x128xf32>
    %51 = vector.extract_strided_slice %50 {offsets = [0, 0], sizes = [2, 32], strides = [1, 1]} : vector<2x128xf32> to vector<2x32xf32>
    %52 = arith.negf %51 : vector<2x32xf32>
    %53 = math.exp %52 : vector<2x32xf32>
    %cst_23 = arith.constant 1.000000e+00 : f32
    %54 = vector.broadcast %cst_23 : f32 to vector<2x32xf32>
    %55 = arith.addf %54, %53 : vector<2x32xf32>
    %56 = arith.divf %54, %55 : vector<2x32xf32>
    %57 = vector.extract_strided_slice %50 {offsets = [0, 32], sizes = [2, 32], strides = [1, 1]} : vector<2x128xf32> to vector<2x32xf32>
    %58 = arith.negf %57 : vector<2x32xf32>
    %59 = math.exp %58 : vector<2x32xf32>
    %cst_24 = arith.constant 1.000000e+00 : f32
    %60 = vector.broadcast %cst_24 : f32 to vector<2x32xf32>
    %61 = arith.addf %60, %59 : vector<2x32xf32>
    %62 = arith.divf %60, %61 : vector<2x32xf32>
    %63 = vector.extract_strided_slice %50 {offsets = [0, 64], sizes = [2, 32], strides = [1, 1]} : vector<2x128xf32> to vector<2x32xf32>
    %64 = math.tanh %63 : vector<2x32xf32>
    %65 = vector.extract_strided_slice %50 {offsets = [0, 96], sizes = [2, 32], strides = [1, 1]} : vector<2x128xf32> to vector<2x32xf32>
    %66 = arith.negf %65 : vector<2x32xf32>
    %67 = math.exp %66 : vector<2x32xf32>
    %cst_25 = arith.constant 1.000000e+00 : f32
    %68 = vector.broadcast %cst_25 : f32 to vector<2x32xf32>
    %69 = arith.addf %68, %67 : vector<2x32xf32>
    %70 = arith.divf %68, %69 : vector<2x32xf32>
    %71 = arith.mulf %62, %18 : vector<2x32xf32>
    %72 = arith.mulf %56, %64 : vector<2x32xf32>
    %73 = arith.addf %71, %72 : vector<2x32xf32>
    %74 = math.tanh %73 : vector<2x32xf32>
    %75 = arith.mulf %70, %74 : vector<2x32xf32>
    %c14 = arith.constant 14 : index
    %c32 = arith.constant 32 : index
    %76 = vector.load %arg13[%c14, %c32] : memref<16x64xf32, #tpu.memory_space<vmem>>, vector<2x32xf32>
    tpu.vector_store %arg13[%c14, %c32], %75 {strides = array<i32>} : memref<16x64xf32, #tpu.memory_space<vmem>>, vector<2x32xf32>,
    %77 = vector.extract_strided_slice %12 {offsets = [2, 0], sizes = [2, 128], strides = [1, 1]} : vector<16x256xf32> to vector<2x128xf32>
    %cst_26 = arith.constant dense<0.000000e+00> : vector<2x128xf32>
    %78 = tpu.matmul %46, %13, %cst_26 {dimension_numbers = #tpu.dot_dimension_numbers<[1], [0], [0], [1], [0, 0, 1, 1], [], []>} : vector<2x32xf32>, vector<32x128xf32>, vector<2x128xf32> -> vector<2x128xf32>
    %79 = arith.addf %77, %78 : vector<2x128xf32>
    %80 = vector.extract_strided_slice %79 {offsets = [0, 0], sizes = [2, 32], strides = [1, 1]} : vector<2x128xf32> to vector<2x32xf32>
    %81 = arith.negf %80 : vector<2x32xf32>
    %82 = math.exp %81 : vector<2x32xf32>
    %cst_27 = arith.constant 1.000000e+00 : f32
    %83 = vector.broadcast %cst_27 : f32 to vector<2x32xf32>
    %84 = arith.addf %83, %82 : vector<2x32xf32>
    %85 = arith.divf %83, %84 : vector<2x32xf32>
    %86 = vector.extract_strided_slice %79 {offsets = [0, 32], sizes = [2, 32], strides = [1, 1]} : vector<2x128xf32> to vector<2x32xf32>
    %87 = arith.negf %86 : vector<2x32xf32>
    %88 = math.exp %87 : vector<2x32xf32>
    %cst_28 = arith.constant 1.000000e+00 : f32
    %89 = vector.broadcast %cst_28 : f32 to vector<2x32xf32>
    %90 = arith.addf %89, %88 : vector<2x32xf32>
    %91 = arith.divf %89, %90 : vector<2x32xf32>
    %92 = vector.extract_strided_slice %79 {offsets = [0, 64], sizes = [2, 32], strides = [1, 1]} : vector<2x128xf32> to vector<2x32xf32>
    %93 = math.tanh %92 : vector<2x32xf32>
    %94 = vector.extract_strided_slice %79 {offsets = [0, 96], sizes = [2, 32], strides = [1, 1]} : vector<2x128xf32> to vector<2x32xf32>
    %95 = arith.negf %94 : vector<2x32xf32>
    %96 = math.exp %95 : vector<2x32xf32>
    %cst_29 = arith.constant 1.000000e+00 : f32
    %97 = vector.broadcast %cst_29 : f32 to vector<2x32xf32>
    %98 = arith.addf %97, %96 : vector<2x32xf32>
    %99 = arith.divf %97, %98 : vector<2x32xf32>
    %100 = arith.mulf %91, %44 : vector<2x32xf32>
    %101 = arith.mulf %85, %93 : vector<2x32xf32>
    %102 = arith.addf %100, %101 : vector<2x32xf32>
    %103 = math.tanh %102 : vector<2x32xf32>
    %104 = arith.mulf %99, %103 : vector<2x32xf32>
    %c2 = arith.constant 2 : index
    %c0_30 = arith.constant 0 : index
    %105 = vector.load %arg13[%c2, %c0_30] : memref<16x64xf32, #tpu.memory_space<vmem>>, vector<2x32xf32>
    tpu.vector_store %arg13[%c2, %c0_30], %104 {strides = array<i32>} : memref<16x64xf32, #tpu.memory_space<vmem>>, vector<2x32xf32>,
    %106 = vector.extract_strided_slice %12 {offsets = [12, 128], sizes = [2, 128], strides = [1, 1]} : vector<16x256xf32> to vector<2x128xf32>
    %cst_31 = arith.constant dense<0.000000e+00> : vector<2x128xf32>
    %107 = tpu.matmul %75, %14, %cst_31 {dimension_numbers = #tpu.dot_dimension_numbers<[1], [0], [0], [1], [0, 0, 1, 1], [], []>} : vector<2x32xf32>, vector<32x128xf32>, vector<2x128xf32> -> vector<2x128xf32>
    %108 = arith.addf %106, %107 : vector<2x128xf32>
    %109 = vector.extract_strided_slice %108 {offsets = [0, 0], sizes = [2, 32], strides = [1, 1]} : vector<2x128xf32> to vector<2x32xf32>
    %110 = arith.negf %109 : vector<2x32xf32>
    %111 = math.exp %110 : vector<2x32xf32>
    %cst_32 = arith.constant 1.000000e+00 : f32
    %112 = vector.broadcast %cst_32 : f32 to vector<2x32xf32>
    %113 = arith.addf %112, %111 : vector<2x32xf32>
    %114 = arith.divf %112, %113 : vector<2x32xf32>
    %115 = vector.extract_strided_slice %108 {offsets = [0, 32], sizes = [2, 32], strides = [1, 1]} : vector<2x128xf32> to vector<2x32xf32>
    %116 = arith.negf %115 : vector<2x32xf32>
    %117 = math.exp %116 : vector<2x32xf32>
    %cst_33 = arith.constant 1.000000e+00 : f32
    %118 = vector.broadcast %cst_33 : f32 to vector<2x32xf32>
    %119 = arith.addf %118, %117 : vector<2x32xf32>
    %120 = arith.divf %118, %119 : vector<2x32xf32>
    %121 = vector.extract_strided_slice %108 {offsets = [0, 64], sizes = [2, 32], strides = [1, 1]} : vector<2x128xf32> to vector<2x32xf32>
    %122 = math.tanh %121 : vector<2x32xf32>
    %123 = vector.extract_strided_slice %108 {offsets = [0, 96], sizes = [2, 32], strides = [1, 1]} : vector<2x128xf32> to vector<2x32xf32>
    %124 = arith.negf %123 : vector<2x32xf32>
    %125 = math.exp %124 : vector<2x32xf32>
    %cst_34 = arith.constant 1.000000e+00 : f32
    %126 = vector.broadcast %cst_34 : f32 to vector<2x32xf32>
    %127 = arith.addf %126, %125 : vector<2x32xf32>
    %128 = arith.divf %126, %127 : vector<2x32xf32>
    %129 = arith.mulf %120, %73 : vector<2x32xf32>
    %130 = arith.mulf %114, %122 : vector<2x32xf32>
    %131 = arith.addf %129, %130 : vector<2x32xf32>
    %132 = math.tanh %131 : vector<2x32xf32>
    %133 = arith.mulf %128, %132 : vector<2x32xf32>
    %c12 = arith.constant 12 : index
    %c32_35 = arith.constant 32 : index
    %134 = vector.load %arg13[%c12, %c32_35] : memref<16x64xf32, #tpu.memory_space<vmem>>, vector<2x32xf32>
    tpu.vector_store %arg13[%c12, %c32_35], %133 {strides = array<i32>} : memref<16x64xf32, #tpu.memory_space<vmem>>, vector<2x32xf32>,
    %135 = vector.extract_strided_slice %12 {offsets = [4, 0], sizes = [2, 128], strides = [1, 1]} : vector<16x256xf32> to vector<2x128xf32>
    %cst_36 = arith.constant dense<0.000000e+00> : vector<2x128xf32>
    %136 = tpu.matmul %104, %13, %cst_36 {dimension_numbers = #tpu.dot_dimension_numbers<[1], [0], [0], [1], [0, 0, 1, 1], [], []>} : vector<2x32xf32>, vector<32x128xf32>, vector<2x128xf32> -> vector<2x128xf32>
    %137 = arith.addf %135, %136 : vector<2x128xf32>
    %138 = vector.extract_strided_slice %137 {offsets = [0, 0], sizes = [2, 32], strides = [1, 1]} : vector<2x128xf32> to vector<2x32xf32>
    %139 = arith.negf %138 : vector<2x32xf32>
    %140 = math.exp %139 : vector<2x32xf32>
    %cst_37 = arith.constant 1.000000e+00 : f32
    %141 = vector.broadcast %cst_37 : f32 to vector<2x32xf32>
    %142 = arith.addf %141, %140 : vector<2x32xf32>
    %143 = arith.divf %141, %142 : vector<2x32xf32>
    %144 = vector.extract_strided_slice %137 {offsets = [0, 32], sizes = [2, 32], strides = [1, 1]} : vector<2x128xf32> to vector<2x32xf32>
    %145 = arith.negf %144 : vector<2x32xf32>
    %146 = math.exp %145 : vector<2x32xf32>
    %cst_38 = arith.constant 1.000000e+00 : f32
    %147 = vector.broadcast %cst_38 : f32 to vector<2x32xf32>
    %148 = arith.addf %147, %146 : vector<2x32xf32>
    %149 = arith.divf %147, %148 : vector<2x32xf32>
    %150 = vector.extract_strided_slice %137 {offsets = [0, 64], sizes = [2, 32], strides = [1, 1]} : vector<2x128xf32> to vector<2x32xf32>
    %151 = math.tanh %150 : vector<2x32xf32>
    %152 = vector.extract_strided_slice %137 {offsets = [0, 96], sizes = [2, 32], strides = [1, 1]} : vector<2x128xf32> to vector<2x32xf32>
    %153 = arith.negf %152 : vector<2x32xf32>
    %154 = math.exp %153 : vector<2x32xf32>
    %cst_39 = arith.constant 1.000000e+00 : f32
    %155 = vector.broadcast %cst_39 : f32 to vector<2x32xf32>
    %156 = arith.addf %155, %154 : vector<2x32xf32>
    %157 = arith.divf %155, %156 : vector<2x32xf32>
    %158 = arith.mulf %149, %102 : vector<2x32xf32>
    %159 = arith.mulf %143, %151 : vector<2x32xf32>
    %160 = arith.addf %158, %159 : vector<2x32xf32>
    %161 = math.tanh %160 : vector<2x32xf32>
    %162 = arith.mulf %157, %161 : vector<2x32xf32>
    %c4 = arith.constant 4 : index
    %c0_40 = arith.constant 0 : index
    %163 = vector.load %arg13[%c4, %c0_40] : memref<16x64xf32, #tpu.memory_space<vmem>>, vector<2x32xf32>
    tpu.vector_store %arg13[%c4, %c0_40], %162 {strides = array<i32>} : memref<16x64xf32, #tpu.memory_space<vmem>>, vector<2x32xf32>,
    %164 = vector.extract_strided_slice %12 {offsets = [10, 128], sizes = [2, 128], strides = [1, 1]} : vector<16x256xf32> to vector<2x128xf32>
    %cst_41 = arith.constant dense<0.000000e+00> : vector<2x128xf32>
    %165 = tpu.matmul %133, %14, %cst_41 {dimension_numbers = #tpu.dot_dimension_numbers<[1], [0], [0], [1], [0, 0, 1, 1], [], []>} : vector<2x32xf32>, vector<32x128xf32>, vector<2x128xf32> -> vector<2x128xf32>
    %166 = arith.addf %164, %165 : vector<2x128xf32>
    %167 = vector.extract_strided_slice %166 {offsets = [0, 0], sizes = [2, 32], strides = [1, 1]} : vector<2x128xf32> to vector<2x32xf32>
    %168 = arith.negf %167 : vector<2x32xf32>
    %169 = math.exp %168 : vector<2x32xf32>
    %cst_42 = arith.constant 1.000000e+00 : f32
    %170 = vector.broadcast %cst_42 : f32 to vector<2x32xf32>
    %171 = arith.addf %170, %169 : vector<2x32xf32>
    %172 = arith.divf %170, %171 : vector<2x32xf32>
    %173 = vector.extract_strided_slice %166 {offsets = [0, 32], sizes = [2, 32], strides = [1, 1]} : vector<2x128xf32> to vector<2x32xf32>
    %174 = arith.negf %173 : vector<2x32xf32>
    %175 = math.exp %174 : vector<2x32xf32>
    %cst_43 = arith.constant 1.000000e+00 : f32
    %176 = vector.broadcast %cst_43 : f32 to vector<2x32xf32>
    %177 = arith.addf %176, %175 : vector<2x32xf32>
    %178 = arith.divf %176, %177 : vector<2x32xf32>
    %179 = vector.extract_strided_slice %166 {offsets = [0, 64], sizes = [2, 32], strides = [1, 1]} : vector<2x128xf32> to vector<2x32xf32>
    %180 = math.tanh %179 : vector<2x32xf32>
    %181 = vector.extract_strided_slice %166 {offsets = [0, 96], sizes = [2, 32], strides = [1, 1]} : vector<2x128xf32> to vector<2x32xf32>
    %182 = arith.negf %181 : vector<2x32xf32>
    %183 = math.exp %182 : vector<2x32xf32>
    %cst_44 = arith.constant 1.000000e+00 : f32
    %184 = vector.broadcast %cst_44 : f32 to vector<2x32xf32>
    %185 = arith.addf %184, %183 : vector<2x32xf32>
    %186 = arith.divf %184, %185 : vector<2x32xf32>
    %187 = arith.mulf %178, %131 : vector<2x32xf32>
    %188 = arith.mulf %172, %180 : vector<2x32xf32>
    %189 = arith.addf %187, %188 : vector<2x32xf32>
    %190 = math.tanh %189 : vector<2x32xf32>
    %191 = arith.mulf %186, %190 : vector<2x32xf32>
    %c10 = arith.constant 10 : index
    %c32_45 = arith.constant 32 : index
    %192 = vector.load %arg13[%c10, %c32_45] : memref<16x64xf32, #tpu.memory_space<vmem>>, vector<2x32xf32>
    tpu.vector_store %arg13[%c10, %c32_45], %191 {strides = array<i32>} : memref<16x64xf32, #tpu.memory_space<vmem>>, vector<2x32xf32>,
    %193 = vector.extract_strided_slice %12 {offsets = [6, 0], sizes = [2, 128], strides = [1, 1]} : vector<16x256xf32> to vector<2x128xf32>
    %cst_46 = arith.constant dense<0.000000e+00> : vector<2x128xf32>
    %194 = tpu.matmul %162, %13, %cst_46 {dimension_numbers = #tpu.dot_dimension_numbers<[1], [0], [0], [1], [0, 0, 1, 1], [], []>} : vector<2x32xf32>, vector<32x128xf32>, vector<2x128xf32> -> vector<2x128xf32>
    %195 = arith.addf %193, %194 : vector<2x128xf32>
    %196 = vector.extract_strided_slice %195 {offsets = [0, 0], sizes = [2, 32], strides = [1, 1]} : vector<2x128xf32> to vector<2x32xf32>
    %197 = arith.negf %196 : vector<2x32xf32>
    %198 = math.exp %197 : vector<2x32xf32>
    %cst_47 = arith.constant 1.000000e+00 : f32
    %199 = vector.broadcast %cst_47 : f32 to vector<2x32xf32>
    %200 = arith.addf %199, %198 : vector<2x32xf32>
    %201 = arith.divf %199, %200 : vector<2x32xf32>
    %202 = vector.extract_strided_slice %195 {offsets = [0, 32], sizes = [2, 32], strides = [1, 1]} : vector<2x128xf32> to vector<2x32xf32>
    %203 = arith.negf %202 : vector<2x32xf32>
    %204 = math.exp %203 : vector<2x32xf32>
    %cst_48 = arith.constant 1.000000e+00 : f32
    %205 = vector.broadcast %cst_48 : f32 to vector<2x32xf32>
    %206 = arith.addf %205, %204 : vector<2x32xf32>
    %207 = arith.divf %205, %206 : vector<2x32xf32>
    %208 = vector.extract_strided_slice %195 {offsets = [0, 64], sizes = [2, 32], strides = [1, 1]} : vector<2x128xf32> to vector<2x32xf32>
    %209 = math.tanh %208 : vector<2x32xf32>
    %210 = vector.extract_strided_slice %195 {offsets = [0, 96], sizes = [2, 32], strides = [1, 1]} : vector<2x128xf32> to vector<2x32xf32>
    %211 = arith.negf %210 : vector<2x32xf32>
    %212 = math.exp %211 : vector<2x32xf32>
    %cst_49 = arith.constant 1.000000e+00 : f32
    %213 = vector.broadcast %cst_49 : f32 to vector<2x32xf32>
    %214 = arith.addf %213, %212 : vector<2x32xf32>
    %215 = arith.divf %213, %214 : vector<2x32xf32>
    %216 = arith.mulf %207, %160 : vector<2x32xf32>
    %217 = arith.mulf %201, %209 : vector<2x32xf32>
    %218 = arith.addf %216, %217 : vector<2x32xf32>
    %219 = math.tanh %218 : vector<2x32xf32>
    %220 = arith.mulf %215, %219 : vector<2x32xf32>
    %c6 = arith.constant 6 : index
    %c0_50 = arith.constant 0 : index
    %221 = vector.load %arg13[%c6, %c0_50] : memref<16x64xf32, #tpu.memory_space<vmem>>, vector<2x32xf32>
    tpu.vector_store %arg13[%c6, %c0_50], %220 {strides = array<i32>} : memref<16x64xf32, #tpu.memory_space<vmem>>, vector<2x32xf32>,
    %222 = vector.extract_strided_slice %12 {offsets = [8, 128], sizes = [2, 128], strides = [1, 1]} : vector<16x256xf32> to vector<2x128xf32>
    %cst_51 = arith.constant dense<0.000000e+00> : vector<2x128xf32>
    %223 = tpu.matmul %191, %14, %cst_51 {dimension_numbers = #tpu.dot_dimension_numbers<[1], [0], [0], [1], [0, 0, 1, 1], [], []>} : vector<2x32xf32>, vector<32x128xf32>, vector<2x128xf32> -> vector<2x128xf32>
    %224 = arith.addf %222, %223 : vector<2x128xf32>
    %225 = vector.extract_strided_slice %224 {offsets = [0, 0], sizes = [2, 32], strides = [1, 1]} : vector<2x128xf32> to vector<2x32xf32>
    %226 = arith.negf %225 : vector<2x32xf32>
    %227 = math.exp %226 : vector<2x32xf32>
    %cst_52 = arith.constant 1.000000e+00 : f32
    %228 = vector.broadcast %cst_52 : f32 to vector<2x32xf32>
    %229 = arith.addf %228, %227 : vector<2x32xf32>
    %230 = arith.divf %228, %229 : vector<2x32xf32>
    %231 = vector.extract_strided_slice %224 {offsets = [0, 32], sizes = [2, 32], strides = [1, 1]} : vector<2x128xf32> to vector<2x32xf32>
    %232 = arith.negf %231 : vector<2x32xf32>
    %233 = math.exp %232 : vector<2x32xf32>
    %cst_53 = arith.constant 1.000000e+00 : f32
    %234 = vector.broadcast %cst_53 : f32 to vector<2x32xf32>
    %235 = arith.addf %234, %233 : vector<2x32xf32>
    %236 = arith.divf %234, %235 : vector<2x32xf32>
    %237 = vector.extract_strided_slice %224 {offsets = [0, 64], sizes = [2, 32], strides = [1, 1]} : vector<2x128xf32> to vector<2x32xf32>
    %238 = math.tanh %237 : vector<2x32xf32>
    %239 = vector.extract_strided_slice %224 {offsets = [0, 96], sizes = [2, 32], strides = [1, 1]} : vector<2x128xf32> to vector<2x32xf32>
    %240 = arith.negf %239 : vector<2x32xf32>
    %241 = math.exp %240 : vector<2x32xf32>
    %cst_54 = arith.constant 1.000000e+00 : f32
    %242 = vector.broadcast %cst_54 : f32 to vector<2x32xf32>
    %243 = arith.addf %242, %241 : vector<2x32xf32>
    %244 = arith.divf %242, %243 : vector<2x32xf32>
    %245 = arith.mulf %236, %189 : vector<2x32xf32>
    %246 = arith.mulf %230, %238 : vector<2x32xf32>
    %247 = arith.addf %245, %246 : vector<2x32xf32>
    %248 = math.tanh %247 : vector<2x32xf32>
    %249 = arith.mulf %244, %248 : vector<2x32xf32>
    %c8 = arith.constant 8 : index
    %c32_55 = arith.constant 32 : index
    %250 = vector.load %arg13[%c8, %c32_55] : memref<16x64xf32, #tpu.memory_space<vmem>>, vector<2x32xf32>
    tpu.vector_store %arg13[%c8, %c32_55], %249 {strides = array<i32>} : memref<16x64xf32, #tpu.memory_space<vmem>>, vector<2x32xf32>,
    %251 = vector.extract_strided_slice %12 {offsets = [8, 0], sizes = [2, 128], strides = [1, 1]} : vector<16x256xf32> to vector<2x128xf32>
    %cst_56 = arith.constant dense<0.000000e+00> : vector<2x128xf32>
    %252 = tpu.matmul %220, %13, %cst_56 {dimension_numbers = #tpu.dot_dimension_numbers<[1], [0], [0], [1], [0, 0, 1, 1], [], []>} : vector<2x32xf32>, vector<32x128xf32>, vector<2x128xf32> -> vector<2x128xf32>
    %253 = arith.addf %251, %252 : vector<2x128xf32>
    %254 = vector.extract_strided_slice %253 {offsets = [0, 0], sizes = [2, 32], strides = [1, 1]} : vector<2x128xf32> to vector<2x32xf32>
    %255 = arith.negf %254 : vector<2x32xf32>
    %256 = math.exp %255 : vector<2x32xf32>
    %cst_57 = arith.constant 1.000000e+00 : f32
    %257 = vector.broadcast %cst_57 : f32 to vector<2x32xf32>
    %258 = arith.addf %257, %256 : vector<2x32xf32>
    %259 = arith.divf %257, %258 : vector<2x32xf32>
    %260 = vector.extract_strided_slice %253 {offsets = [0, 32], sizes = [2, 32], strides = [1, 1]} : vector<2x128xf32> to vector<2x32xf32>
    %261 = arith.negf %260 : vector<2x32xf32>
    %262 = math.exp %261 : vector<2x32xf32>
    %cst_58 = arith.constant 1.000000e+00 : f32
    %263 = vector.broadcast %cst_58 : f32 to vector<2x32xf32>
    %264 = arith.addf %263, %262 : vector<2x32xf32>
    %265 = arith.divf %263, %264 : vector<2x32xf32>
    %266 = vector.extract_strided_slice %253 {offsets = [0, 64], sizes = [2, 32], strides = [1, 1]} : vector<2x128xf32> to vector<2x32xf32>
    %267 = math.tanh %266 : vector<2x32xf32>
    %268 = vector.extract_strided_slice %253 {offsets = [0, 96], sizes = [2, 32], strides = [1, 1]} : vector<2x128xf32> to vector<2x32xf32>
    %269 = arith.negf %268 : vector<2x32xf32>
    %270 = math.exp %269 : vector<2x32xf32>
    %cst_59 = arith.constant 1.000000e+00 : f32
    %271 = vector.broadcast %cst_59 : f32 to vector<2x32xf32>
    %272 = arith.addf %271, %270 : vector<2x32xf32>
    %273 = arith.divf %271, %272 : vector<2x32xf32>
    %274 = arith.mulf %265, %218 : vector<2x32xf32>
    %275 = arith.mulf %259, %267 : vector<2x32xf32>
    %276 = arith.addf %274, %275 : vector<2x32xf32>
    %277 = math.tanh %276 : vector<2x32xf32>
    %278 = arith.mulf %273, %277 : vector<2x32xf32>
    %c8_60 = arith.constant 8 : index
    %c0_61 = arith.constant 0 : index
    %279 = vector.load %arg13[%c8_60, %c0_61] : memref<16x64xf32, #tpu.memory_space<vmem>>, vector<2x32xf32>
    tpu.vector_store %arg13[%c8_60, %c0_61], %278 {strides = array<i32>} : memref<16x64xf32, #tpu.memory_space<vmem>>, vector<2x32xf32>,
    %280 = vector.extract_strided_slice %12 {offsets = [6, 128], sizes = [2, 128], strides = [1, 1]} : vector<16x256xf32> to vector<2x128xf32>
    %cst_62 = arith.constant dense<0.000000e+00> : vector<2x128xf32>
    %281 = tpu.matmul %249, %14, %cst_62 {dimension_numbers = #tpu.dot_dimension_numbers<[1], [0], [0], [1], [0, 0, 1, 1], [], []>} : vector<2x32xf32>, vector<32x128xf32>, vector<2x128xf32> -> vector<2x128xf32>
    %282 = arith.addf %280, %281 : vector<2x128xf32>
    %283 = vector.extract_strided_slice %282 {offsets = [0, 0], sizes = [2, 32], strides = [1, 1]} : vector<2x128xf32> to vector<2x32xf32>
    %284 = arith.negf %283 : vector<2x32xf32>
    %285 = math.exp %284 : vector<2x32xf32>
    %cst_63 = arith.constant 1.000000e+00 : f32
    %286 = vector.broadcast %cst_63 : f32 to vector<2x32xf32>
    %287 = arith.addf %286, %285 : vector<2x32xf32>
    %288 = arith.divf %286, %287 : vector<2x32xf32>
    %289 = vector.extract_strided_slice %282 {offsets = [0, 32], sizes = [2, 32], strides = [1, 1]} : vector<2x128xf32> to vector<2x32xf32>
    %290 = arith.negf %289 : vector<2x32xf32>
    %291 = math.exp %290 : vector<2x32xf32>
    %cst_64 = arith.constant 1.000000e+00 : f32
    %292 = vector.broadcast %cst_64 : f32 to vector<2x32xf32>
    %293 = arith.addf %292, %291 : vector<2x32xf32>
    %294 = arith.divf %292, %293 : vector<2x32xf32>
    %295 = vector.extract_strided_slice %282 {offsets = [0, 64], sizes = [2, 32], strides = [1, 1]} : vector<2x128xf32> to vector<2x32xf32>
    %296 = math.tanh %295 : vector<2x32xf32>
    %297 = vector.extract_strided_slice %282 {offsets = [0, 96], sizes = [2, 32], strides = [1, 1]} : vector<2x128xf32> to vector<2x32xf32>
    %298 = arith.negf %297 : vector<2x32xf32>
    %299 = math.exp %298 : vector<2x32xf32>
    %cst_65 = arith.constant 1.000000e+00 : f32
    %300 = vector.broadcast %cst_65 : f32 to vector<2x32xf32>
    %301 = arith.addf %300, %299 : vector<2x32xf32>
    %302 = arith.divf %300, %301 : vector<2x32xf32>
    %303 = arith.mulf %294, %247 : vector<2x32xf32>
    %304 = arith.mulf %288, %296 : vector<2x32xf32>
    %305 = arith.addf %303, %304 : vector<2x32xf32>
    %306 = math.tanh %305 : vector<2x32xf32>
    %307 = arith.mulf %302, %306 : vector<2x32xf32>
    %c6_66 = arith.constant 6 : index
    %c32_67 = arith.constant 32 : index
    %308 = vector.load %arg13[%c6_66, %c32_67] : memref<16x64xf32, #tpu.memory_space<vmem>>, vector<2x32xf32>
    tpu.vector_store %arg13[%c6_66, %c32_67], %307 {strides = array<i32>} : memref<16x64xf32, #tpu.memory_space<vmem>>, vector<2x32xf32>,
    %309 = vector.extract_strided_slice %12 {offsets = [10, 0], sizes = [2, 128], strides = [1, 1]} : vector<16x256xf32> to vector<2x128xf32>
    %cst_68 = arith.constant dense<0.000000e+00> : vector<2x128xf32>
    %310 = tpu.matmul %278, %13, %cst_68 {dimension_numbers = #tpu.dot_dimension_numbers<[1], [0], [0], [1], [0, 0, 1, 1], [], []>} : vector<2x32xf32>, vector<32x128xf32>, vector<2x128xf32> -> vector<2x128xf32>
    %311 = arith.addf %309, %310 : vector<2x128xf32>
    %312 = vector.extract_strided_slice %311 {offsets = [0, 0], sizes = [2, 32], strides = [1, 1]} : vector<2x128xf32> to vector<2x32xf32>
    %313 = arith.negf %312 : vector<2x32xf32>
    %314 = math.exp %313 : vector<2x32xf32>
    %cst_69 = arith.constant 1.000000e+00 : f32
    %315 = vector.broadcast %cst_69 : f32 to vector<2x32xf32>
    %316 = arith.addf %315, %314 : vector<2x32xf32>
    %317 = arith.divf %315, %316 : vector<2x32xf32>
    %318 = vector.extract_strided_slice %311 {offsets = [0, 32], sizes = [2, 32], strides = [1, 1]} : vector<2x128xf32> to vector<2x32xf32>
    %319 = arith.negf %318 : vector<2x32xf32>
    %320 = math.exp %319 : vector<2x32xf32>
    %cst_70 = arith.constant 1.000000e+00 : f32
    %321 = vector.broadcast %cst_70 : f32 to vector<2x32xf32>
    %322 = arith.addf %321, %320 : vector<2x32xf32>
    %323 = arith.divf %321, %322 : vector<2x32xf32>
    %324 = vector.extract_strided_slice %311 {offsets = [0, 64], sizes = [2, 32], strides = [1, 1]} : vector<2x128xf32> to vector<2x32xf32>
    %325 = math.tanh %324 : vector<2x32xf32>
    %326 = vector.extract_strided_slice %311 {offsets = [0, 96], sizes = [2, 32], strides = [1, 1]} : vector<2x128xf32> to vector<2x32xf32>
    %327 = arith.negf %326 : vector<2x32xf32>
    %328 = math.exp %327 : vector<2x32xf32>
    %cst_71 = arith.constant 1.000000e+00 : f32
    %329 = vector.broadcast %cst_71 : f32 to vector<2x32xf32>
    %330 = arith.addf %329, %328 : vector<2x32xf32>
    %331 = arith.divf %329, %330 : vector<2x32xf32>
    %332 = arith.mulf %323, %276 : vector<2x32xf32>
    %333 = arith.mulf %317, %325 : vector<2x32xf32>
    %334 = arith.addf %332, %333 : vector<2x32xf32>
    %335 = math.tanh %334 : vector<2x32xf32>
    %336 = arith.mulf %331, %335 : vector<2x32xf32>
    %c10_72 = arith.constant 10 : index
    %c0_73 = arith.constant 0 : index
    %337 = vector.load %arg13[%c10_72, %c0_73] : memref<16x64xf32, #tpu.memory_space<vmem>>, vector<2x32xf32>
    tpu.vector_store %arg13[%c10_72, %c0_73], %336 {strides = array<i32>} : memref<16x64xf32, #tpu.memory_space<vmem>>, vector<2x32xf32>,
    %338 = vector.extract_strided_slice %12 {offsets = [4, 128], sizes = [2, 128], strides = [1, 1]} : vector<16x256xf32> to vector<2x128xf32>
    %cst_74 = arith.constant dense<0.000000e+00> : vector<2x128xf32>
    %339 = tpu.matmul %307, %14, %cst_74 {dimension_numbers = #tpu.dot_dimension_numbers<[1], [0], [0], [1], [0, 0, 1, 1], [], []>} : vector<2x32xf32>, vector<32x128xf32>, vector<2x128xf32> -> vector<2x128xf32>
    %340 = arith.addf %338, %339 : vector<2x128xf32>
    %341 = vector.extract_strided_slice %340 {offsets = [0, 0], sizes = [2, 32], strides = [1, 1]} : vector<2x128xf32> to vector<2x32xf32>
    %342 = arith.negf %341 : vector<2x32xf32>
    %343 = math.exp %342 : vector<2x32xf32>
    %cst_75 = arith.constant 1.000000e+00 : f32
    %344 = vector.broadcast %cst_75 : f32 to vector<2x32xf32>
    %345 = arith.addf %344, %343 : vector<2x32xf32>
    %346 = arith.divf %344, %345 : vector<2x32xf32>
    %347 = vector.extract_strided_slice %340 {offsets = [0, 32], sizes = [2, 32], strides = [1, 1]} : vector<2x128xf32> to vector<2x32xf32>
    %348 = arith.negf %347 : vector<2x32xf32>
    %349 = math.exp %348 : vector<2x32xf32>
    %cst_76 = arith.constant 1.000000e+00 : f32
    %350 = vector.broadcast %cst_76 : f32 to vector<2x32xf32>
    %351 = arith.addf %350, %349 : vector<2x32xf32>
    %352 = arith.divf %350, %351 : vector<2x32xf32>
    %353 = vector.extract_strided_slice %340 {offsets = [0, 64], sizes = [2, 32], strides = [1, 1]} : vector<2x128xf32> to vector<2x32xf32>
    %354 = math.tanh %353 : vector<2x32xf32>
    %355 = vector.extract_strided_slice %340 {offsets = [0, 96], sizes = [2, 32], strides = [1, 1]} : vector<2x128xf32> to vector<2x32xf32>
    %356 = arith.negf %355 : vector<2x32xf32>
    %357 = math.exp %356 : vector<2x32xf32>
    %cst_77 = arith.constant 1.000000e+00 : f32
    %358 = vector.broadcast %cst_77 : f32 to vector<2x32xf32>
    %359 = arith.addf %358, %357 : vector<2x32xf32>
    %360 = arith.divf %358, %359 : vector<2x32xf32>
    %361 = arith.mulf %352, %305 : vector<2x32xf32>
    %362 = arith.mulf %346, %354 : vector<2x32xf32>
    %363 = arith.addf %361, %362 : vector<2x32xf32>
    %364 = math.tanh %363 : vector<2x32xf32>
    %365 = arith.mulf %360, %364 : vector<2x32xf32>
    %c4_78 = arith.constant 4 : index
    %c32_79 = arith.constant 32 : index
    %366 = vector.load %arg13[%c4_78, %c32_79] : memref<16x64xf32, #tpu.memory_space<vmem>>, vector<2x32xf32>
    tpu.vector_store %arg13[%c4_78, %c32_79], %365 {strides = array<i32>} : memref<16x64xf32, #tpu.memory_space<vmem>>, vector<2x32xf32>,
    %367 = vector.extract_strided_slice %12 {offsets = [12, 0], sizes = [2, 128], strides = [1, 1]} : vector<16x256xf32> to vector<2x128xf32>
    %cst_80 = arith.constant dense<0.000000e+00> : vector<2x128xf32>
    %368 = tpu.matmul %336, %13, %cst_80 {dimension_numbers = #tpu.dot_dimension_numbers<[1], [0], [0], [1], [0, 0, 1, 1], [], []>} : vector<2x32xf32>, vector<32x128xf32>, vector<2x128xf32> -> vector<2x128xf32>
    %369 = arith.addf %367, %368 : vector<2x128xf32>
    %370 = vector.extract_strided_slice %369 {offsets = [0, 0], sizes = [2, 32], strides = [1, 1]} : vector<2x128xf32> to vector<2x32xf32>
    %371 = arith.negf %370 : vector<2x32xf32>
    %372 = math.exp %371 : vector<2x32xf32>
    %cst_81 = arith.constant 1.000000e+00 : f32
    %373 = vector.broadcast %cst_81 : f32 to vector<2x32xf32>
    %374 = arith.addf %373, %372 : vector<2x32xf32>
    %375 = arith.divf %373, %374 : vector<2x32xf32>
    %376 = vector.extract_strided_slice %369 {offsets = [0, 32], sizes = [2, 32], strides = [1, 1]} : vector<2x128xf32> to vector<2x32xf32>
    %377 = arith.negf %376 : vector<2x32xf32>
    %378 = math.exp %377 : vector<2x32xf32>
    %cst_82 = arith.constant 1.000000e+00 : f32
    %379 = vector.broadcast %cst_82 : f32 to vector<2x32xf32>
    %380 = arith.addf %379, %378 : vector<2x32xf32>
    %381 = arith.divf %379, %380 : vector<2x32xf32>
    %382 = vector.extract_strided_slice %369 {offsets = [0, 64], sizes = [2, 32], strides = [1, 1]} : vector<2x128xf32> to vector<2x32xf32>
    %383 = math.tanh %382 : vector<2x32xf32>
    %384 = vector.extract_strided_slice %369 {offsets = [0, 96], sizes = [2, 32], strides = [1, 1]} : vector<2x128xf32> to vector<2x32xf32>
    %385 = arith.negf %384 : vector<2x32xf32>
    %386 = math.exp %385 : vector<2x32xf32>
    %cst_83 = arith.constant 1.000000e+00 : f32
    %387 = vector.broadcast %cst_83 : f32 to vector<2x32xf32>
    %388 = arith.addf %387, %386 : vector<2x32xf32>
    %389 = arith.divf %387, %388 : vector<2x32xf32>
    %390 = arith.mulf %381, %334 : vector<2x32xf32>
    %391 = arith.mulf %375, %383 : vector<2x32xf32>
    %392 = arith.addf %390, %391 : vector<2x32xf32>
    %393 = math.tanh %392 : vector<2x32xf32>
    %394 = arith.mulf %389, %393 : vector<2x32xf32>
    %c12_84 = arith.constant 12 : index
    %c0_85 = arith.constant 0 : index
    %395 = vector.load %arg13[%c12_84, %c0_85] : memref<16x64xf32, #tpu.memory_space<vmem>>, vector<2x32xf32>
    tpu.vector_store %arg13[%c12_84, %c0_85], %394 {strides = array<i32>} : memref<16x64xf32, #tpu.memory_space<vmem>>, vector<2x32xf32>,
    %396 = vector.extract_strided_slice %12 {offsets = [2, 128], sizes = [2, 128], strides = [1, 1]} : vector<16x256xf32> to vector<2x128xf32>
    %cst_86 = arith.constant dense<0.000000e+00> : vector<2x128xf32>
    %397 = tpu.matmul %365, %14, %cst_86 {dimension_numbers = #tpu.dot_dimension_numbers<[1], [0], [0], [1], [0, 0, 1, 1], [], []>} : vector<2x32xf32>, vector<32x128xf32>, vector<2x128xf32> -> vector<2x128xf32>
    %398 = arith.addf %396, %397 : vector<2x128xf32>
    %399 = vector.extract_strided_slice %398 {offsets = [0, 0], sizes = [2, 32], strides = [1, 1]} : vector<2x128xf32> to vector<2x32xf32>
    %400 = arith.negf %399 : vector<2x32xf32>
    %401 = math.exp %400 : vector<2x32xf32>
    %cst_87 = arith.constant 1.000000e+00 : f32
    %402 = vector.broadcast %cst_87 : f32 to vector<2x32xf32>
    %403 = arith.addf %402, %401 : vector<2x32xf32>
    %404 = arith.divf %402, %403 : vector<2x32xf32>
    %405 = vector.extract_strided_slice %398 {offsets = [0, 32], sizes = [2, 32], strides = [1, 1]} : vector<2x128xf32> to vector<2x32xf32>
    %406 = arith.negf %405 : vector<2x32xf32>
    %407 = math.exp %406 : vector<2x32xf32>
    %cst_88 = arith.constant 1.000000e+00 : f32
    %408 = vector.broadcast %cst_88 : f32 to vector<2x32xf32>
    %409 = arith.addf %408, %407 : vector<2x32xf32>
    %410 = arith.divf %408, %409 : vector<2x32xf32>
    %411 = vector.extract_strided_slice %398 {offsets = [0, 64], sizes = [2, 32], strides = [1, 1]} : vector<2x128xf32> to vector<2x32xf32>
    %412 = math.tanh %411 : vector<2x32xf32>
    %413 = vector.extract_strided_slice %398 {offsets = [0, 96], sizes = [2, 32], strides = [1, 1]} : vector<2x128xf32> to vector<2x32xf32>
    %414 = arith.negf %413 : vector<2x32xf32>
    %415 = math.exp %414 : vector<2x32xf32>
    %cst_89 = arith.constant 1.000000e+00 : f32
    %416 = vector.broadcast %cst_89 : f32 to vector<2x32xf32>
    %417 = arith.addf %416, %415 : vector<2x32xf32>
    %418 = arith.divf %416, %417 : vector<2x32xf32>
    %419 = arith.mulf %410, %363 : vector<2x32xf32>
    %420 = arith.mulf %404, %412 : vector<2x32xf32>
    %421 = arith.addf %419, %420 : vector<2x32xf32>
    %422 = math.tanh %421 : vector<2x32xf32>
    %423 = arith.mulf %418, %422 : vector<2x32xf32>
    %c2_90 = arith.constant 2 : index
    %c32_91 = arith.constant 32 : index
    %424 = vector.load %arg13[%c2_90, %c32_91] : memref<16x64xf32, #tpu.memory_space<vmem>>, vector<2x32xf32>
    tpu.vector_store %arg13[%c2_90, %c32_91], %423 {strides = array<i32>} : memref<16x64xf32, #tpu.memory_space<vmem>>, vector<2x32xf32>,
    %425 = vector.extract_strided_slice %12 {offsets = [14, 0], sizes = [2, 128], strides = [1, 1]} : vector<16x256xf32> to vector<2x128xf32>
    %cst_92 = arith.constant dense<0.000000e+00> : vector<2x128xf32>
    %426 = tpu.matmul %394, %13, %cst_92 {dimension_numbers = #tpu.dot_dimension_numbers<[1], [0], [0], [1], [0, 0, 1, 1], [], []>} : vector<2x32xf32>, vector<32x128xf32>, vector<2x128xf32> -> vector<2x128xf32>
    %427 = arith.addf %425, %426 : vector<2x128xf32>
    %428 = vector.extract_strided_slice %427 {offsets = [0, 0], sizes = [2, 32], strides = [1, 1]} : vector<2x128xf32> to vector<2x32xf32>
    %429 = arith.negf %428 : vector<2x32xf32>
    %430 = math.exp %429 : vector<2x32xf32>
    %cst_93 = arith.constant 1.000000e+00 : f32
    %431 = vector.broadcast %cst_93 : f32 to vector<2x32xf32>
    %432 = arith.addf %431, %430 : vector<2x32xf32>
    %433 = arith.divf %431, %432 : vector<2x32xf32>
    %434 = vector.extract_strided_slice %427 {offsets = [0, 32], sizes = [2, 32], strides = [1, 1]} : vector<2x128xf32> to vector<2x32xf32>
    %435 = arith.negf %434 : vector<2x32xf32>
    %436 = math.exp %435 : vector<2x32xf32>
    %cst_94 = arith.constant 1.000000e+00 : f32
    %437 = vector.broadcast %cst_94 : f32 to vector<2x32xf32>
    %438 = arith.addf %437, %436 : vector<2x32xf32>
    %439 = arith.divf %437, %438 : vector<2x32xf32>
    %440 = vector.extract_strided_slice %427 {offsets = [0, 64], sizes = [2, 32], strides = [1, 1]} : vector<2x128xf32> to vector<2x32xf32>
    %441 = math.tanh %440 : vector<2x32xf32>
    %442 = vector.extract_strided_slice %427 {offsets = [0, 96], sizes = [2, 32], strides = [1, 1]} : vector<2x128xf32> to vector<2x32xf32>
    %443 = arith.negf %442 : vector<2x32xf32>
    %444 = math.exp %443 : vector<2x32xf32>
    %cst_95 = arith.constant 1.000000e+00 : f32
    %445 = vector.broadcast %cst_95 : f32 to vector<2x32xf32>
    %446 = arith.addf %445, %444 : vector<2x32xf32>
    %447 = arith.divf %445, %446 : vector<2x32xf32>
    %448 = arith.mulf %439, %392 : vector<2x32xf32>
    %449 = arith.mulf %433, %441 : vector<2x32xf32>
    %450 = arith.addf %448, %449 : vector<2x32xf32>
    %451 = math.tanh %450 : vector<2x32xf32>
    %452 = arith.mulf %447, %451 : vector<2x32xf32>
    %c14_96 = arith.constant 14 : index
    %c0_97 = arith.constant 0 : index
    %453 = vector.load %arg13[%c14_96, %c0_97] : memref<16x64xf32, #tpu.memory_space<vmem>>, vector<2x32xf32>
    tpu.vector_store %arg13[%c14_96, %c0_97], %452 {strides = array<i32>} : memref<16x64xf32, #tpu.memory_space<vmem>>, vector<2x32xf32>,
    %454 = vector.extract_strided_slice %12 {offsets = [0, 128], sizes = [2, 128], strides = [1, 1]} : vector<16x256xf32> to vector<2x128xf32>
    %cst_98 = arith.constant dense<0.000000e+00> : vector<2x128xf32>
    %455 = tpu.matmul %423, %14, %cst_98 {dimension_numbers = #tpu.dot_dimension_numbers<[1], [0], [0], [1], [0, 0, 1, 1], [], []>} : vector<2x32xf32>, vector<32x128xf32>, vector<2x128xf32> -> vector<2x128xf32>
    %456 = arith.addf %454, %455 : vector<2x128xf32>
    %457 = vector.extract_strided_slice %456 {offsets = [0, 0], sizes = [2, 32], strides = [1, 1]} : vector<2x128xf32> to vector<2x32xf32>
    %458 = arith.negf %457 : vector<2x32xf32>
    %459 = math.exp %458 : vector<2x32xf32>
    %cst_99 = arith.constant 1.000000e+00 : f32
    %460 = vector.broadcast %cst_99 : f32 to vector<2x32xf32>
    %461 = arith.addf %460, %459 : vector<2x32xf32>
    %462 = arith.divf %460, %461 : vector<2x32xf32>
    %463 = vector.extract_strided_slice %456 {offsets = [0, 32], sizes = [2, 32], strides = [1, 1]} : vector<2x128xf32> to vector<2x32xf32>
    %464 = arith.negf %463 : vector<2x32xf32>
    %465 = math.exp %464 : vector<2x32xf32>
    %cst_100 = arith.constant 1.000000e+00 : f32
    %466 = vector.broadcast %cst_100 : f32 to vector<2x32xf32>
    %467 = arith.addf %466, %465 : vector<2x32xf32>
    %468 = arith.divf %466, %467 : vector<2x32xf32>
    %469 = vector.extract_strided_slice %456 {offsets = [0, 64], sizes = [2, 32], strides = [1, 1]} : vector<2x128xf32> to vector<2x32xf32>
    %470 = math.tanh %469 : vector<2x32xf32>
    %471 = vector.extract_strided_slice %456 {offsets = [0, 96], sizes = [2, 32], strides = [1, 1]} : vector<2x128xf32> to vector<2x32xf32>
    %472 = arith.negf %471 : vector<2x32xf32>
    %473 = math.exp %472 : vector<2x32xf32>
    %cst_101 = arith.constant 1.000000e+00 : f32
    %474 = vector.broadcast %cst_101 : f32 to vector<2x32xf32>
    %475 = arith.addf %474, %473 : vector<2x32xf32>
    %476 = arith.divf %474, %475 : vector<2x32xf32>
    %477 = arith.mulf %468, %421 : vector<2x32xf32>
    %478 = arith.mulf %462, %470 : vector<2x32xf32>
    %479 = arith.addf %477, %478 : vector<2x32xf32>
    %480 = math.tanh %479 : vector<2x32xf32>
    %481 = arith.mulf %476, %480 : vector<2x32xf32>
    %c0_102 = arith.constant 0 : index
    %c32_103 = arith.constant 32 : index
    %482 = vector.load %arg13[%c0_102, %c32_103] : memref<16x64xf32, #tpu.memory_space<vmem>>, vector<2x32xf32>
    tpu.vector_store %arg13[%c0_102, %c32_103], %481 {strides = array<i32>} : memref<16x64xf32, #tpu.memory_space<vmem>>, vector<2x32xf32>,
    %c0_104 = arith.constant 0 : index
    %c0_105 = arith.constant 0 : index
    %483 = vector.load %arg13[%c0_104, %c0_105] : memref<16x64xf32, #tpu.memory_space<vmem>>, vector<16x64xf32>
    %c0_106 = arith.constant 0 : index
    %c0_107 = arith.constant 0 : index
    %484 = vector.load %arg6[%c0_106, %c0_107] : memref<64x256xf32, #tpu.memory_space<vmem>>, vector<64x256xf32>
    %cst_108 = arith.constant dense<0.000000e+00> : vector<16x256xf32>
    %485 = tpu.matmul %483, %484, %cst_108 {dimension_numbers = #tpu.dot_dimension_numbers<[1], [0], [0], [1], [0, 0, 1, 1], [], []>} : vector<16x64xf32>, vector<64x256xf32>, vector<16x256xf32> -> vector<16x256xf32>
    %c0_109 = arith.constant 0 : index
    %c0_110 = arith.constant 0 : index
    %486 = vector.load %arg9[%c0_109, %c0_110] : memref<1x256xf32, #tpu.memory_space<vmem>>, vector<1x256xf32>
    %487 = vector.broadcast %486 : vector<1x256xf32> to vector<16x256xf32>
    %488 = arith.addf %485, %487 : vector<16x256xf32>
    %c0_111 = arith.constant 0 : index
    %c0_112 = arith.constant 0 : index
    %489 = vector.load %arg7[%c0_111, %c0_112] : memref<32x128xf32, #tpu.memory_space<vmem>>, vector<32x128xf32>
    %c0_113 = arith.constant 0 : index
    %c0_114 = arith.constant 0 : index
    %490 = vector.load %arg8[%c0_113, %c0_114] : memref<32x128xf32, #tpu.memory_space<vmem>>, vector<32x128xf32>
    %cst_115 = arith.constant 0.000000e+00 : f32
    %491 = vector.broadcast %cst_115 : f32 to vector<2x32xf32>
    %cst_116 = arith.constant 0.000000e+00 : f32
    %492 = vector.broadcast %cst_116 : f32 to vector<2x32xf32>
    %cst_117 = arith.constant 0.000000e+00 : f32
    %493 = vector.broadcast %cst_117 : f32 to vector<2x32xf32>
    %cst_118 = arith.constant 0.000000e+00 : f32
    %494 = vector.broadcast %cst_118 : f32 to vector<2x32xf32>
    %495 = vector.extract_strided_slice %488 {offsets = [0, 0], sizes = [2, 128], strides = [1, 1]} : vector<16x256xf32> to vector<2x128xf32>
    %cst_119 = arith.constant dense<0.000000e+00> : vector<2x128xf32>
    %496 = tpu.matmul %491, %489, %cst_119 {dimension_numbers = #tpu.dot_dimension_numbers<[1], [0], [0], [1], [0, 0, 1, 1], [], []>} : vector<2x32xf32>, vector<32x128xf32>, vector<2x128xf32> -> vector<2x128xf32>
    %497 = arith.addf %495, %496 : vector<2x128xf32>
    %498 = vector.extract_strided_slice %497 {offsets = [0, 0], sizes = [2, 32], strides = [1, 1]} : vector<2x128xf32> to vector<2x32xf32>
    %499 = arith.negf %498 : vector<2x32xf32>
    %500 = math.exp %499 : vector<2x32xf32>
    %cst_120 = arith.constant 1.000000e+00 : f32
    %501 = vector.broadcast %cst_120 : f32 to vector<2x32xf32>
    %502 = arith.addf %501, %500 : vector<2x32xf32>
    %503 = arith.divf %501, %502 : vector<2x32xf32>
    %504 = vector.extract_strided_slice %497 {offsets = [0, 32], sizes = [2, 32], strides = [1, 1]} : vector<2x128xf32> to vector<2x32xf32>
    %505 = arith.negf %504 : vector<2x32xf32>
    %506 = math.exp %505 : vector<2x32xf32>
    %cst_121 = arith.constant 1.000000e+00 : f32
    %507 = vector.broadcast %cst_121 : f32 to vector<2x32xf32>
    %508 = arith.addf %507, %506 : vector<2x32xf32>
    %509 = arith.divf %507, %508 : vector<2x32xf32>
    %510 = vector.extract_strided_slice %497 {offsets = [0, 64], sizes = [2, 32], strides = [1, 1]} : vector<2x128xf32> to vector<2x32xf32>
    %511 = math.tanh %510 : vector<2x32xf32>
    %512 = vector.extract_strided_slice %497 {offsets = [0, 96], sizes = [2, 32], strides = [1, 1]} : vector<2x128xf32> to vector<2x32xf32>
    %513 = arith.negf %512 : vector<2x32xf32>
    %514 = math.exp %513 : vector<2x32xf32>
    %cst_122 = arith.constant 1.000000e+00 : f32
    %515 = vector.broadcast %cst_122 : f32 to vector<2x32xf32>
    %516 = arith.addf %515, %514 : vector<2x32xf32>
    %517 = arith.divf %515, %516 : vector<2x32xf32>
    %518 = arith.mulf %509, %492 : vector<2x32xf32>
    %519 = arith.mulf %503, %511 : vector<2x32xf32>
    %520 = arith.addf %518, %519 : vector<2x32xf32>
    %521 = math.tanh %520 : vector<2x32xf32>
    %522 = arith.mulf %517, %521 : vector<2x32xf32>
    %c0_123 = arith.constant 0 : index
    %c0_124 = arith.constant 0 : index
    %523 = vector.load %arg13[%c0_123, %c0_124] : memref<16x64xf32, #tpu.memory_space<vmem>>, vector<2x32xf32>
    tpu.vector_store %arg13[%c0_123, %c0_124], %522 {strides = array<i32>} : memref<16x64xf32, #tpu.memory_space<vmem>>, vector<2x32xf32>,
    %524 = vector.extract_strided_slice %488 {offsets = [14, 128], sizes = [2, 128], strides = [1, 1]} : vector<16x256xf32> to vector<2x128xf32>
    %cst_125 = arith.constant dense<0.000000e+00> : vector<2x128xf32>
    %525 = tpu.matmul %493, %490, %cst_125 {dimension_numbers = #tpu.dot_dimension_numbers<[1], [0], [0], [1], [0, 0, 1, 1], [], []>} : vector<2x32xf32>, vector<32x128xf32>, vector<2x128xf32> -> vector<2x128xf32>
    %526 = arith.addf %524, %525 : vector<2x128xf32>
    %527 = vector.extract_strided_slice %526 {offsets = [0, 0], sizes = [2, 32], strides = [1, 1]} : vector<2x128xf32> to vector<2x32xf32>
    %528 = arith.negf %527 : vector<2x32xf32>
    %529 = math.exp %528 : vector<2x32xf32>
    %cst_126 = arith.constant 1.000000e+00 : f32
    %530 = vector.broadcast %cst_126 : f32 to vector<2x32xf32>
    %531 = arith.addf %530, %529 : vector<2x32xf32>
    %532 = arith.divf %530, %531 : vector<2x32xf32>
    %533 = vector.extract_strided_slice %526 {offsets = [0, 32], sizes = [2, 32], strides = [1, 1]} : vector<2x128xf32> to vector<2x32xf32>
    %534 = arith.negf %533 : vector<2x32xf32>
    %535 = math.exp %534 : vector<2x32xf32>
    %cst_127 = arith.constant 1.000000e+00 : f32
    %536 = vector.broadcast %cst_127 : f32 to vector<2x32xf32>
    %537 = arith.addf %536, %535 : vector<2x32xf32>
    %538 = arith.divf %536, %537 : vector<2x32xf32>
    %539 = vector.extract_strided_slice %526 {offsets = [0, 64], sizes = [2, 32], strides = [1, 1]} : vector<2x128xf32> to vector<2x32xf32>
    %540 = math.tanh %539 : vector<2x32xf32>
    %541 = vector.extract_strided_slice %526 {offsets = [0, 96], sizes = [2, 32], strides = [1, 1]} : vector<2x128xf32> to vector<2x32xf32>
    %542 = arith.negf %541 : vector<2x32xf32>
    %543 = math.exp %542 : vector<2x32xf32>
    %cst_128 = arith.constant 1.000000e+00 : f32
    %544 = vector.broadcast %cst_128 : f32 to vector<2x32xf32>
    %545 = arith.addf %544, %543 : vector<2x32xf32>
    %546 = arith.divf %544, %545 : vector<2x32xf32>
    %547 = arith.mulf %538, %494 : vector<2x32xf32>
    %548 = arith.mulf %532, %540 : vector<2x32xf32>
    %549 = arith.addf %547, %548 : vector<2x32xf32>
    %550 = math.tanh %549 : vector<2x32xf32>
    %551 = arith.mulf %546, %550 : vector<2x32xf32>
    %c14_129 = arith.constant 14 : index
    %c32_130 = arith.constant 32 : index
    %552 = vector.load %arg13[%c14_129, %c32_130] : memref<16x64xf32, #tpu.memory_space<vmem>>, vector<2x32xf32>
    tpu.vector_store %arg13[%c14_129, %c32_130], %551 {strides = array<i32>} : memref<16x64xf32, #tpu.memory_space<vmem>>, vector<2x32xf32>,
    %553 = vector.extract_strided_slice %488 {offsets = [2, 0], sizes = [2, 128], strides = [1, 1]} : vector<16x256xf32> to vector<2x128xf32>
    %cst_131 = arith.constant dense<0.000000e+00> : vector<2x128xf32>
    %554 = tpu.matmul %522, %489, %cst_131 {dimension_numbers = #tpu.dot_dimension_numbers<[1], [0], [0], [1], [0, 0, 1, 1], [], []>} : vector<2x32xf32>, vector<32x128xf32>, vector<2x128xf32> -> vector<2x128xf32>
    %555 = arith.addf %553, %554 : vector<2x128xf32>
    %556 = vector.extract_strided_slice %555 {offsets = [0, 0], sizes = [2, 32], strides = [1, 1]} : vector<2x128xf32> to vector<2x32xf32>
    %557 = arith.negf %556 : vector<2x32xf32>
    %558 = math.exp %557 : vector<2x32xf32>
    %cst_132 = arith.constant 1.000000e+00 : f32
    %559 = vector.broadcast %cst_132 : f32 to vector<2x32xf32>
    %560 = arith.addf %559, %558 : vector<2x32xf32>
    %561 = arith.divf %559, %560 : vector<2x32xf32>
    %562 = vector.extract_strided_slice %555 {offsets = [0, 32], sizes = [2, 32], strides = [1, 1]} : vector<2x128xf32> to vector<2x32xf32>
    %563 = arith.negf %562 : vector<2x32xf32>
    %564 = math.exp %563 : vector<2x32xf32>
    %cst_133 = arith.constant 1.000000e+00 : f32
    %565 = vector.broadcast %cst_133 : f32 to vector<2x32xf32>
    %566 = arith.addf %565, %564 : vector<2x32xf32>
    %567 = arith.divf %565, %566 : vector<2x32xf32>
    %568 = vector.extract_strided_slice %555 {offsets = [0, 64], sizes = [2, 32], strides = [1, 1]} : vector<2x128xf32> to vector<2x32xf32>
    %569 = math.tanh %568 : vector<2x32xf32>
    %570 = vector.extract_strided_slice %555 {offsets = [0, 96], sizes = [2, 32], strides = [1, 1]} : vector<2x128xf32> to vector<2x32xf32>
    %571 = arith.negf %570 : vector<2x32xf32>
    %572 = math.exp %571 : vector<2x32xf32>
    %cst_134 = arith.constant 1.000000e+00 : f32
    %573 = vector.broadcast %cst_134 : f32 to vector<2x32xf32>
    %574 = arith.addf %573, %572 : vector<2x32xf32>
    %575 = arith.divf %573, %574 : vector<2x32xf32>
    %576 = arith.mulf %567, %520 : vector<2x32xf32>
    %577 = arith.mulf %561, %569 : vector<2x32xf32>
    %578 = arith.addf %576, %577 : vector<2x32xf32>
    %579 = math.tanh %578 : vector<2x32xf32>
    %580 = arith.mulf %575, %579 : vector<2x32xf32>
    %c2_135 = arith.constant 2 : index
    %c0_136 = arith.constant 0 : index
    %581 = vector.load %arg13[%c2_135, %c0_136] : memref<16x64xf32, #tpu.memory_space<vmem>>, vector<2x32xf32>
    tpu.vector_store %arg13[%c2_135, %c0_136], %580 {strides = array<i32>} : memref<16x64xf32, #tpu.memory_space<vmem>>, vector<2x32xf32>,
    %582 = vector.extract_strided_slice %488 {offsets = [12, 128], sizes = [2, 128], strides = [1, 1]} : vector<16x256xf32> to vector<2x128xf32>
    %cst_137 = arith.constant dense<0.000000e+00> : vector<2x128xf32>
    %583 = tpu.matmul %551, %490, %cst_137 {dimension_numbers = #tpu.dot_dimension_numbers<[1], [0], [0], [1], [0, 0, 1, 1], [], []>} : vector<2x32xf32>, vector<32x128xf32>, vector<2x128xf32> -> vector<2x128xf32>
    %584 = arith.addf %582, %583 : vector<2x128xf32>
    %585 = vector.extract_strided_slice %584 {offsets = [0, 0], sizes = [2, 32], strides = [1, 1]} : vector<2x128xf32> to vector<2x32xf32>
    %586 = arith.negf %585 : vector<2x32xf32>
    %587 = math.exp %586 : vector<2x32xf32>
    %cst_138 = arith.constant 1.000000e+00 : f32
    %588 = vector.broadcast %cst_138 : f32 to vector<2x32xf32>
    %589 = arith.addf %588, %587 : vector<2x32xf32>
    %590 = arith.divf %588, %589 : vector<2x32xf32>
    %591 = vector.extract_strided_slice %584 {offsets = [0, 32], sizes = [2, 32], strides = [1, 1]} : vector<2x128xf32> to vector<2x32xf32>
    %592 = arith.negf %591 : vector<2x32xf32>
    %593 = math.exp %592 : vector<2x32xf32>
    %cst_139 = arith.constant 1.000000e+00 : f32
    %594 = vector.broadcast %cst_139 : f32 to vector<2x32xf32>
    %595 = arith.addf %594, %593 : vector<2x32xf32>
    %596 = arith.divf %594, %595 : vector<2x32xf32>
    %597 = vector.extract_strided_slice %584 {offsets = [0, 64], sizes = [2, 32], strides = [1, 1]} : vector<2x128xf32> to vector<2x32xf32>
    %598 = math.tanh %597 : vector<2x32xf32>
    %599 = vector.extract_strided_slice %584 {offsets = [0, 96], sizes = [2, 32], strides = [1, 1]} : vector<2x128xf32> to vector<2x32xf32>
    %600 = arith.negf %599 : vector<2x32xf32>
    %601 = math.exp %600 : vector<2x32xf32>
    %cst_140 = arith.constant 1.000000e+00 : f32
    %602 = vector.broadcast %cst_140 : f32 to vector<2x32xf32>
    %603 = arith.addf %602, %601 : vector<2x32xf32>
    %604 = arith.divf %602, %603 : vector<2x32xf32>
    %605 = arith.mulf %596, %549 : vector<2x32xf32>
    %606 = arith.mulf %590, %598 : vector<2x32xf32>
    %607 = arith.addf %605, %606 : vector<2x32xf32>
    %608 = math.tanh %607 : vector<2x32xf32>
    %609 = arith.mulf %604, %608 : vector<2x32xf32>
    %c12_141 = arith.constant 12 : index
    %c32_142 = arith.constant 32 : index
    %610 = vector.load %arg13[%c12_141, %c32_142] : memref<16x64xf32, #tpu.memory_space<vmem>>, vector<2x32xf32>
    tpu.vector_store %arg13[%c12_141, %c32_142], %609 {strides = array<i32>} : memref<16x64xf32, #tpu.memory_space<vmem>>, vector<2x32xf32>,
    %611 = vector.extract_strided_slice %488 {offsets = [4, 0], sizes = [2, 128], strides = [1, 1]} : vector<16x256xf32> to vector<2x128xf32>
    %cst_143 = arith.constant dense<0.000000e+00> : vector<2x128xf32>
    %612 = tpu.matmul %580, %489, %cst_143 {dimension_numbers = #tpu.dot_dimension_numbers<[1], [0], [0], [1], [0, 0, 1, 1], [], []>} : vector<2x32xf32>, vector<32x128xf32>, vector<2x128xf32> -> vector<2x128xf32>
    %613 = arith.addf %611, %612 : vector<2x128xf32>
    %614 = vector.extract_strided_slice %613 {offsets = [0, 0], sizes = [2, 32], strides = [1, 1]} : vector<2x128xf32> to vector<2x32xf32>
    %615 = arith.negf %614 : vector<2x32xf32>
    %616 = math.exp %615 : vector<2x32xf32>
    %cst_144 = arith.constant 1.000000e+00 : f32
    %617 = vector.broadcast %cst_144 : f32 to vector<2x32xf32>
    %618 = arith.addf %617, %616 : vector<2x32xf32>
    %619 = arith.divf %617, %618 : vector<2x32xf32>
    %620 = vector.extract_strided_slice %613 {offsets = [0, 32], sizes = [2, 32], strides = [1, 1]} : vector<2x128xf32> to vector<2x32xf32>
    %621 = arith.negf %620 : vector<2x32xf32>
    %622 = math.exp %621 : vector<2x32xf32>
    %cst_145 = arith.constant 1.000000e+00 : f32
    %623 = vector.broadcast %cst_145 : f32 to vector<2x32xf32>
    %624 = arith.addf %623, %622 : vector<2x32xf32>
    %625 = arith.divf %623, %624 : vector<2x32xf32>
    %626 = vector.extract_strided_slice %613 {offsets = [0, 64], sizes = [2, 32], strides = [1, 1]} : vector<2x128xf32> to vector<2x32xf32>
    %627 = math.tanh %626 : vector<2x32xf32>
    %628 = vector.extract_strided_slice %613 {offsets = [0, 96], sizes = [2, 32], strides = [1, 1]} : vector<2x128xf32> to vector<2x32xf32>
    %629 = arith.negf %628 : vector<2x32xf32>
    %630 = math.exp %629 : vector<2x32xf32>
    %cst_146 = arith.constant 1.000000e+00 : f32
    %631 = vector.broadcast %cst_146 : f32 to vector<2x32xf32>
    %632 = arith.addf %631, %630 : vector<2x32xf32>
    %633 = arith.divf %631, %632 : vector<2x32xf32>
    %634 = arith.mulf %625, %578 : vector<2x32xf32>
    %635 = arith.mulf %619, %627 : vector<2x32xf32>
    %636 = arith.addf %634, %635 : vector<2x32xf32>
    %637 = math.tanh %636 : vector<2x32xf32>
    %638 = arith.mulf %633, %637 : vector<2x32xf32>
    %c4_147 = arith.constant 4 : index
    %c0_148 = arith.constant 0 : index
    %639 = vector.load %arg13[%c4_147, %c0_148] : memref<16x64xf32, #tpu.memory_space<vmem>>, vector<2x32xf32>
    tpu.vector_store %arg13[%c4_147, %c0_148], %638 {strides = array<i32>} : memref<16x64xf32, #tpu.memory_space<vmem>>, vector<2x32xf32>,
    %640 = vector.extract_strided_slice %488 {offsets = [10, 128], sizes = [2, 128], strides = [1, 1]} : vector<16x256xf32> to vector<2x128xf32>
    %cst_149 = arith.constant dense<0.000000e+00> : vector<2x128xf32>
    %641 = tpu.matmul %609, %490, %cst_149 {dimension_numbers = #tpu.dot_dimension_numbers<[1], [0], [0], [1], [0, 0, 1, 1], [], []>} : vector<2x32xf32>, vector<32x128xf32>, vector<2x128xf32> -> vector<2x128xf32>
    %642 = arith.addf %640, %641 : vector<2x128xf32>
    %643 = vector.extract_strided_slice %642 {offsets = [0, 0], sizes = [2, 32], strides = [1, 1]} : vector<2x128xf32> to vector<2x32xf32>
    %644 = arith.negf %643 : vector<2x32xf32>
    %645 = math.exp %644 : vector<2x32xf32>
    %cst_150 = arith.constant 1.000000e+00 : f32
    %646 = vector.broadcast %cst_150 : f32 to vector<2x32xf32>
    %647 = arith.addf %646, %645 : vector<2x32xf32>
    %648 = arith.divf %646, %647 : vector<2x32xf32>
    %649 = vector.extract_strided_slice %642 {offsets = [0, 32], sizes = [2, 32], strides = [1, 1]} : vector<2x128xf32> to vector<2x32xf32>
    %650 = arith.negf %649 : vector<2x32xf32>
    %651 = math.exp %650 : vector<2x32xf32>
    %cst_151 = arith.constant 1.000000e+00 : f32
    %652 = vector.broadcast %cst_151 : f32 to vector<2x32xf32>
    %653 = arith.addf %652, %651 : vector<2x32xf32>
    %654 = arith.divf %652, %653 : vector<2x32xf32>
    %655 = vector.extract_strided_slice %642 {offsets = [0, 64], sizes = [2, 32], strides = [1, 1]} : vector<2x128xf32> to vector<2x32xf32>
    %656 = math.tanh %655 : vector<2x32xf32>
    %657 = vector.extract_strided_slice %642 {offsets = [0, 96], sizes = [2, 32], strides = [1, 1]} : vector<2x128xf32> to vector<2x32xf32>
    %658 = arith.negf %657 : vector<2x32xf32>
    %659 = math.exp %658 : vector<2x32xf32>
    %cst_152 = arith.constant 1.000000e+00 : f32
    %660 = vector.broadcast %cst_152 : f32 to vector<2x32xf32>
    %661 = arith.addf %660, %659 : vector<2x32xf32>
    %662 = arith.divf %660, %661 : vector<2x32xf32>
    %663 = arith.mulf %654, %607 : vector<2x32xf32>
    %664 = arith.mulf %648, %656 : vector<2x32xf32>
    %665 = arith.addf %663, %664 : vector<2x32xf32>
    %666 = math.tanh %665 : vector<2x32xf32>
    %667 = arith.mulf %662, %666 : vector<2x32xf32>
    %c10_153 = arith.constant 10 : index
    %c32_154 = arith.constant 32 : index
    %668 = vector.load %arg13[%c10_153, %c32_154] : memref<16x64xf32, #tpu.memory_space<vmem>>, vector<2x32xf32>
    tpu.vector_store %arg13[%c10_153, %c32_154], %667 {strides = array<i32>} : memref<16x64xf32, #tpu.memory_space<vmem>>, vector<2x32xf32>,
    %669 = vector.extract_strided_slice %488 {offsets = [6, 0], sizes = [2, 128], strides = [1, 1]} : vector<16x256xf32> to vector<2x128xf32>
    %cst_155 = arith.constant dense<0.000000e+00> : vector<2x128xf32>
    %670 = tpu.matmul %638, %489, %cst_155 {dimension_numbers = #tpu.dot_dimension_numbers<[1], [0], [0], [1], [0, 0, 1, 1], [], []>} : vector<2x32xf32>, vector<32x128xf32>, vector<2x128xf32> -> vector<2x128xf32>
    %671 = arith.addf %669, %670 : vector<2x128xf32>
    %672 = vector.extract_strided_slice %671 {offsets = [0, 0], sizes = [2, 32], strides = [1, 1]} : vector<2x128xf32> to vector<2x32xf32>
    %673 = arith.negf %672 : vector<2x32xf32>
    %674 = math.exp %673 : vector<2x32xf32>
    %cst_156 = arith.constant 1.000000e+00 : f32
    %675 = vector.broadcast %cst_156 : f32 to vector<2x32xf32>
    %676 = arith.addf %675, %674 : vector<2x32xf32>
    %677 = arith.divf %675, %676 : vector<2x32xf32>
    %678 = vector.extract_strided_slice %671 {offsets = [0, 32], sizes = [2, 32], strides = [1, 1]} : vector<2x128xf32> to vector<2x32xf32>
    %679 = arith.negf %678 : vector<2x32xf32>
    %680 = math.exp %679 : vector<2x32xf32>
    %cst_157 = arith.constant 1.000000e+00 : f32
    %681 = vector.broadcast %cst_157 : f32 to vector<2x32xf32>
    %682 = arith.addf %681, %680 : vector<2x32xf32>
    %683 = arith.divf %681, %682 : vector<2x32xf32>
    %684 = vector.extract_strided_slice %671 {offsets = [0, 64], sizes = [2, 32], strides = [1, 1]} : vector<2x128xf32> to vector<2x32xf32>
    %685 = math.tanh %684 : vector<2x32xf32>
    %686 = vector.extract_strided_slice %671 {offsets = [0, 96], sizes = [2, 32], strides = [1, 1]} : vector<2x128xf32> to vector<2x32xf32>
    %687 = arith.negf %686 : vector<2x32xf32>
    %688 = math.exp %687 : vector<2x32xf32>
    %cst_158 = arith.constant 1.000000e+00 : f32
    %689 = vector.broadcast %cst_158 : f32 to vector<2x32xf32>
    %690 = arith.addf %689, %688 : vector<2x32xf32>
    %691 = arith.divf %689, %690 : vector<2x32xf32>
    %692 = arith.mulf %683, %636 : vector<2x32xf32>
    %693 = arith.mulf %677, %685 : vector<2x32xf32>
    %694 = arith.addf %692, %693 : vector<2x32xf32>
    %695 = math.tanh %694 : vector<2x32xf32>
    %696 = arith.mulf %691, %695 : vector<2x32xf32>
    %c6_159 = arith.constant 6 : index
    %c0_160 = arith.constant 0 : index
    %697 = vector.load %arg13[%c6_159, %c0_160] : memref<16x64xf32, #tpu.memory_space<vmem>>, vector<2x32xf32>
    tpu.vector_store %arg13[%c6_159, %c0_160], %696 {strides = array<i32>} : memref<16x64xf32, #tpu.memory_space<vmem>>, vector<2x32xf32>,
    %698 = vector.extract_strided_slice %488 {offsets = [8, 128], sizes = [2, 128], strides = [1, 1]} : vector<16x256xf32> to vector<2x128xf32>
    %cst_161 = arith.constant dense<0.000000e+00> : vector<2x128xf32>
    %699 = tpu.matmul %667, %490, %cst_161 {dimension_numbers = #tpu.dot_dimension_numbers<[1], [0], [0], [1], [0, 0, 1, 1], [], []>} : vector<2x32xf32>, vector<32x128xf32>, vector<2x128xf32> -> vector<2x128xf32>
    %700 = arith.addf %698, %699 : vector<2x128xf32>
    %701 = vector.extract_strided_slice %700 {offsets = [0, 0], sizes = [2, 32], strides = [1, 1]} : vector<2x128xf32> to vector<2x32xf32>
    %702 = arith.negf %701 : vector<2x32xf32>
    %703 = math.exp %702 : vector<2x32xf32>
    %cst_162 = arith.constant 1.000000e+00 : f32
    %704 = vector.broadcast %cst_162 : f32 to vector<2x32xf32>
    %705 = arith.addf %704, %703 : vector<2x32xf32>
    %706 = arith.divf %704, %705 : vector<2x32xf32>
    %707 = vector.extract_strided_slice %700 {offsets = [0, 32], sizes = [2, 32], strides = [1, 1]} : vector<2x128xf32> to vector<2x32xf32>
    %708 = arith.negf %707 : vector<2x32xf32>
    %709 = math.exp %708 : vector<2x32xf32>
    %cst_163 = arith.constant 1.000000e+00 : f32
    %710 = vector.broadcast %cst_163 : f32 to vector<2x32xf32>
    %711 = arith.addf %710, %709 : vector<2x32xf32>
    %712 = arith.divf %710, %711 : vector<2x32xf32>
    %713 = vector.extract_strided_slice %700 {offsets = [0, 64], sizes = [2, 32], strides = [1, 1]} : vector<2x128xf32> to vector<2x32xf32>
    %714 = math.tanh %713 : vector<2x32xf32>
    %715 = vector.extract_strided_slice %700 {offsets = [0, 96], sizes = [2, 32], strides = [1, 1]} : vector<2x128xf32> to vector<2x32xf32>
    %716 = arith.negf %715 : vector<2x32xf32>
    %717 = math.exp %716 : vector<2x32xf32>
    %cst_164 = arith.constant 1.000000e+00 : f32
    %718 = vector.broadcast %cst_164 : f32 to vector<2x32xf32>
    %719 = arith.addf %718, %717 : vector<2x32xf32>
    %720 = arith.divf %718, %719 : vector<2x32xf32>
    %721 = arith.mulf %712, %665 : vector<2x32xf32>
    %722 = arith.mulf %706, %714 : vector<2x32xf32>
    %723 = arith.addf %721, %722 : vector<2x32xf32>
    %724 = math.tanh %723 : vector<2x32xf32>
    %725 = arith.mulf %720, %724 : vector<2x32xf32>
    %c8_165 = arith.constant 8 : index
    %c32_166 = arith.constant 32 : index
    %726 = vector.load %arg13[%c8_165, %c32_166] : memref<16x64xf32, #tpu.memory_space<vmem>>, vector<2x32xf32>
    tpu.vector_store %arg13[%c8_165, %c32_166], %725 {strides = array<i32>} : memref<16x64xf32, #tpu.memory_space<vmem>>, vector<2x32xf32>,
    %727 = vector.extract_strided_slice %488 {offsets = [8, 0], sizes = [2, 128], strides = [1, 1]} : vector<16x256xf32> to vector<2x128xf32>
    %cst_167 = arith.constant dense<0.000000e+00> : vector<2x128xf32>
    %728 = tpu.matmul %696, %489, %cst_167 {dimension_numbers = #tpu.dot_dimension_numbers<[1], [0], [0], [1], [0, 0, 1, 1], [], []>} : vector<2x32xf32>, vector<32x128xf32>, vector<2x128xf32> -> vector<2x128xf32>
    %729 = arith.addf %727, %728 : vector<2x128xf32>
    %730 = vector.extract_strided_slice %729 {offsets = [0, 0], sizes = [2, 32], strides = [1, 1]} : vector<2x128xf32> to vector<2x32xf32>
    %731 = arith.negf %730 : vector<2x32xf32>
    %732 = math.exp %731 : vector<2x32xf32>
    %cst_168 = arith.constant 1.000000e+00 : f32
    %733 = vector.broadcast %cst_168 : f32 to vector<2x32xf32>
    %734 = arith.addf %733, %732 : vector<2x32xf32>
    %735 = arith.divf %733, %734 : vector<2x32xf32>
    %736 = vector.extract_strided_slice %729 {offsets = [0, 32], sizes = [2, 32], strides = [1, 1]} : vector<2x128xf32> to vector<2x32xf32>
    %737 = arith.negf %736 : vector<2x32xf32>
    %738 = math.exp %737 : vector<2x32xf32>
    %cst_169 = arith.constant 1.000000e+00 : f32
    %739 = vector.broadcast %cst_169 : f32 to vector<2x32xf32>
    %740 = arith.addf %739, %738 : vector<2x32xf32>
    %741 = arith.divf %739, %740 : vector<2x32xf32>
    %742 = vector.extract_strided_slice %729 {offsets = [0, 64], sizes = [2, 32], strides = [1, 1]} : vector<2x128xf32> to vector<2x32xf32>
    %743 = math.tanh %742 : vector<2x32xf32>
    %744 = vector.extract_strided_slice %729 {offsets = [0, 96], sizes = [2, 32], strides = [1, 1]} : vector<2x128xf32> to vector<2x32xf32>
    %745 = arith.negf %744 : vector<2x32xf32>
    %746 = math.exp %745 : vector<2x32xf32>
    %cst_170 = arith.constant 1.000000e+00 : f32
    %747 = vector.broadcast %cst_170 : f32 to vector<2x32xf32>
    %748 = arith.addf %747, %746 : vector<2x32xf32>
    %749 = arith.divf %747, %748 : vector<2x32xf32>
    %750 = arith.mulf %741, %694 : vector<2x32xf32>
    %751 = arith.mulf %735, %743 : vector<2x32xf32>
    %752 = arith.addf %750, %751 : vector<2x32xf32>
    %753 = math.tanh %752 : vector<2x32xf32>
    %754 = arith.mulf %749, %753 : vector<2x32xf32>
    %c8_171 = arith.constant 8 : index
    %c0_172 = arith.constant 0 : index
    %755 = vector.load %arg13[%c8_171, %c0_172] : memref<16x64xf32, #tpu.memory_space<vmem>>, vector<2x32xf32>
    tpu.vector_store %arg13[%c8_171, %c0_172], %754 {strides = array<i32>} : memref<16x64xf32, #tpu.memory_space<vmem>>, vector<2x32xf32>,
    %756 = vector.extract_strided_slice %488 {offsets = [6, 128], sizes = [2, 128], strides = [1, 1]} : vector<16x256xf32> to vector<2x128xf32>
    %cst_173 = arith.constant dense<0.000000e+00> : vector<2x128xf32>
    %757 = tpu.matmul %725, %490, %cst_173 {dimension_numbers = #tpu.dot_dimension_numbers<[1], [0], [0], [1], [0, 0, 1, 1], [], []>} : vector<2x32xf32>, vector<32x128xf32>, vector<2x128xf32> -> vector<2x128xf32>
    %758 = arith.addf %756, %757 : vector<2x128xf32>
    %759 = vector.extract_strided_slice %758 {offsets = [0, 0], sizes = [2, 32], strides = [1, 1]} : vector<2x128xf32> to vector<2x32xf32>
    %760 = arith.negf %759 : vector<2x32xf32>
    %761 = math.exp %760 : vector<2x32xf32>
    %cst_174 = arith.constant 1.000000e+00 : f32
    %762 = vector.broadcast %cst_174 : f32 to vector<2x32xf32>
    %763 = arith.addf %762, %761 : vector<2x32xf32>
    %764 = arith.divf %762, %763 : vector<2x32xf32>
    %765 = vector.extract_strided_slice %758 {offsets = [0, 32], sizes = [2, 32], strides = [1, 1]} : vector<2x128xf32> to vector<2x32xf32>
    %766 = arith.negf %765 : vector<2x32xf32>
    %767 = math.exp %766 : vector<2x32xf32>
    %cst_175 = arith.constant 1.000000e+00 : f32
    %768 = vector.broadcast %cst_175 : f32 to vector<2x32xf32>
    %769 = arith.addf %768, %767 : vector<2x32xf32>
    %770 = arith.divf %768, %769 : vector<2x32xf32>
    %771 = vector.extract_strided_slice %758 {offsets = [0, 64], sizes = [2, 32], strides = [1, 1]} : vector<2x128xf32> to vector<2x32xf32>
    %772 = math.tanh %771 : vector<2x32xf32>
    %773 = vector.extract_strided_slice %758 {offsets = [0, 96], sizes = [2, 32], strides = [1, 1]} : vector<2x128xf32> to vector<2x32xf32>
    %774 = arith.negf %773 : vector<2x32xf32>
    %775 = math.exp %774 : vector<2x32xf32>
    %cst_176 = arith.constant 1.000000e+00 : f32
    %776 = vector.broadcast %cst_176 : f32 to vector<2x32xf32>
    %777 = arith.addf %776, %775 : vector<2x32xf32>
    %778 = arith.divf %776, %777 : vector<2x32xf32>
    %779 = arith.mulf %770, %723 : vector<2x32xf32>
    %780 = arith.mulf %764, %772 : vector<2x32xf32>
    %781 = arith.addf %779, %780 : vector<2x32xf32>
    %782 = math.tanh %781 : vector<2x32xf32>
    %783 = arith.mulf %778, %782 : vector<2x32xf32>
    %c6_177 = arith.constant 6 : index
    %c32_178 = arith.constant 32 : index
    %784 = vector.load %arg13[%c6_177, %c32_178] : memref<16x64xf32, #tpu.memory_space<vmem>>, vector<2x32xf32>
    tpu.vector_store %arg13[%c6_177, %c32_178], %783 {strides = array<i32>} : memref<16x64xf32, #tpu.memory_space<vmem>>, vector<2x32xf32>,
    %785 = vector.extract_strided_slice %488 {offsets = [10, 0], sizes = [2, 128], strides = [1, 1]} : vector<16x256xf32> to vector<2x128xf32>
    %cst_179 = arith.constant dense<0.000000e+00> : vector<2x128xf32>
    %786 = tpu.matmul %754, %489, %cst_179 {dimension_numbers = #tpu.dot_dimension_numbers<[1], [0], [0], [1], [0, 0, 1, 1], [], []>} : vector<2x32xf32>, vector<32x128xf32>, vector<2x128xf32> -> vector<2x128xf32>
    %787 = arith.addf %785, %786 : vector<2x128xf32>
    %788 = vector.extract_strided_slice %787 {offsets = [0, 0], sizes = [2, 32], strides = [1, 1]} : vector<2x128xf32> to vector<2x32xf32>
    %789 = arith.negf %788 : vector<2x32xf32>
    %790 = math.exp %789 : vector<2x32xf32>
    %cst_180 = arith.constant 1.000000e+00 : f32
    %791 = vector.broadcast %cst_180 : f32 to vector<2x32xf32>
    %792 = arith.addf %791, %790 : vector<2x32xf32>
    %793 = arith.divf %791, %792 : vector<2x32xf32>
    %794 = vector.extract_strided_slice %787 {offsets = [0, 32], sizes = [2, 32], strides = [1, 1]} : vector<2x128xf32> to vector<2x32xf32>
    %795 = arith.negf %794 : vector<2x32xf32>
    %796 = math.exp %795 : vector<2x32xf32>
    %cst_181 = arith.constant 1.000000e+00 : f32
    %797 = vector.broadcast %cst_181 : f32 to vector<2x32xf32>
    %798 = arith.addf %797, %796 : vector<2x32xf32>
    %799 = arith.divf %797, %798 : vector<2x32xf32>
    %800 = vector.extract_strided_slice %787 {offsets = [0, 64], sizes = [2, 32], strides = [1, 1]} : vector<2x128xf32> to vector<2x32xf32>
    %801 = math.tanh %800 : vector<2x32xf32>
    %802 = vector.extract_strided_slice %787 {offsets = [0, 96], sizes = [2, 32], strides = [1, 1]} : vector<2x128xf32> to vector<2x32xf32>
    %803 = arith.negf %802 : vector<2x32xf32>
    %804 = math.exp %803 : vector<2x32xf32>
    %cst_182 = arith.constant 1.000000e+00 : f32
    %805 = vector.broadcast %cst_182 : f32 to vector<2x32xf32>
    %806 = arith.addf %805, %804 : vector<2x32xf32>
    %807 = arith.divf %805, %806 : vector<2x32xf32>
    %808 = arith.mulf %799, %752 : vector<2x32xf32>
    %809 = arith.mulf %793, %801 : vector<2x32xf32>
    %810 = arith.addf %808, %809 : vector<2x32xf32>
    %811 = math.tanh %810 : vector<2x32xf32>
    %812 = arith.mulf %807, %811 : vector<2x32xf32>
    %c10_183 = arith.constant 10 : index
    %c0_184 = arith.constant 0 : index
    %813 = vector.load %arg13[%c10_183, %c0_184] : memref<16x64xf32, #tpu.memory_space<vmem>>, vector<2x32xf32>
    tpu.vector_store %arg13[%c10_183, %c0_184], %812 {strides = array<i32>} : memref<16x64xf32, #tpu.memory_space<vmem>>, vector<2x32xf32>,
    %814 = vector.extract_strided_slice %488 {offsets = [4, 128], sizes = [2, 128], strides = [1, 1]} : vector<16x256xf32> to vector<2x128xf32>
    %cst_185 = arith.constant dense<0.000000e+00> : vector<2x128xf32>
    %815 = tpu.matmul %783, %490, %cst_185 {dimension_numbers = #tpu.dot_dimension_numbers<[1], [0], [0], [1], [0, 0, 1, 1], [], []>} : vector<2x32xf32>, vector<32x128xf32>, vector<2x128xf32> -> vector<2x128xf32>
    %816 = arith.addf %814, %815 : vector<2x128xf32>
    %817 = vector.extract_strided_slice %816 {offsets = [0, 0], sizes = [2, 32], strides = [1, 1]} : vector<2x128xf32> to vector<2x32xf32>
    %818 = arith.negf %817 : vector<2x32xf32>
    %819 = math.exp %818 : vector<2x32xf32>
    %cst_186 = arith.constant 1.000000e+00 : f32
    %820 = vector.broadcast %cst_186 : f32 to vector<2x32xf32>
    %821 = arith.addf %820, %819 : vector<2x32xf32>
    %822 = arith.divf %820, %821 : vector<2x32xf32>
    %823 = vector.extract_strided_slice %816 {offsets = [0, 32], sizes = [2, 32], strides = [1, 1]} : vector<2x128xf32> to vector<2x32xf32>
    %824 = arith.negf %823 : vector<2x32xf32>
    %825 = math.exp %824 : vector<2x32xf32>
    %cst_187 = arith.constant 1.000000e+00 : f32
    %826 = vector.broadcast %cst_187 : f32 to vector<2x32xf32>
    %827 = arith.addf %826, %825 : vector<2x32xf32>
    %828 = arith.divf %826, %827 : vector<2x32xf32>
    %829 = vector.extract_strided_slice %816 {offsets = [0, 64], sizes = [2, 32], strides = [1, 1]} : vector<2x128xf32> to vector<2x32xf32>
    %830 = math.tanh %829 : vector<2x32xf32>
    %831 = vector.extract_strided_slice %816 {offsets = [0, 96], sizes = [2, 32], strides = [1, 1]} : vector<2x128xf32> to vector<2x32xf32>
    %832 = arith.negf %831 : vector<2x32xf32>
    %833 = math.exp %832 : vector<2x32xf32>
    %cst_188 = arith.constant 1.000000e+00 : f32
    %834 = vector.broadcast %cst_188 : f32 to vector<2x32xf32>
    %835 = arith.addf %834, %833 : vector<2x32xf32>
    %836 = arith.divf %834, %835 : vector<2x32xf32>
    %837 = arith.mulf %828, %781 : vector<2x32xf32>
    %838 = arith.mulf %822, %830 : vector<2x32xf32>
    %839 = arith.addf %837, %838 : vector<2x32xf32>
    %840 = math.tanh %839 : vector<2x32xf32>
    %841 = arith.mulf %836, %840 : vector<2x32xf32>
    %c4_189 = arith.constant 4 : index
    %c32_190 = arith.constant 32 : index
    %842 = vector.load %arg13[%c4_189, %c32_190] : memref<16x64xf32, #tpu.memory_space<vmem>>, vector<2x32xf32>
    tpu.vector_store %arg13[%c4_189, %c32_190], %841 {strides = array<i32>} : memref<16x64xf32, #tpu.memory_space<vmem>>, vector<2x32xf32>,
    %843 = vector.extract_strided_slice %488 {offsets = [12, 0], sizes = [2, 128], strides = [1, 1]} : vector<16x256xf32> to vector<2x128xf32>
    %cst_191 = arith.constant dense<0.000000e+00> : vector<2x128xf32>
    %844 = tpu.matmul %812, %489, %cst_191 {dimension_numbers = #tpu.dot_dimension_numbers<[1], [0], [0], [1], [0, 0, 1, 1], [], []>} : vector<2x32xf32>, vector<32x128xf32>, vector<2x128xf32> -> vector<2x128xf32>
    %845 = arith.addf %843, %844 : vector<2x128xf32>
    %846 = vector.extract_strided_slice %845 {offsets = [0, 0], sizes = [2, 32], strides = [1, 1]} : vector<2x128xf32> to vector<2x32xf32>
    %847 = arith.negf %846 : vector<2x32xf32>
    %848 = math.exp %847 : vector<2x32xf32>
    %cst_192 = arith.constant 1.000000e+00 : f32
    %849 = vector.broadcast %cst_192 : f32 to vector<2x32xf32>
    %850 = arith.addf %849, %848 : vector<2x32xf32>
    %851 = arith.divf %849, %850 : vector<2x32xf32>
    %852 = vector.extract_strided_slice %845 {offsets = [0, 32], sizes = [2, 32], strides = [1, 1]} : vector<2x128xf32> to vector<2x32xf32>
    %853 = arith.negf %852 : vector<2x32xf32>
    %854 = math.exp %853 : vector<2x32xf32>
    %cst_193 = arith.constant 1.000000e+00 : f32
    %855 = vector.broadcast %cst_193 : f32 to vector<2x32xf32>
    %856 = arith.addf %855, %854 : vector<2x32xf32>
    %857 = arith.divf %855, %856 : vector<2x32xf32>
    %858 = vector.extract_strided_slice %845 {offsets = [0, 64], sizes = [2, 32], strides = [1, 1]} : vector<2x128xf32> to vector<2x32xf32>
    %859 = math.tanh %858 : vector<2x32xf32>
    %860 = vector.extract_strided_slice %845 {offsets = [0, 96], sizes = [2, 32], strides = [1, 1]} : vector<2x128xf32> to vector<2x32xf32>
    %861 = arith.negf %860 : vector<2x32xf32>
    %862 = math.exp %861 : vector<2x32xf32>
    %cst_194 = arith.constant 1.000000e+00 : f32
    %863 = vector.broadcast %cst_194 : f32 to vector<2x32xf32>
    %864 = arith.addf %863, %862 : vector<2x32xf32>
    %865 = arith.divf %863, %864 : vector<2x32xf32>
    %866 = arith.mulf %857, %810 : vector<2x32xf32>
    %867 = arith.mulf %851, %859 : vector<2x32xf32>
    %868 = arith.addf %866, %867 : vector<2x32xf32>
    %869 = math.tanh %868 : vector<2x32xf32>
    %870 = arith.mulf %865, %869 : vector<2x32xf32>
    %c12_195 = arith.constant 12 : index
    %c0_196 = arith.constant 0 : index
    %871 = vector.load %arg13[%c12_195, %c0_196] : memref<16x64xf32, #tpu.memory_space<vmem>>, vector<2x32xf32>
    tpu.vector_store %arg13[%c12_195, %c0_196], %870 {strides = array<i32>} : memref<16x64xf32, #tpu.memory_space<vmem>>, vector<2x32xf32>,
    %872 = vector.extract_strided_slice %488 {offsets = [2, 128], sizes = [2, 128], strides = [1, 1]} : vector<16x256xf32> to vector<2x128xf32>
    %cst_197 = arith.constant dense<0.000000e+00> : vector<2x128xf32>
    %873 = tpu.matmul %841, %490, %cst_197 {dimension_numbers = #tpu.dot_dimension_numbers<[1], [0], [0], [1], [0, 0, 1, 1], [], []>} : vector<2x32xf32>, vector<32x128xf32>, vector<2x128xf32> -> vector<2x128xf32>
    %874 = arith.addf %872, %873 : vector<2x128xf32>
    %875 = vector.extract_strided_slice %874 {offsets = [0, 0], sizes = [2, 32], strides = [1, 1]} : vector<2x128xf32> to vector<2x32xf32>
    %876 = arith.negf %875 : vector<2x32xf32>
    %877 = math.exp %876 : vector<2x32xf32>
    %cst_198 = arith.constant 1.000000e+00 : f32
    %878 = vector.broadcast %cst_198 : f32 to vector<2x32xf32>
    %879 = arith.addf %878, %877 : vector<2x32xf32>
    %880 = arith.divf %878, %879 : vector<2x32xf32>
    %881 = vector.extract_strided_slice %874 {offsets = [0, 32], sizes = [2, 32], strides = [1, 1]} : vector<2x128xf32> to vector<2x32xf32>
    %882 = arith.negf %881 : vector<2x32xf32>
    %883 = math.exp %882 : vector<2x32xf32>
    %cst_199 = arith.constant 1.000000e+00 : f32
    %884 = vector.broadcast %cst_199 : f32 to vector<2x32xf32>
    %885 = arith.addf %884, %883 : vector<2x32xf32>
    %886 = arith.divf %884, %885 : vector<2x32xf32>
    %887 = vector.extract_strided_slice %874 {offsets = [0, 64], sizes = [2, 32], strides = [1, 1]} : vector<2x128xf32> to vector<2x32xf32>
    %888 = math.tanh %887 : vector<2x32xf32>
    %889 = vector.extract_strided_slice %874 {offsets = [0, 96], sizes = [2, 32], strides = [1, 1]} : vector<2x128xf32> to vector<2x32xf32>
    %890 = arith.negf %889 : vector<2x32xf32>
    %891 = math.exp %890 : vector<2x32xf32>
    %cst_200 = arith.constant 1.000000e+00 : f32
    %892 = vector.broadcast %cst_200 : f32 to vector<2x32xf32>
    %893 = arith.addf %892, %891 : vector<2x32xf32>
    %894 = arith.divf %892, %893 : vector<2x32xf32>
    %895 = arith.mulf %886, %839 : vector<2x32xf32>
    %896 = arith.mulf %880, %888 : vector<2x32xf32>
    %897 = arith.addf %895, %896 : vector<2x32xf32>
    %898 = math.tanh %897 : vector<2x32xf32>
    %899 = arith.mulf %894, %898 : vector<2x32xf32>
    %c2_201 = arith.constant 2 : index
    %c32_202 = arith.constant 32 : index
    %900 = vector.load %arg13[%c2_201, %c32_202] : memref<16x64xf32, #tpu.memory_space<vmem>>, vector<2x32xf32>
    tpu.vector_store %arg13[%c2_201, %c32_202], %899 {strides = array<i32>} : memref<16x64xf32, #tpu.memory_space<vmem>>, vector<2x32xf32>,
    %901 = vector.extract_strided_slice %488 {offsets = [14, 0], sizes = [2, 128], strides = [1, 1]} : vector<16x256xf32> to vector<2x128xf32>
    %cst_203 = arith.constant dense<0.000000e+00> : vector<2x128xf32>
    %902 = tpu.matmul %870, %489, %cst_203 {dimension_numbers = #tpu.dot_dimension_numbers<[1], [0], [0], [1], [0, 0, 1, 1], [], []>} : vector<2x32xf32>, vector<32x128xf32>, vector<2x128xf32> -> vector<2x128xf32>
    %903 = arith.addf %901, %902 : vector<2x128xf32>
    %904 = vector.extract_strided_slice %903 {offsets = [0, 0], sizes = [2, 32], strides = [1, 1]} : vector<2x128xf32> to vector<2x32xf32>
    %905 = arith.negf %904 : vector<2x32xf32>
    %906 = math.exp %905 : vector<2x32xf32>
    %cst_204 = arith.constant 1.000000e+00 : f32
    %907 = vector.broadcast %cst_204 : f32 to vector<2x32xf32>
    %908 = arith.addf %907, %906 : vector<2x32xf32>
    %909 = arith.divf %907, %908 : vector<2x32xf32>
    %910 = vector.extract_strided_slice %903 {offsets = [0, 32], sizes = [2, 32], strides = [1, 1]} : vector<2x128xf32> to vector<2x32xf32>
    %911 = arith.negf %910 : vector<2x32xf32>
    %912 = math.exp %911 : vector<2x32xf32>
    %cst_205 = arith.constant 1.000000e+00 : f32
    %913 = vector.broadcast %cst_205 : f32 to vector<2x32xf32>
    %914 = arith.addf %913, %912 : vector<2x32xf32>
    %915 = arith.divf %913, %914 : vector<2x32xf32>
    %916 = vector.extract_strided_slice %903 {offsets = [0, 64], sizes = [2, 32], strides = [1, 1]} : vector<2x128xf32> to vector<2x32xf32>
    %917 = math.tanh %916 : vector<2x32xf32>
    %918 = vector.extract_strided_slice %903 {offsets = [0, 96], sizes = [2, 32], strides = [1, 1]} : vector<2x128xf32> to vector<2x32xf32>
    %919 = arith.negf %918 : vector<2x32xf32>
    %920 = math.exp %919 : vector<2x32xf32>
    %cst_206 = arith.constant 1.000000e+00 : f32
    %921 = vector.broadcast %cst_206 : f32 to vector<2x32xf32>
    %922 = arith.addf %921, %920 : vector<2x32xf32>
    %923 = arith.divf %921, %922 : vector<2x32xf32>
    %924 = arith.mulf %915, %868 : vector<2x32xf32>
    %925 = arith.mulf %909, %917 : vector<2x32xf32>
    %926 = arith.addf %924, %925 : vector<2x32xf32>
    %927 = math.tanh %926 : vector<2x32xf32>
    %928 = arith.mulf %923, %927 : vector<2x32xf32>
    %c14_207 = arith.constant 14 : index
    %c0_208 = arith.constant 0 : index
    %929 = vector.load %arg13[%c14_207, %c0_208] : memref<16x64xf32, #tpu.memory_space<vmem>>, vector<2x32xf32>
    tpu.vector_store %arg13[%c14_207, %c0_208], %928 {strides = array<i32>} : memref<16x64xf32, #tpu.memory_space<vmem>>, vector<2x32xf32>,
    %930 = vector.extract_strided_slice %488 {offsets = [0, 128], sizes = [2, 128], strides = [1, 1]} : vector<16x256xf32> to vector<2x128xf32>
    %cst_209 = arith.constant dense<0.000000e+00> : vector<2x128xf32>
    %931 = tpu.matmul %899, %490, %cst_209 {dimension_numbers = #tpu.dot_dimension_numbers<[1], [0], [0], [1], [0, 0, 1, 1], [], []>} : vector<2x32xf32>, vector<32x128xf32>, vector<2x128xf32> -> vector<2x128xf32>
    %932 = arith.addf %930, %931 : vector<2x128xf32>
    %933 = vector.extract_strided_slice %932 {offsets = [0, 0], sizes = [2, 32], strides = [1, 1]} : vector<2x128xf32> to vector<2x32xf32>
    %934 = arith.negf %933 : vector<2x32xf32>
    %935 = math.exp %934 : vector<2x32xf32>
    %cst_210 = arith.constant 1.000000e+00 : f32
    %936 = vector.broadcast %cst_210 : f32 to vector<2x32xf32>
    %937 = arith.addf %936, %935 : vector<2x32xf32>
    %938 = arith.divf %936, %937 : vector<2x32xf32>
    %939 = vector.extract_strided_slice %932 {offsets = [0, 32], sizes = [2, 32], strides = [1, 1]} : vector<2x128xf32> to vector<2x32xf32>
    %940 = arith.negf %939 : vector<2x32xf32>
    %941 = math.exp %940 : vector<2x32xf32>
    %cst_211 = arith.constant 1.000000e+00 : f32
    %942 = vector.broadcast %cst_211 : f32 to vector<2x32xf32>
    %943 = arith.addf %942, %941 : vector<2x32xf32>
    %944 = arith.divf %942, %943 : vector<2x32xf32>
    %945 = vector.extract_strided_slice %932 {offsets = [0, 64], sizes = [2, 32], strides = [1, 1]} : vector<2x128xf32> to vector<2x32xf32>
    %946 = math.tanh %945 : vector<2x32xf32>
    %947 = vector.extract_strided_slice %932 {offsets = [0, 96], sizes = [2, 32], strides = [1, 1]} : vector<2x128xf32> to vector<2x32xf32>
    %948 = arith.negf %947 : vector<2x32xf32>
    %949 = math.exp %948 : vector<2x32xf32>
    %cst_212 = arith.constant 1.000000e+00 : f32
    %950 = vector.broadcast %cst_212 : f32 to vector<2x32xf32>
    %951 = arith.addf %950, %949 : vector<2x32xf32>
    %952 = arith.divf %950, %951 : vector<2x32xf32>
    %953 = arith.mulf %944, %897 : vector<2x32xf32>
    %954 = arith.mulf %938, %946 : vector<2x32xf32>
    %955 = arith.addf %953, %954 : vector<2x32xf32>
    %956 = math.tanh %955 : vector<2x32xf32>
    %957 = arith.mulf %952, %956 : vector<2x32xf32>
    %c0_213 = arith.constant 0 : index
    %c32_214 = arith.constant 32 : index
    %958 = vector.load %arg13[%c0_213, %c32_214] : memref<16x64xf32, #tpu.memory_space<vmem>>, vector<2x32xf32>
    tpu.vector_store %arg13[%c0_213, %c32_214], %957 {strides = array<i32>} : memref<16x64xf32, #tpu.memory_space<vmem>>, vector<2x32xf32>,
    %c0_215 = arith.constant 0 : index
    %c0_216 = arith.constant 0 : index
    %959 = vector.load %arg10[%c0_215, %c0_216] : memref<128x2xf32, #tpu.memory_space<vmem>>, vector<128x2xf32>
    %c0_217 = arith.constant 0 : index
    %c0_218 = arith.constant 0 : index
    %960 = vector.load %arg13[%c0_217, %c0_218] : memref<16x64xf32, #tpu.memory_space<vmem>>, vector<2x32xf32>
    %c0_219 = arith.constant 0 : index
    %c32_220 = arith.constant 32 : index
    %961 = vector.load %arg13[%c0_219, %c32_220] : memref<16x64xf32, #tpu.memory_space<vmem>>, vector<2x32xf32>
    %c14_221 = arith.constant 14 : index
    %c0_222 = arith.constant 0 : index
    %962 = vector.load %arg13[%c14_221, %c0_222] : memref<16x64xf32, #tpu.memory_space<vmem>>, vector<2x32xf32>
    %c14_223 = arith.constant 14 : index
    %c32_224 = arith.constant 32 : index
    %963 = vector.load %arg13[%c14_223, %c32_224] : memref<16x64xf32, #tpu.memory_space<vmem>>, vector<2x32xf32>
    %964 = vector.extract_strided_slice %959 {offsets = [0, 0], sizes = [32, 2], strides = [1, 1]} : vector<128x2xf32> to vector<32x2xf32>
    %cst_225 = arith.constant dense<0.000000e+00> : vector<2x2xf32>
    %965 = tpu.matmul %960, %964, %cst_225 {dimension_numbers = #tpu.dot_dimension_numbers<[1], [0], [0], [1], [0, 0, 1, 1], [], []>} : vector<2x32xf32>, vector<32x2xf32>, vector<2x2xf32> -> vector<2x2xf32>
    %966 = vector.extract_strided_slice %959 {offsets = [32, 0], sizes = [32, 2], strides = [1, 1]} : vector<128x2xf32> to vector<32x2xf32>
    %cst_226 = arith.constant dense<0.000000e+00> : vector<2x2xf32>
    %967 = tpu.matmul %961, %966, %cst_226 {dimension_numbers = #tpu.dot_dimension_numbers<[1], [0], [0], [1], [0, 0, 1, 1], [], []>} : vector<2x32xf32>, vector<32x2xf32>, vector<2x2xf32> -> vector<2x2xf32>
    %968 = arith.addf %965, %967 : vector<2x2xf32>
    %969 = vector.extract_strided_slice %959 {offsets = [64, 0], sizes = [32, 2], strides = [1, 1]} : vector<128x2xf32> to vector<32x2xf32>
    %cst_227 = arith.constant dense<0.000000e+00> : vector<2x2xf32>
    %970 = tpu.matmul %962, %969, %cst_227 {dimension_numbers = #tpu.dot_dimension_numbers<[1], [0], [0], [1], [0, 0, 1, 1], [], []>} : vector<2x32xf32>, vector<32x2xf32>, vector<2x2xf32> -> vector<2x2xf32>
    %971 = arith.addf %968, %970 : vector<2x2xf32>
    %972 = vector.extract_strided_slice %959 {offsets = [96, 0], sizes = [32, 2], strides = [1, 1]} : vector<128x2xf32> to vector<32x2xf32>
    %cst_228 = arith.constant dense<0.000000e+00> : vector<2x2xf32>
    %973 = tpu.matmul %963, %972, %cst_228 {dimension_numbers = #tpu.dot_dimension_numbers<[1], [0], [0], [1], [0, 0, 1, 1], [], []>} : vector<2x32xf32>, vector<32x2xf32>, vector<2x2xf32> -> vector<2x2xf32>
    %974 = arith.addf %971, %973 : vector<2x2xf32>
    %c0_229 = arith.constant 0 : index
    %c0_230 = arith.constant 0 : index
    %975 = vector.load %arg11[%c0_229, %c0_230] : memref<1x2xf32, #tpu.memory_space<vmem>>, vector<1x2xf32>
    %976 = vector.broadcast %975 : vector<1x2xf32> to vector<2x2xf32>
    %977 = arith.addf %974, %976 : vector<2x2xf32>
    %c0_231 = arith.constant 0 : index
    %c0_232 = arith.constant 0 : index
    %978 = vector.load %arg12[%c0_231, %c0_232] : memref<2x2xf32, #tpu.memory_space<vmem>>, vector<2x2xf32>
    tpu.vector_store %arg12[%c0_231, %c0_232], %977 {strides = array<i32>} : memref<2x2xf32, #tpu.memory_space<vmem>>, vector<2x2xf32>,
    return
  }
}

</mosaic_0001>

<llo_original>
// kernel: birnn_forward_pallas.1
$region0: #{birnn_forward_pallas.1}
  #allocation0 [shape = 'u32[]', space=smem, size = 0x4, offset = 0x4, fixed_abs, tag = 'smem constant byte address 0x4 - core index']
  #allocation1 [shape = 'u32[144,128]{1,0:T(1,128)}', space=vmem, size = 0x12000, scoped, tag = 'internal scratch']
  #allocation2 [shape = 'f32[16,64]{1,0:T(8,128)}', space=vmem, size = 0x2000, scoped, tag = 'scratch operand']
  %s0 = inlined_call_operand.vmem [shape: s32[16,1], index: 0, kind: input, shape index: {}]
  %s1 = inlined_call_operand.vmem [shape: f32[128,32], index: 1, kind: input, shape index: {}]
  %s2 = inlined_call_operand.vmem [shape: f32[32,256], index: 2, kind: input, shape index: {}]
  %s3 = inlined_call_operand.vmem [shape: f32[32,128], index: 3, kind: input, shape index: {}]
  %s4 = inlined_call_operand.vmem [shape: f32[32,128], index: 4, kind: input, shape index: {}]
  %s5 = inlined_call_operand.vmem [shape: f32[1,256], index: 5, kind: input, shape index: {}]
  %s6 = inlined_call_operand.vmem [shape: f32[64,256], index: 6, kind: input, shape index: {}]
  %s7 = inlined_call_operand.vmem [shape: f32[32,128], index: 7, kind: input, shape index: {}]
  %s8 = inlined_call_operand.vmem [shape: f32[32,128], index: 8, kind: input, shape index: {}]
  %s9 = inlined_call_operand.vmem [shape: f32[1,256], index: 9, kind: input, shape index: {}]
  %s10 = inlined_call_operand.vmem [shape: f32[128,2], index: 10, kind: input, shape index: {}]
  %s11 = inlined_call_operand.vmem [shape: f32[1,2], index: 11, kind: input, shape index: {}]
  %s12 = inlined_call_operand.hbm [shape: f32[2,2], index: 12, kind: output, shape index: {}]
  %s13 = sld [smem:[#allocation0]]
  $region58: #{birnn_forward_pallas.1} parent=0
    _
  %s15 = ssub.s32 1, %s13
  %s16 = scalar_select 0, %s15, %s13
  $region1: #{birnn_forward_pallas.1} parent=0
    #allocation3 [shape = 'u8[1024]{0}', space=vmem, size = 0x400, scoped, tag = 'output window, operand 0, single buffered']
    #allocation4 [shape = 's32[1]{0}', space=sflag, size = 0x4, scoped, tag = 'scoped memory for birnn_forward_pallas.1']
    %17 = vsyncpa [#allocation4], 0
    // Predicated region
    $region2: #{birnn_forward_pallas.1} parent=1 // pred_check
      _
    $region3: #{birnn_forward_pallas.1} parent=1 // pred_check_branch
      %19 = sbr.rel (0) target = $region5
    $region4: #{birnn_forward_pallas.1} parent=1 // pred_region
      _
    $region5: #{birnn_forward_pallas.1} parent=1 // pred_fallthru
      _
    // Predicated region
    $region6: #{birnn_forward_pallas.1} parent=1 // pred_check
      _
    $region7: #{birnn_forward_pallas.1} parent=1 // pred_check_branch
      %21 = sbr.rel (0) target = $region9
    $region8: #{birnn_forward_pallas.1} parent=1 // pred_region
      _
    $region9: #{birnn_forward_pallas.1} parent=1 // pred_fallthru
      _
    // Predicated region
    $region10: #{birnn_forward_pallas.1} parent=1 // pred_check
      _
    $region11: #{birnn_forward_pallas.1} parent=1 // pred_check_branch
      %23 = sbr.rel (0) target = $region13
    $region12: #{birnn_forward_pallas.1} parent=1 // pred_region
      _
    $region13: #{birnn_forward_pallas.1} parent=1 // pred_fallthru
      _
    // Predicated region
    $region14: #{birnn_forward_pallas.1} parent=1 // pred_check
      _
    $region15: #{birnn_forward_pallas.1} parent=1 // pred_check_branch
      %25 = sbr.rel (0) target = $region17
    $region16: #{birnn_forward_pallas.1} parent=1 // pred_region
      _
    $region17: #{birnn_forward_pallas.1} parent=1 // pred_fallthru
      _
    // Predicated region
    $region18: #{birnn_forward_pallas.1} parent=1 // pred_check
      _
    $region19: #{birnn_forward_pallas.1} parent=1 // pred_check_branch
      %27 = sbr.rel (0) target = $region21
    $region20: #{birnn_forward_pallas.1} parent=1 // pred_region
      _
    $region21: #{birnn_forward_pallas.1} parent=1 // pred_fallthru
      _
    // Predicated region
    $region22: #{birnn_forward_pallas.1} parent=1 // pred_check
      _
    $region23: #{birnn_forward_pallas.1} parent=1 // pred_check_branch
      %29 = sbr.rel (0) target = $region25
    $region24: #{birnn_forward_pallas.1} parent=1 // pred_region
      _
    $region25: #{birnn_forward_pallas.1} parent=1 // pred_fallthru
      _
    // Predicated region
    $region26: #{birnn_forward_pallas.1} parent=1 // pred_check
      _
    $region27: #{birnn_forward_pallas.1} parent=1 // pred_check_branch
      %31 = sbr.rel (0) target = $region29
    $region28: #{birnn_forward_pallas.1} parent=1 // pred_region
      _
    $region29: #{birnn_forward_pallas.1} parent=1 // pred_fallthru
      _
    // Predicated region
    $region30: #{birnn_forward_pallas.1} parent=1 // pred_check
      _
    $region31: #{birnn_forward_pallas.1} parent=1 // pred_check_branch
      %33 = sbr.rel (0) target = $region33
    $region32: #{birnn_forward_pallas.1} parent=1 // pred_region
      _
    $region33: #{birnn_forward_pallas.1} parent=1 // pred_fallthru
      _
    // Predicated region
    $region34: #{birnn_forward_pallas.1} parent=1 // pred_check
      _
    $region35: #{birnn_forward_pallas.1} parent=1 // pred_check_branch
      %35 = sbr.rel (0) target = $region37
    $region36: #{birnn_forward_pallas.1} parent=1 // pred_region
      _
    $region37: #{birnn_forward_pallas.1} parent=1 // pred_fallthru
      _
    // Predicated region
    $region38: #{birnn_forward_pallas.1} parent=1 // pred_check
      _
    $region39: #{birnn_forward_pallas.1} parent=1 // pred_check_branch
      %37 = sbr.rel (0) target = $region41
    $region40: #{birnn_forward_pallas.1} parent=1 // pred_region
      _
    $region41: #{birnn_forward_pallas.1} parent=1 // pred_fallthru
      _
    // Predicated region
    $region42: #{birnn_forward_pallas.1} parent=1 // pred_check
      _
    $region43: #{birnn_forward_pallas.1} parent=1 // pred_check_branch
      %39 = sbr.rel (0) target = $region45
    $region44: #{birnn_forward_pallas.1} parent=1 // pred_region
      _
    $region45: #{birnn_forward_pallas.1} parent=1 // pred_fallthru
      _
    // Predicated region
    $region46: #{birnn_forward_pallas.1} parent=1 // pred_check
      _
    $region47: #{birnn_forward_pallas.1} parent=1 // pred_check_branch
      %41 = sbr.rel (0) target = $region49
    $region48: #{birnn_forward_pallas.1} parent=1 // pred_region
      _
    $region49: #{birnn_forward_pallas.1} parent=1 // pred_fallthru
      _
    %v42 = vlaneseq
    %v43 = vand.u32 %v42, 127
    %v44 = vld [vmem:[%s0] sm:$0xff]
    %v45 = vld [vmem:[%s0 + $0x8] sm:$0xff]
    %46 = vset.pattern.permute.xlu0 0
    %47 = vperm.xlu0 %46, %v44
    %v48 = vpop.permute.xlu0 %47
    %49 = vset.pattern.permute.xlu0 0
    %50 = vperm.xlu0 %49, %v45
    %v51 = vpop.permute.xlu0 %50
    %vm52 = vcmp.eq.s32.totalorder %v43, %v48
    %vm53 = vcmp.eq.s32.totalorder %v43, %v51
    %v54 = vsel %vm52, 1, 0
    %v55 = vsel %vm53, 1, 0
    %v56 = vcvt.s32.f32 %v54
    %v57 = vcvt.s32.f32 %v55
    %v58 = vld [vmem:[%s1] sm:$0xff]
    %v59 = vld [vmem:[%s1 + $0x8] sm:$0xff]
    %v60 = vld [vmem:[%s1 + $0x10] sm:$0xff]
    %v61 = vld [vmem:[%s1 + $0x18] sm:$0xff]
    %v62 = vld [vmem:[%s1 + $0x20] sm:$0xff]
    %v63 = vld [vmem:[%s1 + $0x28] sm:$0xff]
    %v64 = vld [vmem:[%s1 + $0x30] sm:$0xff]
    %v65 = vld [vmem:[%s1 + $0x38] sm:$0xff]
    %v66 = vld [vmem:[%s1 + $0x40] sm:$0xff]
    %v67 = vld [vmem:[%s1 + $0x48] sm:$0xff]
    %v68 = vld [vmem:[%s1 + $0x50] sm:$0xff]
    %v69 = vld [vmem:[%s1 + $0x58] sm:$0xff]
    %v70 = vld [vmem:[%s1 + $0x60] sm:$0xff]
    %v71 = vld [vmem:[%s1 + $0x68] sm:$0xff]
    %v72 = vld [vmem:[%s1 + $0x70] sm:$0xff]
    %v73 = vld [vmem:[%s1 + $0x78] sm:$0xff]
    %74 = vmatprep.subr.mxu0 0.0
    %75 = vmatpush1.msra.mxu0 %v73
    %76 = vmatprep.subr.mxu0 0.0
    %77 = vmatpush1.msra.mxu0 %v72
    %78 = vmatprep.subr.mxu0 0.0
    %79 = vmatpush1.msra.mxu0 %v71
    %80 = vmatprep.subr.mxu0 0.0
    %81 = vmatpush1.msra.mxu0 %v70
    %82 = vmatprep.subr.mxu0 0.0
    %83 = vmatpush1.msra.mxu0 %v69
    %84 = vmatprep.subr.mxu0 0.0
    %85 = vmatpush1.msra.mxu0 %v68
    %86 = vmatprep.subr.mxu0 0.0
    %87 = vmatpush1.msra.mxu0 %v67
    %88 = vmatprep.subr.mxu0 0.0
    %89 = vmatpush1.msra.mxu0 %v66
    %90 = vmatprep.subr.mxu0 0.0
    %91 = vmatpush1.msra.mxu0 %v65
    %92 = vmatprep.subr.mxu0 0.0
    %93 = vmatpush1.msra.mxu0 %v64
    %94 = vmatprep.subr.mxu0 0.0
    %95 = vmatpush1.msra.mxu0 %v63
    %96 = vmatprep.subr.mxu0 0.0
    %97 = vmatpush1.msra.mxu0 %v62
    %98 = vmatprep.subr.mxu0 0.0
    %99 = vmatpush1.msra.mxu0 %v61
    %100 = vmatprep.subr.mxu0 0.0
    %101 = vmatpush1.msra.mxu0 %v60
    %102 = vmatprep.subr.mxu0 0.0
    %103 = vmatpush1.msra.mxu0 %v59
    %104 = vmatprep.subr.mxu0 0.0
    %105 = vmatpush1.msra.mxu0 %v58
    %106 = vmatprep.subr.mxu0 0.0
    %107 = vmatpush2.msra.mxu0 0.0
    %108 = vmatprep.subr.mxu0 0.0
    %109 = vmatpush2.msra.mxu0 0.0
    %110 = vmatprep.subr.mxu0 0.0
    %111 = vmatpush2.msra.mxu0 0.0
    %112 = vmatprep.subr.mxu0 0.0
    %113 = vmatpush2.msra.mxu0 0.0
    %114 = vmatprep.subr.mxu0 0.0
    %115 = vmatpush2.msra.mxu0 0.0
    %116 = vmatprep.subr.mxu0 0.0
    %117 = vmatpush2.msra.mxu0 0.0
    %118 = vmatprep.subr.mxu0 0.0
    %119 = vmatpush2.msra.mxu0 0.0
    %120 = vmatprep.subr.mxu0 0.0
    %121 = vmatpush2.msra.mxu0 0.0
    %122 = vmatprep.subr.mxu0 0.0
    %123 = vmatpush2.msra.mxu0 0.0
    %124 = vmatprep.subr.mxu0 0.0
    %125 = vmatpush2.msra.mxu0 0.0
    %126 = vmatprep.subr.mxu0 0.0
    %127 = vmatpush2.msra.mxu0 0.0
    %128 = vmatprep.subr.mxu0 0.0
    %129 = vmatpush2.msra.mxu0 0.0
    %130 = vmatprep.subr.mxu0 0.0
    %131 = vmatpush2.msra.mxu0 0.0
    %132 = vmatprep.subr.mxu0 0.0
    %133 = vmatpush2.msra.mxu0 0.0
    %134 = vmatprep.subr.mxu0 0.0
    %135 = vmatpush2.msra.mxu0 0.0
    %136 = vmatprep.subr.mxu0 0.0
    %137 = vmatpush2.msra.mxu0 0.0
    %138 = vmatprep.mubr.f32.mxu0 0.0
    %139 = vmatmul.mubr.f32.gmra.mxu0 %v56
    %v140 = vpop.f32.mrf.mxu0
    %v141 = vadd.f32 0.0, %v140
    %v142 = vpop.f32.mrf.mxu0
    %143 = vmatprep.mubr.f32.mxu0 0.0
    %144 = vmatmul.mubr.f32.gmra.mxu0 %v57
    %v145 = vpop.f32.mrf.mxu0
    %v146 = vadd.f32 0.0, %v145
    %v147 = vpop.f32.mrf.mxu0
    %148 = vdwg.mxu0
    %v149 = vld [vmem:[%s2] sm:$0xff]
    %v150 = vld [vmem:[%s2 + $0x8] sm:$0xff]
    %v151 = vld [vmem:[%s2 + $0x10] sm:$0xff]
    %v152 = vld [vmem:[%s2 + $0x18] sm:$0xff]
    %v153 = vld [vmem:[%s2 + $0x20] sm:$0xff]
    %v154 = vld [vmem:[%s2 + $0x28] sm:$0xff]
    %v155 = vld [vmem:[%s2 + $0x30] sm:$0xff]
    %v156 = vld [vmem:[%s2 + $0x38] sm:$0xff]
    %v157 = vld [vmem:[%s5] sm:$0x3]
    %v159 = vlaneseq
    %v160 = vshrl.u32 %v159, 7
    %v161 = vsub.s32 0, %v160
    %v162 = vrot.slane %v157, %v161
    %v163 = vlaneseq
    %v164 = vshrl.u32 %v163, 7
    %v165 = vsub.s32 1, %v164
    %v166 = vrot.slane %v157, %v165
    %vm169 = vcmask 261120
    %v171 = vsel %vm169, %v141, 0
    %v174 = vsel %vm169, %v146, 0
    %176 = vmatprep.subr.mxu0 0.0
    %177 = vmatpush1.msra.mxu0 0.0
    %178 = vmatprep.subr.mxu0 0.0
    %179 = vmatpush1.msra.mxu0 0.0
    %180 = vmatprep.subr.mxu0 0.0
    %181 = vmatpush1.msra.mxu0 0.0
    %182 = vmatprep.subr.mxu0 0.0
    %183 = vmatpush1.msra.mxu0 0.0
    %184 = vmatprep.subr.mxu0 0.0
    %185 = vmatpush1.msra.mxu0 0.0
    %186 = vmatprep.subr.mxu0 0.0
    %187 = vmatpush1.msra.mxu0 0.0
    %188 = vmatprep.subr.mxu0 0.0
    %189 = vmatpush1.msra.mxu0 0.0
    %190 = vmatprep.subr.mxu0 0.0
    %191 = vmatpush1.msra.mxu0 0.0
    %192 = vmatprep.subr.mxu0 0.0
    %193 = vmatpush1.msra.mxu0 0.0
    %194 = vmatprep.subr.mxu0 0.0
    %195 = vmatpush1.msra.mxu0 0.0
    %196 = vmatprep.subr.mxu0 0.0
    %197 = vmatpush1.msra.mxu0 0.0
    %198 = vmatprep.subr.mxu0 0.0
    %199 = vmatpush1.msra.mxu0 0.0
    %200 = vmatprep.subr.mxu0 %v156
    %201 = vmatpush1.msra.mxu0 %v155
    %202 = vmatprep.subr.mxu0 %v154
    %203 = vmatpush1.msra.mxu0 %v153
    %204 = vmatprep.subr.mxu0 %v152
    %205 = vmatpush1.msra.mxu0 %v151
    %206 = vmatprep.subr.mxu0 %v150
    %207 = vmatpush1.msra.mxu0 %v149
    %208 = vmatprep.subr.mxu0 0.0
    %209 = vmatpush2.msra.mxu0 0.0
    %210 = vmatprep.subr.mxu0 0.0
    %211 = vmatpush2.msra.mxu0 0.0
    %212 = vmatprep.subr.mxu0 0.0
    %213 = vmatpush2.msra.mxu0 0.0
    %214 = vmatprep.subr.mxu0 0.0
    %215 = vmatpush2.msra.mxu0 0.0
    %216 = vmatprep.subr.mxu0 0.0
    %217 = vmatpush2.msra.mxu0 0.0
    %218 = vmatprep.subr.mxu0 0.0
    %219 = vmatpush2.msra.mxu0 0.0
    %220 = vmatprep.subr.mxu0 0.0
    %221 = vmatpush2.msra.mxu0 0.0
    %222 = vmatprep.subr.mxu0 0.0
    %223 = vmatpush2.msra.mxu0 0.0
    %224 = vmatprep.subr.mxu0 0.0
    %225 = vmatpush2.msra.mxu0 0.0
    %226 = vmatprep.subr.mxu0 0.0
    %227 = vmatpush2.msra.mxu0 0.0
    %228 = vmatprep.subr.mxu0 0.0
    %229 = vmatpush2.msra.mxu0 0.0
    %230 = vmatprep.subr.mxu0 0.0
    %231 = vmatpush2.msra.mxu0 0.0
    %232 = vmatprep.subr.mxu0 0.0
    %233 = vmatpush2.msra.mxu0 0.0
    %234 = vmatprep.subr.mxu0 0.0
    %235 = vmatpush2.msra.mxu0 0.0
    %236 = vmatprep.subr.mxu0 0.0
    %237 = vmatpush2.msra.mxu0 0.0
    %238 = vmatprep.subr.mxu0 0.0
    %239 = vmatpush2.msra.mxu0 0.0
    %240 = vmatprep.mubr.f32.mxu0 0.0
    %241 = vmatmul.mubr.f32.gmra.mxu0 %v171
    %v242 = vpop.f32.mrf.mxu0
    %v243 = vadd.f32 %v162, %v242
    %v244 = vpop.f32.mrf.mxu0
    %v245 = vadd.f32 %v166, %v244
    %246 = vmatprep.mubr.f32.mxu0 0.0
    %247 = vmatmul.mubr.f32.gmra.mxu0 %v174
    %v248 = vpop.f32.mrf.mxu0
    %v249 = vadd.f32 %v162, %v248
    %v250 = vpop.f32.mrf.mxu0
    %v251 = vadd.f32 %v166, %v250
    %252 = vdwg.mxu0
    %v253 = vld [vmem:[%s3] sm:$0xff]
    %v254 = vld [vmem:[%s3 + $0x8] sm:$0xff]
    %v255 = vld [vmem:[%s3 + $0x10] sm:$0xff]
    %v256 = vld [vmem:[%s3 + $0x18] sm:$0xff]
    %v257 = vld [vmem:[%s4] sm:$0xff]
    %v258 = vld [vmem:[%s4 + $0x8] sm:$0xff]
    %v259 = vld [vmem:[%s4 + $0x10] sm:$0xff]
    %v260 = vld [vmem:[%s4 + $0x18] sm:$0xff]
    %v262 = vsel %vm169, 0.0, 0
    %264 = vmatprep.subr.mxu0 0.0
    %265 = vmatpush1.msra.mxu0 0.0
    %266 = vmatprep.subr.mxu0 0.0
    %267 = vmatpush1.msra.mxu0 0.0
    %268 = vmatprep.subr.mxu0 0.0
    %269 = vmatpush1.msra.mxu0 0.0
    %270 = vmatprep.subr.mxu0 0.0
    %271 = vmatpush1.msra.mxu0 0.0
    %272 = vmatprep.subr.mxu0 0.0
    %273 = vmatpush1.msra.mxu0 0.0
    %274 = vmatprep.subr.mxu0 0.0
    %275 = vmatpush1.msra.mxu0 0.0
    %276 = vmatprep.subr.mxu0 0.0
    %277 = vmatpush1.msra.mxu0 0.0
    %278 = vmatprep.subr.mxu0 0.0
    %279 = vmatpush1.msra.mxu0 0.0
    %280 = vmatprep.subr.mxu0 0.0
    %281 = vmatpush1.msra.mxu0 0.0
    %282 = vmatprep.subr.mxu0 0.0
    %283 = vmatpush1.msra.mxu0 0.0
    %284 = vmatprep.subr.mxu0 0.0
    %285 = vmatpush1.msra.mxu0 0.0
    %286 = vmatprep.subr.mxu0 0.0
    %287 = vmatpush1.msra.mxu0 0.0
    %288 = vmatprep.subr.mxu0 0.0
    %289 = vmatpush1.msra.mxu0 %v256
    %290 = vmatprep.subr.mxu0 0.0
    %291 = vmatpush1.msra.mxu0 %v255
    %292 = vmatprep.subr.mxu0 0.0
    %293 = vmatpush1.msra.mxu0 %v254
    %294 = vmatprep.subr.mxu0 0.0
    %295 = vmatpush1.msra.mxu0 %v253
    %296 = vmatprep.subr.mxu0 0.0
    %297 = vmatpush2.msra.mxu0 0.0
    %298 = vmatprep.subr.mxu0 0.0
    %299 = vmatpush2.msra.mxu0 0.0
    %300 = vmatprep.subr.mxu0 0.0
    %301 = vmatpush2.msra.mxu0 0.0
    %302 = vmatprep.subr.mxu0 0.0
    %303 = vmatpush2.msra.mxu0 0.0
    %304 = vmatprep.subr.mxu0 0.0
    %305 = vmatpush2.msra.mxu0 0.0
    %306 = vmatprep.subr.mxu0 0.0
    %307 = vmatpush2.msra.mxu0 0.0
    %308 = vmatprep.subr.mxu0 0.0
    %309 = vmatpush2.msra.mxu0 0.0
    %310 = vmatprep.subr.mxu0 0.0
    %311 = vmatpush2.msra.mxu0 0.0
    %312 = vmatprep.subr.mxu0 0.0
    %313 = vmatpush2.msra.mxu0 0.0
    %314 = vmatprep.subr.mxu0 0.0
    %315 = vmatpush2.msra.mxu0 0.0
    %316 = vmatprep.subr.mxu0 0.0
    %317 = vmatpush2.msra.mxu0 0.0
    %318 = vmatprep.subr.mxu0 0.0
    %319 = vmatpush2.msra.mxu0 0.0
    %320 = vmatprep.subr.mxu0 0.0
    %321 = vmatpush2.msra.mxu0 0.0
    %322 = vmatprep.subr.mxu0 0.0
    %323 = vmatpush2.msra.mxu0 0.0
    %324 = vmatprep.subr.mxu0 0.0
    %325 = vmatpush2.msra.mxu0 0.0
    %326 = vmatprep.subr.mxu0 0.0
    %327 = vmatpush2.msra.mxu0 0.0
    %328 = vmatprep.mubr.f32.mxu0 0.0
    %329 = vmatmul.mubr.f32.gmra.mxu0 %v262
    %v330 = vpop.f32.mrf.mxu0
    %v331 = vadd.f32 0.0, %v330
    %v332 = vpop.f32.mrf.mxu0
    %333 = vdwg.mxu0
    %v334 = vadd.f32 %v243, %v331
    %v335 = vxor.u32 %v334, 2147483648
    %v336 = vmul.f32 %v335, 1.442695
    %v337 = vpow.pop %v336
    %v338 = vadd.f32 %v337, 1.0
    %v339 = vrcp.pop %v338
    %v340 = vmul.f32 1.0, %v339
    %v341 = vtanh.pop %v334
    %v342 = vmul.f32 %v340, 0.0
    %344 = vrot.lane.b32.xlu0 %v341, 64
    %v345 = vpop.permute.xlu0 %344
    %v347 = vmul.f32 %v340, %v345
    %349 = vrot.lane.b32.xlu0 %v347, 32
    %v350 = vpop.permute.xlu0 %349
    %v352 = vadd.f32 %v342, %v350
    %v353 = vtanh.pop %v352
    %355 = vrot.lane.b32.xlu0 %v353, 64
    %v356 = vpop.permute.xlu0 %355
    %v358 = vmul.f32 %v340, %v356
    %360 = vrot.lane.b32.xlu0 %v358, 32
    %v361 = vpop.permute.xlu0 %360
    %vm363 = vcmask 254976
    %364 = vst.msk [vmem:[#allocation2] sm:$0x3] %vm363, %v361
    %365 = vmatprep.subr.mxu0 0.0
    %366 = vmatpush1.msra.mxu0 0.0
    %367 = vmatprep.subr.mxu0 0.0
    %368 = vmatpush1.msra.mxu0 0.0
    %369 = vmatprep.subr.mxu0 0.0
    %370 = vmatpush1.msra.mxu0 0.0
    %371 = vmatprep.subr.mxu0 0.0
    %372 = vmatpush1.msra.mxu0 0.0
    %373 = vmatprep.subr.mxu0 0.0
    %374 = vmatpush1.msra.mxu0 0.0
    %375 = vmatprep.subr.mxu0 0.0
    %376 = vmatpush1.msra.mxu0 0.0
    %377 = vmatprep.subr.mxu0 0.0
    %378 = vmatpush1.msra.mxu0 0.0
    %379 = vmatprep.subr.mxu0 0.0
    %380 = vmatpush1.msra.mxu0 0.0
    %381 = vmatprep.subr.mxu0 0.0
    %382 = vmatpush1.msra.mxu0 0.0
    %383 = vmatprep.subr.mxu0 0.0
    %384 = vmatpush1.msra.mxu0 0.0
    %385 = vmatprep.subr.mxu0 0.0
    %386 = vmatpush1.msra.mxu0 0.0
    %387 = vmatprep.subr.mxu0 0.0
    %388 = vmatpush1.msra.mxu0 0.0
    %389 = vmatprep.subr.mxu0 0.0
    %390 = vmatpush1.msra.mxu0 %v260
    %391 = vmatprep.subr.mxu0 0.0
    %392 = vmatpush1.msra.mxu0 %v259
    %393 = vmatprep.subr.mxu0 0.0
    %394 = vmatpush1.msra.mxu0 %v258
    %395 = vmatprep.subr.mxu0 0.0
    %396 = vmatpush1.msra.mxu0 %v257
    %397 = vmatprep.subr.mxu0 0.0
    %398 = vmatpush2.msra.mxu0 0.0
    %399 = vmatprep.subr.mxu0 0.0
    %400 = vmatpush2.msra.mxu0 0.0
    %401 = vmatprep.subr.mxu0 0.0
    %402 = vmatpush2.msra.mxu0 0.0
    %403 = vmatprep.subr.mxu0 0.0
    %404 = vmatpush2.msra.mxu0 0.0
    %405 = vmatprep.subr.mxu0 0.0
    %406 = vmatpush2.msra.mxu0 0.0
    %407 = vmatprep.subr.mxu0 0.0
    %408 = vmatpush2.msra.mxu0 0.0
    %409 = vmatprep.subr.mxu0 0.0
    %410 = vmatpush2.msra.mxu0 0.0
    %411 = vmatprep.subr.mxu0 0.0
    %412 = vmatpush2.msra.mxu0 0.0
    %413 = vmatprep.subr.mxu0 0.0
    %414 = vmatpush2.msra.mxu0 0.0
    %415 = vmatprep.subr.mxu0 0.0
    %416 = vmatpush2.msra.mxu0 0.0
    %417 = vmatprep.subr.mxu0 0.0
    %418 = vmatpush2.msra.mxu0 0.0
    %419 = vmatprep.subr.mxu0 0.0
    %420 = vmatpush2.msra.mxu0 0.0
    %421 = vmatprep.subr.mxu0 0.0
    %422 = vmatpush2.msra.mxu0 0.0
    %423 = vmatprep.subr.mxu0 0.0
    %424 = vmatpush2.msra.mxu0 0.0
    %425 = vmatprep.subr.mxu0 0.0
    %426 = vmatpush2.msra.mxu0 0.0
    %427 = vmatprep.subr.mxu0 0.0
    %428 = vmatpush2.msra.mxu0 0.0
    %429 = vmatprep.mubr.f32.mxu0 0.0
    %430 = vmatmul.mubr.f32.gmra.mxu0 %v262
    %v431 = vpop.f32.mrf.mxu0
    %v432 = vadd.f32 0.0, %v431
    %v433 = vpop.f32.mrf.mxu0
    %434 = vdwg.mxu0
    %v436 = vrot.slane %v432, 2
    %v438 = vadd.f32 %v251, %v436
    %v439 = vxor.u32 %v438, 2147483648
    %v440 = vmul.f32 %v439, 1.442695
    %v441 = vpow.pop %v440
    %v442 = vadd.f32 %v441, 1.0
    %v443 = vrcp.pop %v442
    %v444 = vmul.f32 1.0, %v443
    %v445 = vtanh.pop %v438
    %v446 = vmul.f32 %v444, 0.0
    %448 = vrot.lane.b32.xlu0 %v445, 64
    %v449 = vpop.permute.xlu0 %448
    %v451 = vmul.f32 %v444, %v449
    %453 = vrot.lane.b32.xlu0 %v451, 32
    %v454 = vpop.permute.xlu0 %453
    %v456 = vadd.f32 %v446, %v454
    %v457 = vtanh.pop %v456
    %459 = vrot.lane.b32.xlu0 %v457, 64
    %v460 = vpop.permute.xlu0 %459
    %v462 = vmul.f32 %v444, %v460
    %464 = vrot.lane.b32.xlu0 %v462, 64
    %v465 = vpop.permute.xlu0 %464
    %vm467 = vcmask 523526
    %468 = vst.msk [vmem:[#allocation2 + $0x8] sm:$0xc0] %vm467, %v465
    %v469 = vsel %vm169, %v361, 0
    %471 = vmatprep.subr.mxu0 0.0
    %472 = vmatpush1.msra.mxu0 0.0
    %473 = vmatprep.subr.mxu0 0.0
    %474 = vmatpush1.msra.mxu0 0.0
    %475 = vmatprep.subr.mxu0 0.0
    %476 = vmatpush1.msra.mxu0 0.0
    %477 = vmatprep.subr.mxu0 0.0
    %478 = vmatpush1.msra.mxu0 0.0
    %479 = vmatprep.subr.mxu0 0.0
    %480 = vmatpush1.msra.mxu0 0.0
    %481 = vmatprep.subr.mxu0 0.0
    %482 = vmatpush1.msra.mxu0 0.0
    %483 = vmatprep.subr.mxu0 0.0
    %484 = vmatpush1.msra.mxu0 0.0
    %485 = vmatprep.subr.mxu0 0.0
    %486 = vmatpush1.msra.mxu0 0.0
    %487 = vmatprep.subr.mxu0 0.0
    %488 = vmatpush1.msra.mxu0 0.0
    %489 = vmatprep.subr.mxu0 0.0
    %490 = vmatpush1.msra.mxu0 0.0
    %491 = vmatprep.subr.mxu0 0.0
    %492 = vmatpush1.msra.mxu0 0.0
    %493 = vmatprep.subr.mxu0 0.0
    %494 = vmatpush1.msra.mxu0 0.0
    %495 = vmatprep.subr.mxu0 0.0
    %496 = vmatpush1.msra.mxu0 %v256
    %497 = vmatprep.subr.mxu0 0.0
    %498 = vmatpush1.msra.mxu0 %v255
    %499 = vmatprep.subr.mxu0 0.0
    %500 = vmatpush1.msra.mxu0 %v254
    %501 = vmatprep.subr.mxu0 0.0
    %502 = vmatpush1.msra.mxu0 %v253
    %503 = vmatprep.subr.mxu0 0.0
    %504 = vmatpush2.msra.mxu0 0.0
    %505 = vmatprep.subr.mxu0 0.0
    %506 = vmatpush2.msra.mxu0 0.0
    %507 = vmatprep.subr.mxu0 0.0
    %508 = vmatpush2.msra.mxu0 0.0
    %509 = vmatprep.subr.mxu0 0.0
    %510 = vmatpush2.msra.mxu0 0.0
    %511 = vmatprep.subr.mxu0 0.0
    %512 = vmatpush2.msra.mxu0 0.0
    %513 = vmatprep.subr.mxu0 0.0
    %514 = vmatpush2.msra.mxu0 0.0
    %515 = vmatprep.subr.mxu0 0.0
    %516 = vmatpush2.msra.mxu0 0.0
    %517 = vmatprep.subr.mxu0 0.0
    %518 = vmatpush2.msra.mxu0 0.0
    %519 = vmatprep.subr.mxu0 0.0
    %520 = vmatpush2.msra.mxu0 0.0
    %521 = vmatprep.subr.mxu0 0.0
    %522 = vmatpush2.msra.mxu0 0.0
    %523 = vmatprep.subr.mxu0 0.0
    %524 = vmatpush2.msra.mxu0 0.0
    %525 = vmatprep.subr.mxu0 0.0
    %526 = vmatpush2.msra.mxu0 0.0
    %527 = vmatprep.subr.mxu0 0.0
    %528 = vmatpush2.msra.mxu0 0.0
    %529 = vmatprep.subr.mxu0 0.0
    %530 = vmatpush2.msra.mxu0 0.0
    %531 = vmatprep.subr.mxu0 0.0
    %532 = vmatpush2.msra.mxu0 0.0
    %533 = vmatprep.subr.mxu0 0.0
    %534 = vmatpush2.msra.mxu0 0.0
    %535 = vmatprep.mubr.f32.mxu0 0.0
    %536 = vmatmul.mubr.f32.gmra.mxu0 %v469
    %v537 = vpop.f32.mrf.mxu0
    %v538 = vadd.f32 0.0, %v537
    %v539 = vpop.f32.mrf.mxu0
    %540 = vdwg.mxu0
    %v542 = vrot.slane %v538, 6
    %v544 = vadd.f32 %v243, %v542
    %v545 = vxor.u32 %v544, 2147483648
    %v546 = vmul.f32 %v545, 1.442695
    %v547 = vpow.pop %v546
    %v548 = vadd.f32 %v547, 1.0
    %v549 = vrcp.pop %v548
    %v550 = vmul.f32 1.0, %v549
    %v551 = vtanh.pop %v544
    %v553 = vrot.slane %v352, 6
    %v555 = vmul.f32 %v550, %v553
    %557 = vrot.lane.b32.xlu0 %v551, 64
    %v558 = vpop.permute.xlu0 %557
    %v560 = vmul.f32 %v550, %v558
    %562 = vrot.lane.b32.xlu0 %v560, 32
    %v563 = vpop.permute.xlu0 %562
    %v565 = vadd.f32 %v555, %v563
    %v566 = vtanh.pop %v565
    %568 = vrot.lane.b32.xlu0 %v566, 64
    %v569 = vpop.permute.xlu0 %568
    %v571 = vmul.f32 %v550, %v569
    %573 = vrot.lane.b32.xlu0 %v571, 32
    %v574 = vpop.permute.xlu0 %573
    %vm576 = vcmask 257026
    %577 = vst.msk [vmem:[#allocation2] sm:$0xc] %vm576, %v574
    %v578 = vrot.slane %v462, 6
    %579 = vrot.lane.b32.xlu0 %v578, 32
    %v580 = vpop.permute.xlu0 %579
    %v581 = vsel %vm169, %v580, 0
    %583 = vmatprep.subr.mxu0 0.0
    %584 = vmatpush1.msra.mxu0 0.0
    %585 = vmatprep.subr.mxu0 0.0
    %586 = vmatpush1.msra.mxu0 0.0
    %587 = vmatprep.subr.mxu0 0.0
    %588 = vmatpush1.msra.mxu0 0.0
    %589 = vmatprep.subr.mxu0 0.0
    %590 = vmatpush1.msra.mxu0 0.0
    %591 = vmatprep.subr.mxu0 0.0
    %592 = vmatpush1.msra.mxu0 0.0
    %593 = vmatprep.subr.mxu0 0.0
    %594 = vmatpush1.msra.mxu0 0.0
    %595 = vmatprep.subr.mxu0 0.0
    %596 = vmatpush1.msra.mxu0 0.0
    %597 = vmatprep.subr.mxu0 0.0
    %598 = vmatpush1.msra.mxu0 0.0
    %599 = vmatprep.subr.mxu0 0.0
    %600 = vmatpush1.msra.mxu0 0.0
    %601 = vmatprep.subr.mxu0 0.0
    %602 = vmatpush1.msra.mxu0 0.0
    %603 = vmatprep.subr.mxu0 0.0
    %604 = vmatpush1.msra.mxu0 0.0
    %605 = vmatprep.subr.mxu0 0.0
    %606 = vmatpush1.msra.mxu0 0.0
    %607 = vmatprep.subr.mxu0 0.0
    %608 = vmatpush1.msra.mxu0 %v260
    %609 = vmatprep.subr.mxu0 0.0
    %610 = vmatpush1.msra.mxu0 %v259
    %611 = vmatprep.subr.mxu0 0.0
    %612 = vmatpush1.msra.mxu0 %v258
    %613 = vmatprep.subr.mxu0 0.0
    %614 = vmatpush1.msra.mxu0 %v257
    %615 = vmatprep.subr.mxu0 0.0
    %616 = vmatpush2.msra.mxu0 0.0
    %617 = vmatprep.subr.mxu0 0.0
    %618 = vmatpush2.msra.mxu0 0.0
    %619 = vmatprep.subr.mxu0 0.0
    %620 = vmatpush2.msra.mxu0 0.0
    %621 = vmatprep.subr.mxu0 0.0
    %622 = vmatpush2.msra.mxu0 0.0
    %623 = vmatprep.subr.mxu0 0.0
    %624 = vmatpush2.msra.mxu0 0.0
    %625 = vmatprep.subr.mxu0 0.0
    %626 = vmatpush2.msra.mxu0 0.0
    %627 = vmatprep.subr.mxu0 0.0
    %628 = vmatpush2.msra.mxu0 0.0
    %629 = vmatprep.subr.mxu0 0.0
    %630 = vmatpush2.msra.mxu0 0.0
    %631 = vmatprep.subr.mxu0 0.0
    %632 = vmatpush2.msra.mxu0 0.0
    %633 = vmatprep.subr.mxu0 0.0
    %634 = vmatpush2.msra.mxu0 0.0
    %635 = vmatprep.subr.mxu0 0.0
    %636 = vmatpush2.msra.mxu0 0.0
    %637 = vmatprep.subr.mxu0 0.0
    %638 = vmatpush2.msra.mxu0 0.0
    %639 = vmatprep.subr.mxu0 0.0
    %640 = vmatpush2.msra.mxu0 0.0
    %641 = vmatprep.subr.mxu0 0.0
    %642 = vmatpush2.msra.mxu0 0.0
    %643 = vmatprep.subr.mxu0 0.0
    %644 = vmatpush2.msra.mxu0 0.0
    %645 = vmatprep.subr.mxu0 0.0
    %646 = vmatpush2.msra.mxu0 0.0
    %647 = vmatprep.mubr.f32.mxu0 0.0
    %648 = vmatmul.mubr.f32.gmra.mxu0 %v581
    %v649 = vpop.f32.mrf.mxu0
    %v650 = vadd.f32 0.0, %v649
    %v651 = vpop.f32.mrf.mxu0
    %652 = vdwg.mxu0
    %v654 = vrot.slane %v650, 4
    %v656 = vadd.f32 %v251, %v654
    %v657 = vxor.u32 %v656, 2147483648
    %v658 = vmul.f32 %v657, 1.442695
    %v659 = vpow.pop %v658
    %v660 = vadd.f32 %v659, 1.0
    %v661 = vrcp.pop %v660
    %v662 = vmul.f32 1.0, %v661
    %v663 = vtanh.pop %v656
    %v665 = vrot.slane %v456, 2
    %v667 = vmul.f32 %v662, %v665
    %669 = vrot.lane.b32.xlu0 %v663, 64
    %v670 = vpop.permute.xlu0 %669
    %v672 = vmul.f32 %v662, %v670
    %674 = vrot.lane.b32.xlu0 %v672, 32
    %v675 = vpop.permute.xlu0 %674
    %v677 = vadd.f32 %v667, %v675
    %v678 = vtanh.pop %v677
    %680 = vrot.lane.b32.xlu0 %v678, 64
    %v681 = vpop.permute.xlu0 %680
    %v683 = vmul.f32 %v662, %v681
    %685 = vrot.lane.b32.xlu0 %v683, 64
    %v686 = vpop.permute.xlu0 %685
    %vm688 = vcmask 521476
    %689 = vst.msk [vmem:[#allocation2 + $0x8] sm:$0x30] %vm688, %v686
    %v690 = vrot.slane %v571, 2
    %691 = vrot.lane.b32.xlu0 %v690, 32
    %v692 = vpop.permute.xlu0 %691
    %v693 = vsel %vm169, %v692, 0
    %695 = vmatprep.subr.mxu0 0.0
    %696 = vmatpush1.msra.mxu0 0.0
    %697 = vmatprep.subr.mxu0 0.0
    %698 = vmatpush1.msra.mxu0 0.0
    %699 = vmatprep.subr.mxu0 0.0
    %700 = vmatpush1.msra.mxu0 0.0
    %701 = vmatprep.subr.mxu0 0.0
    %702 = vmatpush1.msra.mxu0 0.0
    %703 = vmatprep.subr.mxu0 0.0
    %704 = vmatpush1.msra.mxu0 0.0
    %705 = vmatprep.subr.mxu0 0.0
    %706 = vmatpush1.msra.mxu0 0.0
    %707 = vmatprep.subr.mxu0 0.0
    %708 = vmatpush1.msra.mxu0 0.0
    %709 = vmatprep.subr.mxu0 0.0
    %710 = vmatpush1.msra.mxu0 0.0
    %711 = vmatprep.subr.mxu0 0.0
    %712 = vmatpush1.msra.mxu0 0.0
    %713 = vmatprep.subr.mxu0 0.0
    %714 = vmatpush1.msra.mxu0 0.0
    %715 = vmatprep.subr.mxu0 0.0
    %716 = vmatpush1.msra.mxu0 0.0
    %717 = vmatprep.subr.mxu0 0.0
    %718 = vmatpush1.msra.mxu0 0.0
    %719 = vmatprep.subr.mxu0 0.0
    %720 = vmatpush1.msra.mxu0 %v256
    %721 = vmatprep.subr.mxu0 0.0
    %722 = vmatpush1.msra.mxu0 %v255
    %723 = vmatprep.subr.mxu0 0.0
    %724 = vmatpush1.msra.mxu0 %v254
    %725 = vmatprep.subr.mxu0 0.0
    %726 = vmatpush1.msra.mxu0 %v253
    %727 = vmatprep.subr.mxu0 0.0
    %728 = vmatpush2.msra.mxu0 0.0
    %729 = vmatprep.subr.mxu0 0.0
    %730 = vmatpush2.msra.mxu0 0.0
    %731 = vmatprep.subr.mxu0 0.0
    %732 = vmatpush2.msra.mxu0 0.0
    %733 = vmatprep.subr.mxu0 0.0
    %734 = vmatpush2.msra.mxu0 0.0
    %735 = vmatprep.subr.mxu0 0.0
    %736 = vmatpush2.msra.mxu0 0.0
    %737 = vmatprep.subr.mxu0 0.0
    %738 = vmatpush2.msra.mxu0 0.0
    %739 = vmatprep.subr.mxu0 0.0
    %740 = vmatpush2.msra.mxu0 0.0
    %741 = vmatprep.subr.mxu0 0.0
    %742 = vmatpush2.msra.mxu0 0.0
    %743 = vmatprep.subr.mxu0 0.0
    %744 = vmatpush2.msra.mxu0 0.0
    %745 = vmatprep.subr.mxu0 0.0
    %746 = vmatpush2.msra.mxu0 0.0
    %747 = vmatprep.subr.mxu0 0.0
    %748 = vmatpush2.msra.mxu0 0.0
    %749 = vmatprep.subr.mxu0 0.0
    %750 = vmatpush2.msra.mxu0 0.0
    %751 = vmatprep.subr.mxu0 0.0
    %752 = vmatpush2.msra.mxu0 0.0
    %753 = vmatprep.subr.mxu0 0.0
    %754 = vmatpush2.msra.mxu0 0.0
    %755 = vmatprep.subr.mxu0 0.0
    %756 = vmatpush2.msra.mxu0 0.0
    %757 = vmatprep.subr.mxu0 0.0
    %758 = vmatpush2.msra.mxu0 0.0
    %759 = vmatprep.mubr.f32.mxu0 0.0
    %760 = vmatmul.mubr.f32.gmra.mxu0 %v693
    %v761 = vpop.f32.mrf.mxu0
    %v762 = vadd.f32 0.0, %v761
    %v763 = vpop.f32.mrf.mxu0
    %764 = vdwg.mxu0
    %v766 = vrot.slane %v762, 4
    %v768 = vadd.f32 %v243, %v766
    %v769 = vxor.u32 %v768, 2147483648
    %v770 = vmul.f32 %v769, 1.442695
    %v771 = vpow.pop %v770
    %v772 = vadd.f32 %v771, 1.0
    %v773 = vrcp.pop %v772
    %v774 = vmul.f32 1.0, %v773
    %v775 = vtanh.pop %v768
    %v777 = vrot.slane %v565, 6
    %v779 = vmul.f32 %v774, %v777
    %781 = vrot.lane.b32.xlu0 %v775, 64
    %v782 = vpop.permute.xlu0 %781
    %v784 = vmul.f32 %v774, %v782
    %786 = vrot.lane.b32.xlu0 %v784, 32
    %v787 = vpop.permute.xlu0 %786
    %v789 = vadd.f32 %v779, %v787
    %v790 = vtanh.pop %v789
    %792 = vrot.lane.b32.xlu0 %v790, 64
    %v793 = vpop.permute.xlu0 %792
    %v795 = vmul.f32 %v774, %v793
    %797 = vrot.lane.b32.xlu0 %v795, 32
    %v798 = vpop.permute.xlu0 %797
    %vm800 = vcmask 259076
    %801 = vst.msk [vmem:[#allocation2] sm:$0x30] %vm800, %v798
    %v802 = vrot.slane %v683, 4
    %803 = vrot.lane.b32.xlu0 %v802, 32
    %v804 = vpop.permute.xlu0 %803
    %v805 = vsel %vm169, %v804, 0
    %807 = vmatprep.subr.mxu0 0.0
    %808 = vmatpush1.msra.mxu0 0.0
    %809 = vmatprep.subr.mxu0 0.0
    %810 = vmatpush1.msra.mxu0 0.0
    %811 = vmatprep.subr.mxu0 0.0
    %812 = vmatpush1.msra.mxu0 0.0
    %813 = vmatprep.subr.mxu0 0.0
    %814 = vmatpush1.msra.mxu0 0.0
    %815 = vmatprep.subr.mxu0 0.0
    %816 = vmatpush1.msra.mxu0 0.0
    %817 = vmatprep.subr.mxu0 0.0
    %818 = vmatpush1.msra.mxu0 0.0
    %819 = vmatprep.subr.mxu0 0.0
    %820 = vmatpush1.msra.mxu0 0.0
    %821 = vmatprep.subr.mxu0 0.0
    %822 = vmatpush1.msra.mxu0 0.0
    %823 = vmatprep.subr.mxu0 0.0
    %824 = vmatpush1.msra.mxu0 0.0
    %825 = vmatprep.subr.mxu0 0.0
    %826 = vmatpush1.msra.mxu0 0.0
    %827 = vmatprep.subr.mxu0 0.0
    %828 = vmatpush1.msra.mxu0 0.0
    %829 = vmatprep.subr.mxu0 0.0
    %830 = vmatpush1.msra.mxu0 0.0
    %831 = vmatprep.subr.mxu0 0.0
    %832 = vmatpush1.msra.mxu0 %v260
    %833 = vmatprep.subr.mxu0 0.0
    %834 = vmatpush1.msra.mxu0 %v259
    %835 = vmatprep.subr.mxu0 0.0
    %836 = vmatpush1.msra.mxu0 %v258
    %837 = vmatprep.subr.mxu0 0.0
    %838 = vmatpush1.msra.mxu0 %v257
    %839 = vmatprep.subr.mxu0 0.0
    %840 = vmatpush2.msra.mxu0 0.0
    %841 = vmatprep.subr.mxu0 0.0
    %842 = vmatpush2.msra.mxu0 0.0
    %843 = vmatprep.subr.mxu0 0.0
    %844 = vmatpush2.msra.mxu0 0.0
    %845 = vmatprep.subr.mxu0 0.0
    %846 = vmatpush2.msra.mxu0 0.0
    %847 = vmatprep.subr.mxu0 0.0
    %848 = vmatpush2.msra.mxu0 0.0
    %849 = vmatprep.subr.mxu0 0.0
    %850 = vmatpush2.msra.mxu0 0.0
    %851 = vmatprep.subr.mxu0 0.0
    %852 = vmatpush2.msra.mxu0 0.0
    %853 = vmatprep.subr.mxu0 0.0
    %854 = vmatpush2.msra.mxu0 0.0
    %855 = vmatprep.subr.mxu0 0.0
    %856 = vmatpush2.msra.mxu0 0.0
    %857 = vmatprep.subr.mxu0 0.0
    %858 = vmatpush2.msra.mxu0 0.0
    %859 = vmatprep.subr.mxu0 0.0
    %860 = vmatpush2.msra.mxu0 0.0
    %861 = vmatprep.subr.mxu0 0.0
    %862 = vmatpush2.msra.mxu0 0.0
    %863 = vmatprep.subr.mxu0 0.0
    %864 = vmatpush2.msra.mxu0 0.0
    %865 = vmatprep.subr.mxu0 0.0
    %866 = vmatpush2.msra.mxu0 0.0
    %867 = vmatprep.subr.mxu0 0.0
    %868 = vmatpush2.msra.mxu0 0.0
    %869 = vmatprep.subr.mxu0 0.0
    %870 = vmatpush2.msra.mxu0 0.0
    %871 = vmatprep.mubr.f32.mxu0 0.0
    %872 = vmatmul.mubr.f32.gmra.mxu0 %v805
    %v873 = vpop.f32.mrf.mxu0
    %v874 = vadd.f32 0.0, %v873
    %v875 = vpop.f32.mrf.mxu0
    %876 = vdwg.mxu0
    %v878 = vrot.slane %v874, 6
    %v880 = vadd.f32 %v251, %v878
    %v881 = vxor.u32 %v880, 2147483648
    %v882 = vmul.f32 %v881, 1.442695
    %v883 = vpow.pop %v882
    %v884 = vadd.f32 %v883, 1.0
    %v885 = vrcp.pop %v884
    %v886 = vmul.f32 1.0, %v885
    %v887 = vtanh.pop %v880
    %v889 = vrot.slane %v677, 2
    %v891 = vmul.f32 %v886, %v889
    %893 = vrot.lane.b32.xlu0 %v887, 64
    %v894 = vpop.permute.xlu0 %893
    %v896 = vmul.f32 %v886, %v894
    %898 = vrot.lane.b32.xlu0 %v896, 32
    %v899 = vpop.permute.xlu0 %898
    %v901 = vadd.f32 %v891, %v899
    %v902 = vtanh.pop %v901
    %904 = vrot.lane.b32.xlu0 %v902, 64
    %v905 = vpop.permute.xlu0 %904
    %v907 = vmul.f32 %v886, %v905
    %909 = vrot.lane.b32.xlu0 %v907, 64
    %v910 = vpop.permute.xlu0 %909
    %vm912 = vcmask 519426
    %913 = vst.msk [vmem:[#allocation2 + $0x8] sm:$0xc] %vm912, %v910
    %v914 = vrot.slane %v795, 4
    %915 = vrot.lane.b32.xlu0 %v914, 32
    %v916 = vpop.permute.xlu0 %915
    %v917 = vsel %vm169, %v916, 0
    %919 = vmatprep.subr.mxu0 0.0
    %920 = vmatpush1.msra.mxu0 0.0
    %921 = vmatprep.subr.mxu0 0.0
    %922 = vmatpush1.msra.mxu0 0.0
    %923 = vmatprep.subr.mxu0 0.0
    %924 = vmatpush1.msra.mxu0 0.0
    %925 = vmatprep.subr.mxu0 0.0
    %926 = vmatpush1.msra.mxu0 0.0
    %927 = vmatprep.subr.mxu0 0.0
    %928 = vmatpush1.msra.mxu0 0.0
    %929 = vmatprep.subr.mxu0 0.0
    %930 = vmatpush1.msra.mxu0 0.0
    %931 = vmatprep.subr.mxu0 0.0
    %932 = vmatpush1.msra.mxu0 0.0
    %933 = vmatprep.subr.mxu0 0.0
    %934 = vmatpush1.msra.mxu0 0.0
    %935 = vmatprep.subr.mxu0 0.0
    %936 = vmatpush1.msra.mxu0 0.0
    %937 = vmatprep.subr.mxu0 0.0
    %938 = vmatpush1.msra.mxu0 0.0
    %939 = vmatprep.subr.mxu0 0.0
    %940 = vmatpush1.msra.mxu0 0.0
    %941 = vmatprep.subr.mxu0 0.0
    %942 = vmatpush1.msra.mxu0 0.0
    %943 = vmatprep.subr.mxu0 0.0
    %944 = vmatpush1.msra.mxu0 %v256
    %945 = vmatprep.subr.mxu0 0.0
    %946 = vmatpush1.msra.mxu0 %v255
    %947 = vmatprep.subr.mxu0 0.0
    %948 = vmatpush1.msra.mxu0 %v254
    %949 = vmatprep.subr.mxu0 0.0
    %950 = vmatpush1.msra.mxu0 %v253
    %951 = vmatprep.subr.mxu0 0.0
    %952 = vmatpush2.msra.mxu0 0.0
    %953 = vmatprep.subr.mxu0 0.0
    %954 = vmatpush2.msra.mxu0 0.0
    %955 = vmatprep.subr.mxu0 0.0
    %956 = vmatpush2.msra.mxu0 0.0
    %957 = vmatprep.subr.mxu0 0.0
    %958 = vmatpush2.msra.mxu0 0.0
    %959 = vmatprep.subr.mxu0 0.0
    %960 = vmatpush2.msra.mxu0 0.0
    %961 = vmatprep.subr.mxu0 0.0
    %962 = vmatpush2.msra.mxu0 0.0
    %963 = vmatprep.subr.mxu0 0.0
    %964 = vmatpush2.msra.mxu0 0.0
    %965 = vmatprep.subr.mxu0 0.0
    %966 = vmatpush2.msra.mxu0 0.0
    %967 = vmatprep.subr.mxu0 0.0
    %968 = vmatpush2.msra.mxu0 0.0
    %969 = vmatprep.subr.mxu0 0.0
    %970 = vmatpush2.msra.mxu0 0.0
    %971 = vmatprep.subr.mxu0 0.0
    %972 = vmatpush2.msra.mxu0 0.0
    %973 = vmatprep.subr.mxu0 0.0
    %974 = vmatpush2.msra.mxu0 0.0
    %975 = vmatprep.subr.mxu0 0.0
    %976 = vmatpush2.msra.mxu0 0.0
    %977 = vmatprep.subr.mxu0 0.0
    %978 = vmatpush2.msra.mxu0 0.0
    %979 = vmatprep.subr.mxu0 0.0
    %980 = vmatpush2.msra.mxu0 0.0
    %981 = vmatprep.subr.mxu0 0.0
    %982 = vmatpush2.msra.mxu0 0.0
    %983 = vmatprep.mubr.f32.mxu0 0.0
    %984 = vmatmul.mubr.f32.gmra.mxu0 %v917
    %v985 = vpop.f32.mrf.mxu0
    %v986 = vadd.f32 0.0, %v985
    %v987 = vpop.f32.mrf.mxu0
    %988 = vdwg.mxu0
    %v990 = vrot.slane %v986, 2
    %v992 = vadd.f32 %v243, %v990
    %v993 = vxor.u32 %v992, 2147483648
    %v994 = vmul.f32 %v993, 1.442695
    %v995 = vpow.pop %v994
    %v996 = vadd.f32 %v995, 1.0
    %v997 = vrcp.pop %v996
    %v998 = vmul.f32 1.0, %v997
    %v999 = vtanh.pop %v992
    %v1001 = vrot.slane %v789, 6
    %v1003 = vmul.f32 %v998, %v1001
    %1005 = vrot.lane.b32.xlu0 %v999, 64
    %v1006 = vpop.permute.xlu0 %1005
    %v1008 = vmul.f32 %v998, %v1006
    %1010 = vrot.lane.b32.xlu0 %v1008, 32
    %v1011 = vpop.permute.xlu0 %1010
    %v1013 = vadd.f32 %v1003, %v1011
    %v1014 = vtanh.pop %v1013
    %1016 = vrot.lane.b32.xlu0 %v1014, 64
    %v1017 = vpop.permute.xlu0 %1016
    %v1019 = vmul.f32 %v998, %v1017
    %1021 = vrot.lane.b32.xlu0 %v1019, 32
    %v1022 = vpop.permute.xlu0 %1021
    %vm1024 = vcmask 261126
    %1025 = vst.msk [vmem:[#allocation2] sm:$0xc0] %vm1024, %v1022
    %v1026 = vrot.slane %v907, 2
    %1027 = vrot.lane.b32.xlu0 %v1026, 32
    %v1028 = vpop.permute.xlu0 %1027
    %v1029 = vsel %vm169, %v1028, 0
    %1031 = vmatprep.subr.mxu0 0.0
    %1032 = vmatpush1.msra.mxu0 0.0
    %1033 = vmatprep.subr.mxu0 0.0
    %1034 = vmatpush1.msra.mxu0 0.0
    %1035 = vmatprep.subr.mxu0 0.0
    %1036 = vmatpush1.msra.mxu0 0.0
    %1037 = vmatprep.subr.mxu0 0.0
    %1038 = vmatpush1.msra.mxu0 0.0
    %1039 = vmatprep.subr.mxu0 0.0
    %1040 = vmatpush1.msra.mxu0 0.0
    %1041 = vmatprep.subr.mxu0 0.0
    %1042 = vmatpush1.msra.mxu0 0.0
    %1043 = vmatprep.subr.mxu0 0.0
    %1044 = vmatpush1.msra.mxu0 0.0
    %1045 = vmatprep.subr.mxu0 0.0
    %1046 = vmatpush1.msra.mxu0 0.0
    %1047 = vmatprep.subr.mxu0 0.0
    %1048 = vmatpush1.msra.mxu0 0.0
    %1049 = vmatprep.subr.mxu0 0.0
    %1050 = vmatpush1.msra.mxu0 0.0
    %1051 = vmatprep.subr.mxu0 0.0
    %1052 = vmatpush1.msra.mxu0 0.0
    %1053 = vmatprep.subr.mxu0 0.0
    %1054 = vmatpush1.msra.mxu0 0.0
    %1055 = vmatprep.subr.mxu0 0.0
    %1056 = vmatpush1.msra.mxu0 %v260
    %1057 = vmatprep.subr.mxu0 0.0
    %1058 = vmatpush1.msra.mxu0 %v259
    %1059 = vmatprep.subr.mxu0 0.0
    %1060 = vmatpush1.msra.mxu0 %v258
    %1061 = vmatprep.subr.mxu0 0.0
    %1062 = vmatpush1.msra.mxu0 %v257
    %1063 = vmatprep.subr.mxu0 0.0
    %1064 = vmatpush2.msra.mxu0 0.0
    %1065 = vmatprep.subr.mxu0 0.0
    %1066 = vmatpush2.msra.mxu0 0.0
    %1067 = vmatprep.subr.mxu0 0.0
    %1068 = vmatpush2.msra.mxu0 0.0
    %1069 = vmatprep.subr.mxu0 0.0
    %1070 = vmatpush2.msra.mxu0 0.0
    %1071 = vmatprep.subr.mxu0 0.0
    %1072 = vmatpush2.msra.mxu0 0.0
    %1073 = vmatprep.subr.mxu0 0.0
    %1074 = vmatpush2.msra.mxu0 0.0
    %1075 = vmatprep.subr.mxu0 0.0
    %1076 = vmatpush2.msra.mxu0 0.0
    %1077 = vmatprep.subr.mxu0 0.0
    %1078 = vmatpush2.msra.mxu0 0.0
    %1079 = vmatprep.subr.mxu0 0.0
    %1080 = vmatpush2.msra.mxu0 0.0
    %1081 = vmatprep.subr.mxu0 0.0
    %1082 = vmatpush2.msra.mxu0 0.0
    %1083 = vmatprep.subr.mxu0 0.0
    %1084 = vmatpush2.msra.mxu0 0.0
    %1085 = vmatprep.subr.mxu0 0.0
    %1086 = vmatpush2.msra.mxu0 0.0
    %1087 = vmatprep.subr.mxu0 0.0
    %1088 = vmatpush2.msra.mxu0 0.0
    %1089 = vmatprep.subr.mxu0 0.0
    %1090 = vmatpush2.msra.mxu0 0.0
    %1091 = vmatprep.subr.mxu0 0.0
    %1092 = vmatpush2.msra.mxu0 0.0
    %1093 = vmatprep.subr.mxu0 0.0
    %1094 = vmatpush2.msra.mxu0 0.0
    %1095 = vmatprep.mubr.f32.mxu0 0.0
    %1096 = vmatmul.mubr.f32.gmra.mxu0 %v1029
    %v1097 = vpop.f32.mrf.mxu0
    %v1098 = vadd.f32 0.0, %v1097
    %v1099 = vpop.f32.mrf.mxu0
    %1100 = vdwg.mxu0
    %v1101 = vadd.f32 %v251, %v1098
    %v1102 = vxor.u32 %v1101, 2147483648
    %v1103 = vmul.f32 %v1102, 1.442695
    %v1104 = vpow.pop %v1103
    %v1105 = vadd.f32 %v1104, 1.0
    %v1106 = vrcp.pop %v1105
    %v1107 = vmul.f32 1.0, %v1106
    %v1108 = vtanh.pop %v1101
    %v1110 = vrot.slane %v901, 2
    %v1112 = vmul.f32 %v1107, %v1110
    %1114 = vrot.lane.b32.xlu0 %v1108, 64
    %v1115 = vpop.permute.xlu0 %1114
    %v1117 = vmul.f32 %v1107, %v1115
    %1119 = vrot.lane.b32.xlu0 %v1117, 32
    %v1120 = vpop.permute.xlu0 %1119
    %v1122 = vadd.f32 %v1112, %v1120
    %v1123 = vtanh.pop %v1122
    %1125 = vrot.lane.b32.xlu0 %v1123, 64
    %v1126 = vpop.permute.xlu0 %1125
    %v1128 = vmul.f32 %v1107, %v1126
    %1130 = vrot.lane.b32.xlu0 %v1128, 64
    %v1131 = vpop.permute.xlu0 %1130
    %vm1133 = vcmask 517376
    %1134 = vst.msk [vmem:[#allocation2 + $0x8] sm:$0x3] %vm1133, %v1131
    %v1135 = vrot.slane %v1019, 6
    %1136 = vrot.lane.b32.xlu0 %v1135, 32
    %v1137 = vpop.permute.xlu0 %1136
    %v1138 = vsel %vm169, %v1137, 0
    %1140 = vmatprep.subr.mxu0 0.0
    %1141 = vmatpush1.msra.mxu0 0.0
    %1142 = vmatprep.subr.mxu0 0.0
    %1143 = vmatpush1.msra.mxu0 0.0
    %1144 = vmatprep.subr.mxu0 0.0
    %1145 = vmatpush1.msra.mxu0 0.0
    %1146 = vmatprep.subr.mxu0 0.0
    %1147 = vmatpush1.msra.mxu0 0.0
    %1148 = vmatprep.subr.mxu0 0.0
    %1149 = vmatpush1.msra.mxu0 0.0
    %1150 = vmatprep.subr.mxu0 0.0
    %1151 = vmatpush1.msra.mxu0 0.0
    %1152 = vmatprep.subr.mxu0 0.0
    %1153 = vmatpush1.msra.mxu0 0.0
    %1154 = vmatprep.subr.mxu0 0.0
    %1155 = vmatpush1.msra.mxu0 0.0
    %1156 = vmatprep.subr.mxu0 0.0
    %1157 = vmatpush1.msra.mxu0 0.0
    %1158 = vmatprep.subr.mxu0 0.0
    %1159 = vmatpush1.msra.mxu0 0.0
    %1160 = vmatprep.subr.mxu0 0.0
    %1161 = vmatpush1.msra.mxu0 0.0
    %1162 = vmatprep.subr.mxu0 0.0
    %1163 = vmatpush1.msra.mxu0 0.0
    %1164 = vmatprep.subr.mxu0 0.0
    %1165 = vmatpush1.msra.mxu0 %v256
    %1166 = vmatprep.subr.mxu0 0.0
    %1167 = vmatpush1.msra.mxu0 %v255
    %1168 = vmatprep.subr.mxu0 0.0
    %1169 = vmatpush1.msra.mxu0 %v254
    %1170 = vmatprep.subr.mxu0 0.0
    %1171 = vmatpush1.msra.mxu0 %v253
    %1172 = vmatprep.subr.mxu0 0.0
    %1173 = vmatpush2.msra.mxu0 0.0
    %1174 = vmatprep.subr.mxu0 0.0
    %1175 = vmatpush2.msra.mxu0 0.0
    %1176 = vmatprep.subr.mxu0 0.0
    %1177 = vmatpush2.msra.mxu0 0.0
    %1178 = vmatprep.subr.mxu0 0.0
    %1179 = vmatpush2.msra.mxu0 0.0
    %1180 = vmatprep.subr.mxu0 0.0
    %1181 = vmatpush2.msra.mxu0 0.0
    %1182 = vmatprep.subr.mxu0 0.0
    %1183 = vmatpush2.msra.mxu0 0.0
    %1184 = vmatprep.subr.mxu0 0.0
    %1185 = vmatpush2.msra.mxu0 0.0
    %1186 = vmatprep.subr.mxu0 0.0
    %1187 = vmatpush2.msra.mxu0 0.0
    %1188 = vmatprep.subr.mxu0 0.0
    %1189 = vmatpush2.msra.mxu0 0.0
    %1190 = vmatprep.subr.mxu0 0.0
    %1191 = vmatpush2.msra.mxu0 0.0
    %1192 = vmatprep.subr.mxu0 0.0
    %1193 = vmatpush2.msra.mxu0 0.0
    %1194 = vmatprep.subr.mxu0 0.0
    %1195 = vmatpush2.msra.mxu0 0.0
    %1196 = vmatprep.subr.mxu0 0.0
    %1197 = vmatpush2.msra.mxu0 0.0
    %1198 = vmatprep.subr.mxu0 0.0
    %1199 = vmatpush2.msra.mxu0 0.0
    %1200 = vmatprep.subr.mxu0 0.0
    %1201 = vmatpush2.msra.mxu0 0.0
    %1202 = vmatprep.subr.mxu0 0.0
    %1203 = vmatpush2.msra.mxu0 0.0
    %1204 = vmatprep.mubr.f32.mxu0 0.0
    %1205 = vmatmul.mubr.f32.gmra.mxu0 %v1138
    %v1206 = vpop.f32.mrf.mxu0
    %v1207 = vadd.f32 0.0, %v1206
    %v1208 = vpop.f32.mrf.mxu0
    %1209 = vdwg.mxu0
    %v1210 = vadd.f32 %v249, %v1207
    %v1211 = vxor.u32 %v1210, 2147483648
    %v1212 = vmul.f32 %v1211, 1.442695
    %v1213 = vpow.pop %v1212
    %v1214 = vadd.f32 %v1213, 1.0
    %v1215 = vrcp.pop %v1214
    %v1216 = vmul.f32 1.0, %v1215
    %v1217 = vtanh.pop %v1210
    %v1219 = vrot.slane %v1013, 6
    %v1221 = vmul.f32 %v1216, %v1219
    %1223 = vrot.lane.b32.xlu0 %v1217, 64
    %v1224 = vpop.permute.xlu0 %1223
    %v1226 = vmul.f32 %v1216, %v1224
    %1228 = vrot.lane.b32.xlu0 %v1226, 32
    %v1229 = vpop.permute.xlu0 %1228
    %v1231 = vadd.f32 %v1221, %v1229
    %v1232 = vtanh.pop %v1231
    %1234 = vrot.lane.b32.xlu0 %v1232, 64
    %v1235 = vpop.permute.xlu0 %1234
    %v1237 = vmul.f32 %v1216, %v1235
    %1239 = vrot.lane.b32.xlu0 %v1237, 32
    %v1240 = vpop.permute.xlu0 %1239
    %1242 = vst.msk [vmem:[#allocation2 + $0x8] sm:$0x3] %vm363, %v1240
    %1243 = vrot.lane.b32.xlu0 %v1128, 32
    %v1244 = vpop.permute.xlu0 %1243
    %v1245 = vsel %vm169, %v1244, 0
    %1247 = vmatprep.subr.mxu0 0.0
    %1248 = vmatpush1.msra.mxu0 0.0
    %1249 = vmatprep.subr.mxu0 0.0
    %1250 = vmatpush1.msra.mxu0 0.0
    %1251 = vmatprep.subr.mxu0 0.0
    %1252 = vmatpush1.msra.mxu0 0.0
    %1253 = vmatprep.subr.mxu0 0.0
    %1254 = vmatpush1.msra.mxu0 0.0
    %1255 = vmatprep.subr.mxu0 0.0
    %1256 = vmatpush1.msra.mxu0 0.0
    %1257 = vmatprep.subr.mxu0 0.0
    %1258 = vmatpush1.msra.mxu0 0.0
    %1259 = vmatprep.subr.mxu0 0.0
    %1260 = vmatpush1.msra.mxu0 0.0
    %1261 = vmatprep.subr.mxu0 0.0
    %1262 = vmatpush1.msra.mxu0 0.0
    %1263 = vmatprep.subr.mxu0 0.0
    %1264 = vmatpush1.msra.mxu0 0.0
    %1265 = vmatprep.subr.mxu0 0.0
    %1266 = vmatpush1.msra.mxu0 0.0
    %1267 = vmatprep.subr.mxu0 0.0
    %1268 = vmatpush1.msra.mxu0 0.0
    %1269 = vmatprep.subr.mxu0 0.0
    %1270 = vmatpush1.msra.mxu0 0.0
    %1271 = vmatprep.subr.mxu0 0.0
    %1272 = vmatpush1.msra.mxu0 %v260
    %1273 = vmatprep.subr.mxu0 0.0
    %1274 = vmatpush1.msra.mxu0 %v259
    %1275 = vmatprep.subr.mxu0 0.0
    %1276 = vmatpush1.msra.mxu0 %v258
    %1277 = vmatprep.subr.mxu0 0.0
    %1278 = vmatpush1.msra.mxu0 %v257
    %1279 = vmatprep.subr.mxu0 0.0
    %1280 = vmatpush2.msra.mxu0 0.0
    %1281 = vmatprep.subr.mxu0 0.0
    %1282 = vmatpush2.msra.mxu0 0.0
    %1283 = vmatprep.subr.mxu0 0.0
    %1284 = vmatpush2.msra.mxu0 0.0
    %1285 = vmatprep.subr.mxu0 0.0
    %1286 = vmatpush2.msra.mxu0 0.0
    %1287 = vmatprep.subr.mxu0 0.0
    %1288 = vmatpush2.msra.mxu0 0.0
    %1289 = vmatprep.subr.mxu0 0.0
    %1290 = vmatpush2.msra.mxu0 0.0
    %1291 = vmatprep.subr.mxu0 0.0
    %1292 = vmatpush2.msra.mxu0 0.0
    %1293 = vmatprep.subr.mxu0 0.0
    %1294 = vmatpush2.msra.mxu0 0.0
    %1295 = vmatprep.subr.mxu0 0.0
    %1296 = vmatpush2.msra.mxu0 0.0
    %1297 = vmatprep.subr.mxu0 0.0
    %1298 = vmatpush2.msra.mxu0 0.0
    %1299 = vmatprep.subr.mxu0 0.0
    %1300 = vmatpush2.msra.mxu0 0.0
    %1301 = vmatprep.subr.mxu0 0.0
    %1302 = vmatpush2.msra.mxu0 0.0
    %1303 = vmatprep.subr.mxu0 0.0
    %1304 = vmatpush2.msra.mxu0 0.0
    %1305 = vmatprep.subr.mxu0 0.0
    %1306 = vmatpush2.msra.mxu0 0.0
    %1307 = vmatprep.subr.mxu0 0.0
    %1308 = vmatpush2.msra.mxu0 0.0
    %1309 = vmatprep.subr.mxu0 0.0
    %1310 = vmatpush2.msra.mxu0 0.0
    %1311 = vmatprep.mubr.f32.mxu0 0.0
    %1312 = vmatmul.mubr.f32.gmra.mxu0 %v1245
    %v1313 = vpop.f32.mrf.mxu0
    %v1314 = vadd.f32 0.0, %v1313
    %v1315 = vpop.f32.mrf.mxu0
    %1316 = vdwg.mxu0
    %v1318 = vrot.slane %v1314, 2
    %v1320 = vadd.f32 %v245, %v1318
    %v1321 = vxor.u32 %v1320, 2147483648
    %v1322 = vmul.f32 %v1321, 1.442695
    %v1323 = vpow.pop %v1322
    %v1324 = vadd.f32 %v1323, 1.0
    %v1325 = vrcp.pop %v1324
    %v1326 = vmul.f32 1.0, %v1325
    %v1327 = vtanh.pop %v1320
    %v1329 = vrot.slane %v1122, 2
    %v1331 = vmul.f32 %v1326, %v1329
    %1333 = vrot.lane.b32.xlu0 %v1327, 64
    %v1334 = vpop.permute.xlu0 %1333
    %v1336 = vmul.f32 %v1326, %v1334
    %1338 = vrot.lane.b32.xlu0 %v1336, 32
    %v1339 = vpop.permute.xlu0 %1338
    %v1341 = vadd.f32 %v1331, %v1339
    %v1342 = vtanh.pop %v1341
    %1344 = vrot.lane.b32.xlu0 %v1342, 64
    %v1345 = vpop.permute.xlu0 %1344
    %v1347 = vmul.f32 %v1326, %v1345
    %1349 = vrot.lane.b32.xlu0 %v1347, 64
    %v1350 = vpop.permute.xlu0 %1349
    %1352 = vst.msk [vmem:[#allocation2] sm:$0xc0] %vm467, %v1350
    %v1353 = vsel %vm169, %v1240, 0
    %1355 = vmatprep.subr.mxu0 0.0
    %1356 = vmatpush1.msra.mxu0 0.0
    %1357 = vmatprep.subr.mxu0 0.0
    %1358 = vmatpush1.msra.mxu0 0.0
    %1359 = vmatprep.subr.mxu0 0.0
    %1360 = vmatpush1.msra.mxu0 0.0
    %1361 = vmatprep.subr.mxu0 0.0
    %1362 = vmatpush1.msra.mxu0 0.0
    %1363 = vmatprep.subr.mxu0 0.0
    %1364 = vmatpush1.msra.mxu0 0.0
    %1365 = vmatprep.subr.mxu0 0.0
    %1366 = vmatpush1.msra.mxu0 0.0
    %1367 = vmatprep.subr.mxu0 0.0
    %1368 = vmatpush1.msra.mxu0 0.0
    %1369 = vmatprep.subr.mxu0 0.0
    %1370 = vmatpush1.msra.mxu0 0.0
    %1371 = vmatprep.subr.mxu0 0.0
    %1372 = vmatpush1.msra.mxu0 0.0
    %1373 = vmatprep.subr.mxu0 0.0
    %1374 = vmatpush1.msra.mxu0 0.0
    %1375 = vmatprep.subr.mxu0 0.0
    %1376 = vmatpush1.msra.mxu0 0.0
    %1377 = vmatprep.subr.mxu0 0.0
    %1378 = vmatpush1.msra.mxu0 0.0
    %1379 = vmatprep.subr.mxu0 0.0
    %1380 = vmatpush1.msra.mxu0 %v256
    %1381 = vmatprep.subr.mxu0 0.0
    %1382 = vmatpush1.msra.mxu0 %v255
    %1383 = vmatprep.subr.mxu0 0.0
    %1384 = vmatpush1.msra.mxu0 %v254
    %1385 = vmatprep.subr.mxu0 0.0
    %1386 = vmatpush1.msra.mxu0 %v253
    %1387 = vmatprep.subr.mxu0 0.0
    %1388 = vmatpush2.msra.mxu0 0.0
    %1389 = vmatprep.subr.mxu0 0.0
    %1390 = vmatpush2.msra.mxu0 0.0
    %1391 = vmatprep.subr.mxu0 0.0
    %1392 = vmatpush2.msra.mxu0 0.0
    %1393 = vmatprep.subr.mxu0 0.0
    %1394 = vmatpush2.msra.mxu0 0.0
    %1395 = vmatprep.subr.mxu0 0.0
    %1396 = vmatpush2.msra.mxu0 0.0
    %1397 = vmatprep.subr.mxu0 0.0
    %1398 = vmatpush2.msra.mxu0 0.0
    %1399 = vmatprep.subr.mxu0 0.0
    %1400 = vmatpush2.msra.mxu0 0.0
    %1401 = vmatprep.subr.mxu0 0.0
    %1402 = vmatpush2.msra.mxu0 0.0
    %1403 = vmatprep.subr.mxu0 0.0
    %1404 = vmatpush2.msra.mxu0 0.0
    %1405 = vmatprep.subr.mxu0 0.0
    %1406 = vmatpush2.msra.mxu0 0.0
    %1407 = vmatprep.subr.mxu0 0.0
    %1408 = vmatpush2.msra.mxu0 0.0
    %1409 = vmatprep.subr.mxu0 0.0
    %1410 = vmatpush2.msra.mxu0 0.0
    %1411 = vmatprep.subr.mxu0 0.0
    %1412 = vmatpush2.msra.mxu0 0.0
    %1413 = vmatprep.subr.mxu0 0.0
    %1414 = vmatpush2.msra.mxu0 0.0
    %1415 = vmatprep.subr.mxu0 0.0
    %1416 = vmatpush2.msra.mxu0 0.0
    %1417 = vmatprep.subr.mxu0 0.0
    %1418 = vmatpush2.msra.mxu0 0.0
    %1419 = vmatprep.mubr.f32.mxu0 0.0
    %1420 = vmatmul.mubr.f32.gmra.mxu0 %v1353
    %v1421 = vpop.f32.mrf.mxu0
    %v1422 = vadd.f32 0.0, %v1421
    %v1423 = vpop.f32.mrf.mxu0
    %1424 = vdwg.mxu0
    %v1426 = vrot.slane %v1422, 6
    %v1428 = vadd.f32 %v249, %v1426
    %v1429 = vxor.u32 %v1428, 2147483648
    %v1430 = vmul.f32 %v1429, 1.442695
    %v1431 = vpow.pop %v1430
    %v1432 = vadd.f32 %v1431, 1.0
    %v1433 = vrcp.pop %v1432
    %v1434 = vmul.f32 1.0, %v1433
    %v1435 = vtanh.pop %v1428
    %v1437 = vrot.slane %v1231, 6
    %v1439 = vmul.f32 %v1434, %v1437
    %1441 = vrot.lane.b32.xlu0 %v1435, 64
    %v1442 = vpop.permute.xlu0 %1441
    %v1444 = vmul.f32 %v1434, %v1442
    %1446 = vrot.lane.b32.xlu0 %v1444, 32
    %v1447 = vpop.permute.xlu0 %1446
    %v1449 = vadd.f32 %v1439, %v1447
    %v1450 = vtanh.pop %v1449
    %1452 = vrot.lane.b32.xlu0 %v1450, 64
    %v1453 = vpop.permute.xlu0 %1452
    %v1455 = vmul.f32 %v1434, %v1453
    %1457 = vrot.lane.b32.xlu0 %v1455, 32
    %v1458 = vpop.permute.xlu0 %1457
    %1460 = vst.msk [vmem:[#allocation2 + $0x8] sm:$0xc] %vm576, %v1458
    %v1461 = vrot.slane %v1347, 6
    %1462 = vrot.lane.b32.xlu0 %v1461, 32
    %v1463 = vpop.permute.xlu0 %1462
    %v1464 = vsel %vm169, %v1463, 0
    %1466 = vmatprep.subr.mxu0 0.0
    %1467 = vmatpush1.msra.mxu0 0.0
    %1468 = vmatprep.subr.mxu0 0.0
    %1469 = vmatpush1.msra.mxu0 0.0
    %1470 = vmatprep.subr.mxu0 0.0
    %1471 = vmatpush1.msra.mxu0 0.0
    %1472 = vmatprep.subr.mxu0 0.0
    %1473 = vmatpush1.msra.mxu0 0.0
    %1474 = vmatprep.subr.mxu0 0.0
    %1475 = vmatpush1.msra.mxu0 0.0
    %1476 = vmatprep.subr.mxu0 0.0
    %1477 = vmatpush1.msra.mxu0 0.0
    %1478 = vmatprep.subr.mxu0 0.0
    %1479 = vmatpush1.msra.mxu0 0.0
    %1480 = vmatprep.subr.mxu0 0.0
    %1481 = vmatpush1.msra.mxu0 0.0
    %1482 = vmatprep.subr.mxu0 0.0
    %1483 = vmatpush1.msra.mxu0 0.0
    %1484 = vmatprep.subr.mxu0 0.0
    %1485 = vmatpush1.msra.mxu0 0.0
    %1486 = vmatprep.subr.mxu0 0.0
    %1487 = vmatpush1.msra.mxu0 0.0
    %1488 = vmatprep.subr.mxu0 0.0
    %1489 = vmatpush1.msra.mxu0 0.0
    %1490 = vmatprep.subr.mxu0 0.0
    %1491 = vmatpush1.msra.mxu0 %v260
    %1492 = vmatprep.subr.mxu0 0.0
    %1493 = vmatpush1.msra.mxu0 %v259
    %1494 = vmatprep.subr.mxu0 0.0
    %1495 = vmatpush1.msra.mxu0 %v258
    %1496 = vmatprep.subr.mxu0 0.0
    %1497 = vmatpush1.msra.mxu0 %v257
    %1498 = vmatprep.subr.mxu0 0.0
    %1499 = vmatpush2.msra.mxu0 0.0
    %1500 = vmatprep.subr.mxu0 0.0
    %1501 = vmatpush2.msra.mxu0 0.0
    %1502 = vmatprep.subr.mxu0 0.0
    %1503 = vmatpush2.msra.mxu0 0.0
    %1504 = vmatprep.subr.mxu0 0.0
    %1505 = vmatpush2.msra.mxu0 0.0
    %1506 = vmatprep.subr.mxu0 0.0
    %1507 = vmatpush2.msra.mxu0 0.0
    %1508 = vmatprep.subr.mxu0 0.0
    %1509 = vmatpush2.msra.mxu0 0.0
    %1510 = vmatprep.subr.mxu0 0.0
    %1511 = vmatpush2.msra.mxu0 0.0
    %1512 = vmatprep.subr.mxu0 0.0
    %1513 = vmatpush2.msra.mxu0 0.0
    %1514 = vmatprep.subr.mxu0 0.0
    %1515 = vmatpush2.msra.mxu0 0.0
    %1516 = vmatprep.subr.mxu0 0.0
    %1517 = vmatpush2.msra.mxu0 0.0
    %1518 = vmatprep.subr.mxu0 0.0
    %1519 = vmatpush2.msra.mxu0 0.0
    %1520 = vmatprep.subr.mxu0 0.0
    %1521 = vmatpush2.msra.mxu0 0.0
    %1522 = vmatprep.subr.mxu0 0.0
    %1523 = vmatpush2.msra.mxu0 0.0
    %1524 = vmatprep.subr.mxu0 0.0
    %1525 = vmatpush2.msra.mxu0 0.0
    %1526 = vmatprep.subr.mxu0 0.0
    %1527 = vmatpush2.msra.mxu0 0.0
    %1528 = vmatprep.subr.mxu0 0.0
    %1529 = vmatpush2.msra.mxu0 0.0
    %1530 = vmatprep.mubr.f32.mxu0 0.0
    %1531 = vmatmul.mubr.f32.gmra.mxu0 %v1464
    %v1532 = vpop.f32.mrf.mxu0
    %v1533 = vadd.f32 0.0, %v1532
    %v1534 = vpop.f32.mrf.mxu0
    %1535 = vdwg.mxu0
    %v1537 = vrot.slane %v1533, 4
    %v1539 = vadd.f32 %v245, %v1537
    %v1540 = vxor.u32 %v1539, 2147483648
    %v1541 = vmul.f32 %v1540, 1.442695
    %v1542 = vpow.pop %v1541
    %v1543 = vadd.f32 %v1542, 1.0
    %v1544 = vrcp.pop %v1543
    %v1545 = vmul.f32 1.0, %v1544
    %v1546 = vtanh.pop %v1539
    %v1548 = vrot.slane %v1341, 2
    %v1550 = vmul.f32 %v1545, %v1548
    %1552 = vrot.lane.b32.xlu0 %v1546, 64
    %v1553 = vpop.permute.xlu0 %1552
    %v1555 = vmul.f32 %v1545, %v1553
    %1557 = vrot.lane.b32.xlu0 %v1555, 32
    %v1558 = vpop.permute.xlu0 %1557
    %v1560 = vadd.f32 %v1550, %v1558
    %v1561 = vtanh.pop %v1560
    %1563 = vrot.lane.b32.xlu0 %v1561, 64
    %v1564 = vpop.permute.xlu0 %1563
    %v1566 = vmul.f32 %v1545, %v1564
    %1568 = vrot.lane.b32.xlu0 %v1566, 64
    %v1569 = vpop.permute.xlu0 %1568
    %1571 = vst.msk [vmem:[#allocation2] sm:$0x30] %vm688, %v1569
    %v1572 = vrot.slane %v1455, 2
    %1573 = vrot.lane.b32.xlu0 %v1572, 32
    %v1574 = vpop.permute.xlu0 %1573
    %v1575 = vsel %vm169, %v1574, 0
    %1577 = vmatprep.subr.mxu0 0.0
    %1578 = vmatpush1.msra.mxu0 0.0
    %1579 = vmatprep.subr.mxu0 0.0
    %1580 = vmatpush1.msra.mxu0 0.0
    %1581 = vmatprep.subr.mxu0 0.0
    %1582 = vmatpush1.msra.mxu0 0.0
    %1583 = vmatprep.subr.mxu0 0.0
    %1584 = vmatpush1.msra.mxu0 0.0
    %1585 = vmatprep.subr.mxu0 0.0
    %1586 = vmatpush1.msra.mxu0 0.0
    %1587 = vmatprep.subr.mxu0 0.0
    %1588 = vmatpush1.msra.mxu0 0.0
    %1589 = vmatprep.subr.mxu0 0.0
    %1590 = vmatpush1.msra.mxu0 0.0
    %1591 = vmatprep.subr.mxu0 0.0
    %1592 = vmatpush1.msra.mxu0 0.0
    %1593 = vmatprep.subr.mxu0 0.0
    %1594 = vmatpush1.msra.mxu0 0.0
    %1595 = vmatprep.subr.mxu0 0.0
    %1596 = vmatpush1.msra.mxu0 0.0
    %1597 = vmatprep.subr.mxu0 0.0
    %1598 = vmatpush1.msra.mxu0 0.0
    %1599 = vmatprep.subr.mxu0 0.0
    %1600 = vmatpush1.msra.mxu0 0.0
    %1601 = vmatprep.subr.mxu0 0.0
    %1602 = vmatpush1.msra.mxu0 %v256
    %1603 = vmatprep.subr.mxu0 0.0
    %1604 = vmatpush1.msra.mxu0 %v255
    %1605 = vmatprep.subr.mxu0 0.0
    %1606 = vmatpush1.msra.mxu0 %v254
    %1607 = vmatprep.subr.mxu0 0.0
    %1608 = vmatpush1.msra.mxu0 %v253
    %1609 = vmatprep.subr.mxu0 0.0
    %1610 = vmatpush2.msra.mxu0 0.0
    %1611 = vmatprep.subr.mxu0 0.0
    %1612 = vmatpush2.msra.mxu0 0.0
    %1613 = vmatprep.subr.mxu0 0.0
    %1614 = vmatpush2.msra.mxu0 0.0
    %1615 = vmatprep.subr.mxu0 0.0
    %1616 = vmatpush2.msra.mxu0 0.0
    %1617 = vmatprep.subr.mxu0 0.0
    %1618 = vmatpush2.msra.mxu0 0.0
    %1619 = vmatprep.subr.mxu0 0.0
    %1620 = vmatpush2.msra.mxu0 0.0
    %1621 = vmatprep.subr.mxu0 0.0
    %1622 = vmatpush2.msra.mxu0 0.0
    %1623 = vmatprep.subr.mxu0 0.0
    %1624 = vmatpush2.msra.mxu0 0.0
    %1625 = vmatprep.subr.mxu0 0.0
    %1626 = vmatpush2.msra.mxu0 0.0
    %1627 = vmatprep.subr.mxu0 0.0
    %1628 = vmatpush2.msra.mxu0 0.0
    %1629 = vmatprep.subr.mxu0 0.0
    %1630 = vmatpush2.msra.mxu0 0.0
    %1631 = vmatprep.subr.mxu0 0.0
    %1632 = vmatpush2.msra.mxu0 0.0
    %1633 = vmatprep.subr.mxu0 0.0
    %1634 = vmatpush2.msra.mxu0 0.0
    %1635 = vmatprep.subr.mxu0 0.0
    %1636 = vmatpush2.msra.mxu0 0.0
    %1637 = vmatprep.subr.mxu0 0.0
    %1638 = vmatpush2.msra.mxu0 0.0
    %1639 = vmatprep.subr.mxu0 0.0
    %1640 = vmatpush2.msra.mxu0 0.0
    %1641 = vmatprep.mubr.f32.mxu0 0.0
    %1642 = vmatmul.mubr.f32.gmra.mxu0 %v1575
    %v1643 = vpop.f32.mrf.mxu0
    %v1644 = vadd.f32 0.0, %v1643
    %v1645 = vpop.f32.mrf.mxu0
    %1646 = vdwg.mxu0
    %v1648 = vrot.slane %v1644, 4
    %v1650 = vadd.f32 %v249, %v1648
    %v1651 = vxor.u32 %v1650, 2147483648
    %v1652 = vmul.f32 %v1651, 1.442695
    %v1653 = vpow.pop %v1652
    %v1654 = vadd.f32 %v1653, 1.0
    %v1655 = vrcp.pop %v1654
    %v1656 = vmul.f32 1.0, %v1655
    %v1657 = vtanh.pop %v1650
    %v1659 = vrot.slane %v1449, 6
    %v1661 = vmul.f32 %v1656, %v1659
    %1663 = vrot.lane.b32.xlu0 %v1657, 64
    %v1664 = vpop.permute.xlu0 %1663
    %v1666 = vmul.f32 %v1656, %v1664
    %1668 = vrot.lane.b32.xlu0 %v1666, 32
    %v1669 = vpop.permute.xlu0 %1668
    %v1671 = vadd.f32 %v1661, %v1669
    %v1672 = vtanh.pop %v1671
    %1674 = vrot.lane.b32.xlu0 %v1672, 64
    %v1675 = vpop.permute.xlu0 %1674
    %v1677 = vmul.f32 %v1656, %v1675
    %1679 = vrot.lane.b32.xlu0 %v1677, 32
    %v1680 = vpop.permute.xlu0 %1679
    %1682 = vst.msk [vmem:[#allocation2 + $0x8] sm:$0x30] %vm800, %v1680
    %v1683 = vrot.slane %v1566, 4
    %1684 = vrot.lane.b32.xlu0 %v1683, 32
    %v1685 = vpop.permute.xlu0 %1684
    %v1686 = vsel %vm169, %v1685, 0
    %1688 = vmatprep.subr.mxu0 0.0
    %1689 = vmatpush1.msra.mxu0 0.0
    %1690 = vmatprep.subr.mxu0 0.0
    %1691 = vmatpush1.msra.mxu0 0.0
    %1692 = vmatprep.subr.mxu0 0.0
    %1693 = vmatpush1.msra.mxu0 0.0
    %1694 = vmatprep.subr.mxu0 0.0
    %1695 = vmatpush1.msra.mxu0 0.0
    %1696 = vmatprep.subr.mxu0 0.0
    %1697 = vmatpush1.msra.mxu0 0.0
    %1698 = vmatprep.subr.mxu0 0.0
    %1699 = vmatpush1.msra.mxu0 0.0
    %1700 = vmatprep.subr.mxu0 0.0
    %1701 = vmatpush1.msra.mxu0 0.0
    %1702 = vmatprep.subr.mxu0 0.0
    %1703 = vmatpush1.msra.mxu0 0.0
    %1704 = vmatprep.subr.mxu0 0.0
    %1705 = vmatpush1.msra.mxu0 0.0
    %1706 = vmatprep.subr.mxu0 0.0
    %1707 = vmatpush1.msra.mxu0 0.0
    %1708 = vmatprep.subr.mxu0 0.0
    %1709 = vmatpush1.msra.mxu0 0.0
    %1710 = vmatprep.subr.mxu0 0.0
    %1711 = vmatpush1.msra.mxu0 0.0
    %1712 = vmatprep.subr.mxu0 0.0
    %1713 = vmatpush1.msra.mxu0 %v260
    %1714 = vmatprep.subr.mxu0 0.0
    %1715 = vmatpush1.msra.mxu0 %v259
    %1716 = vmatprep.subr.mxu0 0.0
    %1717 = vmatpush1.msra.mxu0 %v258
    %1718 = vmatprep.subr.mxu0 0.0
    %1719 = vmatpush1.msra.mxu0 %v257
    %1720 = vmatprep.subr.mxu0 0.0
    %1721 = vmatpush2.msra.mxu0 0.0
    %1722 = vmatprep.subr.mxu0 0.0
    %1723 = vmatpush2.msra.mxu0 0.0
    %1724 = vmatprep.subr.mxu0 0.0
    %1725 = vmatpush2.msra.mxu0 0.0
    %1726 = vmatprep.subr.mxu0 0.0
    %1727 = vmatpush2.msra.mxu0 0.0
    %1728 = vmatprep.subr.mxu0 0.0
    %1729 = vmatpush2.msra.mxu0 0.0
    %1730 = vmatprep.subr.mxu0 0.0
    %1731 = vmatpush2.msra.mxu0 0.0
    %1732 = vmatprep.subr.mxu0 0.0
    %1733 = vmatpush2.msra.mxu0 0.0
    %1734 = vmatprep.subr.mxu0 0.0
    %1735 = vmatpush2.msra.mxu0 0.0
    %1736 = vmatprep.subr.mxu0 0.0
    %1737 = vmatpush2.msra.mxu0 0.0
    %1738 = vmatprep.subr.mxu0 0.0
    %1739 = vmatpush2.msra.mxu0 0.0
    %1740 = vmatprep.subr.mxu0 0.0
    %1741 = vmatpush2.msra.mxu0 0.0
    %1742 = vmatprep.subr.mxu0 0.0
    %1743 = vmatpush2.msra.mxu0 0.0
    %1744 = vmatprep.subr.mxu0 0.0
    %1745 = vmatpush2.msra.mxu0 0.0
    %1746 = vmatprep.subr.mxu0 0.0
    %1747 = vmatpush2.msra.mxu0 0.0
    %1748 = vmatprep.subr.mxu0 0.0
    %1749 = vmatpush2.msra.mxu0 0.0
    %1750 = vmatprep.subr.mxu0 0.0
    %1751 = vmatpush2.msra.mxu0 0.0
    %1752 = vmatprep.mubr.f32.mxu0 0.0
    %1753 = vmatmul.mubr.f32.gmra.mxu0 %v1686
    %v1754 = vpop.f32.mrf.mxu0
    %v1755 = vadd.f32 0.0, %v1754
    %v1756 = vpop.f32.mrf.mxu0
    %1757 = vdwg.mxu0
    %v1759 = vrot.slane %v1755, 6
    %v1761 = vadd.f32 %v245, %v1759
    %v1762 = vxor.u32 %v1761, 2147483648
    %v1763 = vmul.f32 %v1762, 1.442695
    %v1764 = vpow.pop %v1763
    %v1765 = vadd.f32 %v1764, 1.0
    %v1766 = vrcp.pop %v1765
    %v1767 = vmul.f32 1.0, %v1766
    %v1768 = vtanh.pop %v1761
    %v1770 = vrot.slane %v1560, 2
    %v1772 = vmul.f32 %v1767, %v1770
    %1774 = vrot.lane.b32.xlu0 %v1768, 64
    %v1775 = vpop.permute.xlu0 %1774
    %v1777 = vmul.f32 %v1767, %v1775
    %1779 = vrot.lane.b32.xlu0 %v1777, 32
    %v1780 = vpop.permute.xlu0 %1779
    %v1782 = vadd.f32 %v1772, %v1780
    %v1783 = vtanh.pop %v1782
    %1785 = vrot.lane.b32.xlu0 %v1783, 64
    %v1786 = vpop.permute.xlu0 %1785
    %v1788 = vmul.f32 %v1767, %v1786
    %1790 = vrot.lane.b32.xlu0 %v1788, 64
    %v1791 = vpop.permute.xlu0 %1790
    %1793 = vst.msk [vmem:[#allocation2] sm:$0xc] %vm912, %v1791
    %v1794 = vrot.slane %v1677, 4
    %1795 = vrot.lane.b32.xlu0 %v1794, 32
    %v1796 = vpop.permute.xlu0 %1795
    %v1797 = vsel %vm169, %v1796, 0
    %1799 = vmatprep.subr.mxu0 0.0
    %1800 = vmatpush1.msra.mxu0 0.0
    %1801 = vmatprep.subr.mxu0 0.0
    %1802 = vmatpush1.msra.mxu0 0.0
    %1803 = vmatprep.subr.mxu0 0.0
    %1804 = vmatpush1.msra.mxu0 0.0
    %1805 = vmatprep.subr.mxu0 0.0
    %1806 = vmatpush1.msra.mxu0 0.0
    %1807 = vmatprep.subr.mxu0 0.0
    %1808 = vmatpush1.msra.mxu0 0.0
    %1809 = vmatprep.subr.mxu0 0.0
    %1810 = vmatpush1.msra.mxu0 0.0
    %1811 = vmatprep.subr.mxu0 0.0
    %1812 = vmatpush1.msra.mxu0 0.0
    %1813 = vmatprep.subr.mxu0 0.0
    %1814 = vmatpush1.msra.mxu0 0.0
    %1815 = vmatprep.subr.mxu0 0.0
    %1816 = vmatpush1.msra.mxu0 0.0
    %1817 = vmatprep.subr.mxu0 0.0
    %1818 = vmatpush1.msra.mxu0 0.0
    %1819 = vmatprep.subr.mxu0 0.0
    %1820 = vmatpush1.msra.mxu0 0.0
    %1821 = vmatprep.subr.mxu0 0.0
    %1822 = vmatpush1.msra.mxu0 0.0
    %1823 = vmatprep.subr.mxu0 0.0
    %1824 = vmatpush1.msra.mxu0 %v256
    %1825 = vmatprep.subr.mxu0 0.0
    %1826 = vmatpush1.msra.mxu0 %v255
    %1827 = vmatprep.subr.mxu0 0.0
    %1828 = vmatpush1.msra.mxu0 %v254
    %1829 = vmatprep.subr.mxu0 0.0
    %1830 = vmatpush1.msra.mxu0 %v253
    %1831 = vmatprep.subr.mxu0 0.0
    %1832 = vmatpush2.msra.mxu0 0.0
    %1833 = vmatprep.subr.mxu0 0.0
    %1834 = vmatpush2.msra.mxu0 0.0
    %1835 = vmatprep.subr.mxu0 0.0
    %1836 = vmatpush2.msra.mxu0 0.0
    %1837 = vmatprep.subr.mxu0 0.0
    %1838 = vmatpush2.msra.mxu0 0.0
    %1839 = vmatprep.subr.mxu0 0.0
    %1840 = vmatpush2.msra.mxu0 0.0
    %1841 = vmatprep.subr.mxu0 0.0
    %1842 = vmatpush2.msra.mxu0 0.0
    %1843 = vmatprep.subr.mxu0 0.0
    %1844 = vmatpush2.msra.mxu0 0.0
    %1845 = vmatprep.subr.mxu0 0.0
    %1846 = vmatpush2.msra.mxu0 0.0
    %1847 = vmatprep.subr.mxu0 0.0
    %1848 = vmatpush2.msra.mxu0 0.0
    %1849 = vmatprep.subr.mxu0 0.0
    %1850 = vmatpush2.msra.mxu0 0.0
    %1851 = vmatprep.subr.mxu0 0.0
    %1852 = vmatpush2.msra.mxu0 0.0
    %1853 = vmatprep.subr.mxu0 0.0
    %1854 = vmatpush2.msra.mxu0 0.0
    %1855 = vmatprep.subr.mxu0 0.0
    %1856 = vmatpush2.msra.mxu0 0.0
    %1857 = vmatprep.subr.mxu0 0.0
    %1858 = vmatpush2.msra.mxu0 0.0
    %1859 = vmatprep.subr.mxu0 0.0
    %1860 = vmatpush2.msra.mxu0 0.0
    %1861 = vmatprep.subr.mxu0 0.0
    %1862 = vmatpush2.msra.mxu0 0.0
    %1863 = vmatprep.mubr.f32.mxu0 0.0
    %1864 = vmatmul.mubr.f32.gmra.mxu0 %v1797
    %v1865 = vpop.f32.mrf.mxu0
    %v1866 = vadd.f32 0.0, %v1865
    %v1867 = vpop.f32.mrf.mxu0
    %1868 = vdwg.mxu0
    %v1870 = vrot.slane %v1866, 2
    %v1872 = vadd.f32 %v249, %v1870
    %v1873 = vxor.u32 %v1872, 2147483648
    %v1874 = vmul.f32 %v1873, 1.442695
    %v1875 = vpow.pop %v1874
    %v1876 = vadd.f32 %v1875, 1.0
    %v1877 = vrcp.pop %v1876
    %v1878 = vmul.f32 1.0, %v1877
    %v1879 = vtanh.pop %v1872
    %v1881 = vrot.slane %v1671, 6
    %v1883 = vmul.f32 %v1878, %v1881
    %1885 = vrot.lane.b32.xlu0 %v1879, 64
    %v1886 = vpop.permute.xlu0 %1885
    %v1888 = vmul.f32 %v1878, %v1886
    %1890 = vrot.lane.b32.xlu0 %v1888, 32
    %v1891 = vpop.permute.xlu0 %1890
    %v1893 = vadd.f32 %v1883, %v1891
    %v1894 = vtanh.pop %v1893
    %1896 = vrot.lane.b32.xlu0 %v1894, 64
    %v1897 = vpop.permute.xlu0 %1896
    %v1899 = vmul.f32 %v1878, %v1897
    %1901 = vrot.lane.b32.xlu0 %v1899, 32
    %v1902 = vpop.permute.xlu0 %1901
    %1904 = vst.msk [vmem:[#allocation2 + $0x8] sm:$0xc0] %vm1024, %v1902
    %v1905 = vrot.slane %v1788, 2
    %1906 = vrot.lane.b32.xlu0 %v1905, 32
    %v1907 = vpop.permute.xlu0 %1906
    %v1908 = vsel %vm169, %v1907, 0
    %1910 = vmatprep.subr.mxu0 0.0
    %1911 = vmatpush1.msra.mxu0 0.0
    %1912 = vmatprep.subr.mxu0 0.0
    %1913 = vmatpush1.msra.mxu0 0.0
    %1914 = vmatprep.subr.mxu0 0.0
    %1915 = vmatpush1.msra.mxu0 0.0
    %1916 = vmatprep.subr.mxu0 0.0
    %1917 = vmatpush1.msra.mxu0 0.0
    %1918 = vmatprep.subr.mxu0 0.0
    %1919 = vmatpush1.msra.mxu0 0.0
    %1920 = vmatprep.subr.mxu0 0.0
    %1921 = vmatpush1.msra.mxu0 0.0
    %1922 = vmatprep.subr.mxu0 0.0
    %1923 = vmatpush1.msra.mxu0 0.0
    %1924 = vmatprep.subr.mxu0 0.0
    %1925 = vmatpush1.msra.mxu0 0.0
    %1926 = vmatprep.subr.mxu0 0.0
    %1927 = vmatpush1.msra.mxu0 0.0
    %1928 = vmatprep.subr.mxu0 0.0
    %1929 = vmatpush1.msra.mxu0 0.0
    %1930 = vmatprep.subr.mxu0 0.0
    %1931 = vmatpush1.msra.mxu0 0.0
    %1932 = vmatprep.subr.mxu0 0.0
    %1933 = vmatpush1.msra.mxu0 0.0
    %1934 = vmatprep.subr.mxu0 0.0
    %1935 = vmatpush1.msra.mxu0 %v260
    %1936 = vmatprep.subr.mxu0 0.0
    %1937 = vmatpush1.msra.mxu0 %v259
    %1938 = vmatprep.subr.mxu0 0.0
    %1939 = vmatpush1.msra.mxu0 %v258
    %1940 = vmatprep.subr.mxu0 0.0
    %1941 = vmatpush1.msra.mxu0 %v257
    %1942 = vmatprep.subr.mxu0 0.0
    %1943 = vmatpush2.msra.mxu0 0.0
    %1944 = vmatprep.subr.mxu0 0.0
    %1945 = vmatpush2.msra.mxu0 0.0
    %1946 = vmatprep.subr.mxu0 0.0
    %1947 = vmatpush2.msra.mxu0 0.0
    %1948 = vmatprep.subr.mxu0 0.0
    %1949 = vmatpush2.msra.mxu0 0.0
    %1950 = vmatprep.subr.mxu0 0.0
    %1951 = vmatpush2.msra.mxu0 0.0
    %1952 = vmatprep.subr.mxu0 0.0
    %1953 = vmatpush2.msra.mxu0 0.0
    %1954 = vmatprep.subr.mxu0 0.0
    %1955 = vmatpush2.msra.mxu0 0.0
    %1956 = vmatprep.subr.mxu0 0.0
    %1957 = vmatpush2.msra.mxu0 0.0
    %1958 = vmatprep.subr.mxu0 0.0
    %1959 = vmatpush2.msra.mxu0 0.0
    %1960 = vmatprep.subr.mxu0 0.0
    %1961 = vmatpush2.msra.mxu0 0.0
    %1962 = vmatprep.subr.mxu0 0.0
    %1963 = vmatpush2.msra.mxu0 0.0
    %1964 = vmatprep.subr.mxu0 0.0
    %1965 = vmatpush2.msra.mxu0 0.0
    %1966 = vmatprep.subr.mxu0 0.0
    %1967 = vmatpush2.msra.mxu0 0.0
    %1968 = vmatprep.subr.mxu0 0.0
    %1969 = vmatpush2.msra.mxu0 0.0
    %1970 = vmatprep.subr.mxu0 0.0
    %1971 = vmatpush2.msra.mxu0 0.0
    %1972 = vmatprep.subr.mxu0 0.0
    %1973 = vmatpush2.msra.mxu0 0.0
    %1974 = vmatprep.mubr.f32.mxu0 0.0
    %1975 = vmatmul.mubr.f32.gmra.mxu0 %v1908
    %v1976 = vpop.f32.mrf.mxu0
    %v1977 = vadd.f32 0.0, %v1976
    %v1978 = vpop.f32.mrf.mxu0
    %1979 = vdwg.mxu0
    %v1980 = vadd.f32 %v245, %v1977
    %v1981 = vxor.u32 %v1980, 2147483648
    %v1982 = vmul.f32 %v1981, 1.442695
    %v1983 = vpow.pop %v1982
    %v1984 = vadd.f32 %v1983, 1.0
    %v1985 = vrcp.pop %v1984
    %v1986 = vmul.f32 1.0, %v1985
    %v1987 = vtanh.pop %v1980
    %v1989 = vrot.slane %v1782, 2
    %v1991 = vmul.f32 %v1986, %v1989
    %1993 = vrot.lane.b32.xlu0 %v1987, 64
    %v1994 = vpop.permute.xlu0 %1993
    %v1996 = vmul.f32 %v1986, %v1994
    %1998 = vrot.lane.b32.xlu0 %v1996, 32
    %v1999 = vpop.permute.xlu0 %1998
    %v2001 = vadd.f32 %v1991, %v1999
    %v2002 = vtanh.pop %v2001
    %2004 = vrot.lane.b32.xlu0 %v2002, 64
    %v2005 = vpop.permute.xlu0 %2004
    %v2007 = vmul.f32 %v1986, %v2005
    %2009 = vrot.lane.b32.xlu0 %v2007, 64
    %v2010 = vpop.permute.xlu0 %2009
    %2012 = vst.msk [vmem:[#allocation2] sm:$0x3] %vm1133, %v2010
    %v2013 = vld [vmem:[#allocation2] sm:$0xff]
    %v2014 = vld [vmem:[#allocation2 + $0x8] sm:$0xff]
    %v2015 = vld [vmem:[%s6] sm:$0xff]
    %v2016 = vld [vmem:[%s6 + $0x8] sm:$0xff]
    %v2017 = vld [vmem:[%s6 + $0x10] sm:$0xff]
    %v2018 = vld [vmem:[%s6 + $0x18] sm:$0xff]
    %v2019 = vld [vmem:[%s6 + $0x20] sm:$0xff]
    %v2020 = vld [vmem:[%s6 + $0x28] sm:$0xff]
    %v2021 = vld [vmem:[%s6 + $0x30] sm:$0xff]
    %v2022 = vld [vmem:[%s6 + $0x38] sm:$0xff]
    %v2023 = vld [vmem:[%s6 + $0x40] sm:$0xff]
    %v2024 = vld [vmem:[%s6 + $0x48] sm:$0xff]
    %v2025 = vld [vmem:[%s6 + $0x50] sm:$0xff]
    %v2026 = vld [vmem:[%s6 + $0x58] sm:$0xff]
    %v2027 = vld [vmem:[%s6 + $0x60] sm:$0xff]
    %v2028 = vld [vmem:[%s6 + $0x68] sm:$0xff]
    %v2029 = vld [vmem:[%s6 + $0x70] sm:$0xff]
    %v2030 = vld [vmem:[%s6 + $0x78] sm:$0xff]
    %v2031 = vld [vmem:[%s9] sm:$0x3]
    %v2033 = vlaneseq
    %v2034 = vshrl.u32 %v2033, 7
    %v2035 = vsub.s32 0, %v2034
    %v2036 = vrot.slane %v2031, %v2035
    %v2037 = vlaneseq
    %v2038 = vshrl.u32 %v2037, 7
    %v2039 = vsub.s32 1, %v2038
    %v2040 = vrot.slane %v2031, %v2039
    %vm2043 = vcmask 523264
    %v2045 = vsel %vm2043, %v2013, 0
    %v2048 = vsel %vm2043, %v2014, 0
    %2050 = vmatprep.subr.mxu0 0.0
    %2051 = vmatpush1.msra.mxu0 0.0
    %2052 = vmatprep.subr.mxu0 0.0
    %2053 = vmatpush1.msra.mxu0 0.0
    %2054 = vmatprep.subr.mxu0 0.0
    %2055 = vmatpush1.msra.mxu0 0.0
    %2056 = vmatprep.subr.mxu0 0.0
    %2057 = vmatpush1.msra.mxu0 0.0
    %2058 = vmatprep.subr.mxu0 0.0
    %2059 = vmatpush1.msra.mxu0 0.0
    %2060 = vmatprep.subr.mxu0 0.0
    %2061 = vmatpush1.msra.mxu0 0.0
    %2062 = vmatprep.subr.mxu0 0.0
    %2063 = vmatpush1.msra.mxu0 0.0
    %2064 = vmatprep.subr.mxu0 0.0
    %2065 = vmatpush1.msra.mxu0 0.0
    %2066 = vmatprep.subr.mxu0 %v2030
    %2067 = vmatpush1.msra.mxu0 %v2029
    %2068 = vmatprep.subr.mxu0 %v2028
    %2069 = vmatpush1.msra.mxu0 %v2027
    %2070 = vmatprep.subr.mxu0 %v2026
    %2071 = vmatpush1.msra.mxu0 %v2025
    %2072 = vmatprep.subr.mxu0 %v2024
    %2073 = vmatpush1.msra.mxu0 %v2023
    %2074 = vmatprep.subr.mxu0 %v2022
    %2075 = vmatpush1.msra.mxu0 %v2021
    %2076 = vmatprep.subr.mxu0 %v2020
    %2077 = vmatpush1.msra.mxu0 %v2019
    %2078 = vmatprep.subr.mxu0 %v2018
    %2079 = vmatpush1.msra.mxu0 %v2017
    %2080 = vmatprep.subr.mxu0 %v2016
    %2081 = vmatpush1.msra.mxu0 %v2015
    %2082 = vmatprep.subr.mxu0 0.0
    %2083 = vmatpush2.msra.mxu0 0.0
    %2084 = vmatprep.subr.mxu0 0.0
    %2085 = vmatpush2.msra.mxu0 0.0
    %2086 = vmatprep.subr.mxu0 0.0
    %2087 = vmatpush2.msra.mxu0 0.0
    %2088 = vmatprep.subr.mxu0 0.0
    %2089 = vmatpush2.msra.mxu0 0.0
    %2090 = vmatprep.subr.mxu0 0.0
    %2091 = vmatpush2.msra.mxu0 0.0
    %2092 = vmatprep.subr.mxu0 0.0
    %2093 = vmatpush2.msra.mxu0 0.0
    %2094 = vmatprep.subr.mxu0 0.0
    %2095 = vmatpush2.msra.mxu0 0.0
    %2096 = vmatprep.subr.mxu0 0.0
    %2097 = vmatpush2.msra.mxu0 0.0
    %2098 = vmatprep.subr.mxu0 0.0
    %2099 = vmatpush2.msra.mxu0 0.0
    %2100 = vmatprep.subr.mxu0 0.0
    %2101 = vmatpush2.msra.mxu0 0.0
    %2102 = vmatprep.subr.mxu0 0.0
    %2103 = vmatpush2.msra.mxu0 0.0
    %2104 = vmatprep.subr.mxu0 0.0
    %2105 = vmatpush2.msra.mxu0 0.0
    %2106 = vmatprep.subr.mxu0 0.0
    %2107 = vmatpush2.msra.mxu0 0.0
    %2108 = vmatprep.subr.mxu0 0.0
    %2109 = vmatpush2.msra.mxu0 0.0
    %2110 = vmatprep.subr.mxu0 0.0
    %2111 = vmatpush2.msra.mxu0 0.0
    %2112 = vmatprep.subr.mxu0 0.0
    %2113 = vmatpush2.msra.mxu0 0.0
    %2114 = vmatprep.mubr.f32.mxu0 0.0
    %2115 = vmatmul.mubr.f32.gmra.mxu0 %v2045
    %v2116 = vpop.f32.mrf.mxu0
    %v2117 = vadd.f32 %v2036, %v2116
    %v2118 = vpop.f32.mrf.mxu0
    %v2119 = vadd.f32 %v2040, %v2118
    %2120 = vmatprep.mubr.f32.mxu0 0.0
    %2121 = vmatmul.mubr.f32.gmra.mxu0 %v2048
    %v2122 = vpop.f32.mrf.mxu0
    %v2123 = vadd.f32 %v2036, %v2122
    %v2124 = vpop.f32.mrf.mxu0
    %v2125 = vadd.f32 %v2040, %v2124
    %2126 = vdwg.mxu0
    %v2127 = vld [vmem:[%s7] sm:$0xff]
    %v2128 = vld [vmem:[%s7 + $0x8] sm:$0xff]
    %v2129 = vld [vmem:[%s7 + $0x10] sm:$0xff]
    %v2130 = vld [vmem:[%s7 + $0x18] sm:$0xff]
    %v2131 = vld [vmem:[%s8] sm:$0xff]
    %v2132 = vld [vmem:[%s8 + $0x8] sm:$0xff]
    %v2133 = vld [vmem:[%s8 + $0x10] sm:$0xff]
    %v2134 = vld [vmem:[%s8 + $0x18] sm:$0xff]
    %2135 = vmatprep.subr.mxu0 0.0
    %2136 = vmatpush1.msra.mxu0 0.0
    %2137 = vmatprep.subr.mxu0 0.0
    %2138 = vmatpush1.msra.mxu0 0.0
    %2139 = vmatprep.subr.mxu0 0.0
    %2140 = vmatpush1.msra.mxu0 0.0
    %2141 = vmatprep.subr.mxu0 0.0
    %2142 = vmatpush1.msra.mxu0 0.0
    %2143 = vmatprep.subr.mxu0 0.0
    %2144 = vmatpush1.msra.mxu0 0.0
    %2145 = vmatprep.subr.mxu0 0.0
    %2146 = vmatpush1.msra.mxu0 0.0
    %2147 = vmatprep.subr.mxu0 0.0
    %2148 = vmatpush1.msra.mxu0 0.0
    %2149 = vmatprep.subr.mxu0 0.0
    %2150 = vmatpush1.msra.mxu0 0.0
    %2151 = vmatprep.subr.mxu0 0.0
    %2152 = vmatpush1.msra.mxu0 0.0
    %2153 = vmatprep.subr.mxu0 0.0
    %2154 = vmatpush1.msra.mxu0 0.0
    %2155 = vmatprep.subr.mxu0 0.0
    %2156 = vmatpush1.msra.mxu0 0.0
    %2157 = vmatprep.subr.mxu0 0.0
    %2158 = vmatpush1.msra.mxu0 0.0
    %2159 = vmatprep.subr.mxu0 0.0
    %2160 = vmatpush1.msra.mxu0 %v2130
    %2161 = vmatprep.subr.mxu0 0.0
    %2162 = vmatpush1.msra.mxu0 %v2129
    %2163 = vmatprep.subr.mxu0 0.0
    %2164 = vmatpush1.msra.mxu0 %v2128
    %2165 = vmatprep.subr.mxu0 0.0
    %2166 = vmatpush1.msra.mxu0 %v2127
    %2167 = vmatprep.subr.mxu0 0.0
    %2168 = vmatpush2.msra.mxu0 0.0
    %2169 = vmatprep.subr.mxu0 0.0
    %2170 = vmatpush2.msra.mxu0 0.0
    %2171 = vmatprep.subr.mxu0 0.0
    %2172 = vmatpush2.msra.mxu0 0.0
    %2173 = vmatprep.subr.mxu0 0.0
    %2174 = vmatpush2.msra.mxu0 0.0
    %2175 = vmatprep.subr.mxu0 0.0
    %2176 = vmatpush2.msra.mxu0 0.0
    %2177 = vmatprep.subr.mxu0 0.0
    %2178 = vmatpush2.msra.mxu0 0.0
    %2179 = vmatprep.subr.mxu0 0.0
    %2180 = vmatpush2.msra.mxu0 0.0
    %2181 = vmatprep.subr.mxu0 0.0
    %2182 = vmatpush2.msra.mxu0 0.0
    %2183 = vmatprep.subr.mxu0 0.0
    %2184 = vmatpush2.msra.mxu0 0.0
    %2185 = vmatprep.subr.mxu0 0.0
    %2186 = vmatpush2.msra.mxu0 0.0
    %2187 = vmatprep.subr.mxu0 0.0
    %2188 = vmatpush2.msra.mxu0 0.0
    %2189 = vmatprep.subr.mxu0 0.0
    %2190 = vmatpush2.msra.mxu0 0.0
    %2191 = vmatprep.subr.mxu0 0.0
    %2192 = vmatpush2.msra.mxu0 0.0
    %2193 = vmatprep.subr.mxu0 0.0
    %2194 = vmatpush2.msra.mxu0 0.0
    %2195 = vmatprep.subr.mxu0 0.0
    %2196 = vmatpush2.msra.mxu0 0.0
    %2197 = vmatprep.subr.mxu0 0.0
    %2198 = vmatpush2.msra.mxu0 0.0
    %2199 = vmatprep.mubr.f32.mxu0 0.0
    %2200 = vmatmul.mubr.f32.gmra.mxu0 %v262
    %v2201 = vpop.f32.mrf.mxu0
    %v2202 = vadd.f32 0.0, %v2201
    %v2203 = vpop.f32.mrf.mxu0
    %2204 = vdwg.mxu0
    %v2205 = vadd.f32 %v2117, %v2202
    %v2206 = vxor.u32 %v2205, 2147483648
    %v2207 = vmul.f32 %v2206, 1.442695
    %v2208 = vpow.pop %v2207
    %v2209 = vadd.f32 %v2208, 1.0
    %v2210 = vrcp.pop %v2209
    %v2211 = vmul.f32 1.0, %v2210
    %v2212 = vtanh.pop %v2205
    %v2213 = vmul.f32 %v2211, 0.0
    %2215 = vrot.lane.b32.xlu0 %v2212, 64
    %v2216 = vpop.permute.xlu0 %2215
    %v2218 = vmul.f32 %v2211, %v2216
    %2220 = vrot.lane.b32.xlu0 %v2218, 32
    %v2221 = vpop.permute.xlu0 %2220
    %v2223 = vadd.f32 %v2213, %v2221
    %v2224 = vtanh.pop %v2223
    %2226 = vrot.lane.b32.xlu0 %v2224, 64
    %v2227 = vpop.permute.xlu0 %2226
    %v2229 = vmul.f32 %v2211, %v2227
    %2231 = vrot.lane.b32.xlu0 %v2229, 32
    %v2232 = vpop.permute.xlu0 %2231
    %2234 = vst.msk [vmem:[#allocation2] sm:$0x3] %vm363, %v2232
    %2235 = vmatprep.subr.mxu0 0.0
    %2236 = vmatpush1.msra.mxu0 0.0
    %2237 = vmatprep.subr.mxu0 0.0
    %2238 = vmatpush1.msra.mxu0 0.0
    %2239 = vmatprep.subr.mxu0 0.0
    %2240 = vmatpush1.msra.mxu0 0.0
    %2241 = vmatprep.subr.mxu0 0.0
    %2242 = vmatpush1.msra.mxu0 0.0
    %2243 = vmatprep.subr.mxu0 0.0
    %2244 = vmatpush1.msra.mxu0 0.0
    %2245 = vmatprep.subr.mxu0 0.0
    %2246 = vmatpush1.msra.mxu0 0.0
    %2247 = vmatprep.subr.mxu0 0.0
    %2248 = vmatpush1.msra.mxu0 0.0
    %2249 = vmatprep.subr.mxu0 0.0
    %2250 = vmatpush1.msra.mxu0 0.0
    %2251 = vmatprep.subr.mxu0 0.0
    %2252 = vmatpush1.msra.mxu0 0.0
    %2253 = vmatprep.subr.mxu0 0.0
    %2254 = vmatpush1.msra.mxu0 0.0
    %2255 = vmatprep.subr.mxu0 0.0
    %2256 = vmatpush1.msra.mxu0 0.0
    %2257 = vmatprep.subr.mxu0 0.0
    %2258 = vmatpush1.msra.mxu0 0.0
    %2259 = vmatprep.subr.mxu0 0.0
    %2260 = vmatpush1.msra.mxu0 %v2134
    %2261 = vmatprep.subr.mxu0 0.0
    %2262 = vmatpush1.msra.mxu0 %v2133
    %2263 = vmatprep.subr.mxu0 0.0
    %2264 = vmatpush1.msra.mxu0 %v2132
    %2265 = vmatprep.subr.mxu0 0.0
    %2266 = vmatpush1.msra.mxu0 %v2131
    %2267 = vmatprep.subr.mxu0 0.0
    %2268 = vmatpush2.msra.mxu0 0.0
    %2269 = vmatprep.subr.mxu0 0.0
    %2270 = vmatpush2.msra.mxu0 0.0
    %2271 = vmatprep.subr.mxu0 0.0
    %2272 = vmatpush2.msra.mxu0 0.0
    %2273 = vmatprep.subr.mxu0 0.0
    %2274 = vmatpush2.msra.mxu0 0.0
    %2275 = vmatprep.subr.mxu0 0.0
    %2276 = vmatpush2.msra.mxu0 0.0
    %2277 = vmatprep.subr.mxu0 0.0
    %2278 = vmatpush2.msra.mxu0 0.0
    %2279 = vmatprep.subr.mxu0 0.0
    %2280 = vmatpush2.msra.mxu0 0.0
    %2281 = vmatprep.subr.mxu0 0.0
    %2282 = vmatpush2.msra.mxu0 0.0
    %2283 = vmatprep.subr.mxu0 0.0
    %2284 = vmatpush2.msra.mxu0 0.0
    %2285 = vmatprep.subr.mxu0 0.0
    %2286 = vmatpush2.msra.mxu0 0.0
    %2287 = vmatprep.subr.mxu0 0.0
    %2288 = vmatpush2.msra.mxu0 0.0
    %2289 = vmatprep.subr.mxu0 0.0
    %2290 = vmatpush2.msra.mxu0 0.0
    %2291 = vmatprep.subr.mxu0 0.0
    %2292 = vmatpush2.msra.mxu0 0.0
    %2293 = vmatprep.subr.mxu0 0.0
    %2294 = vmatpush2.msra.mxu0 0.0
    %2295 = vmatprep.subr.mxu0 0.0
    %2296 = vmatpush2.msra.mxu0 0.0
    %2297 = vmatprep.subr.mxu0 0.0
    %2298 = vmatpush2.msra.mxu0 0.0
    %2299 = vmatprep.mubr.f32.mxu0 0.0
    %2300 = vmatmul.mubr.f32.gmra.mxu0 %v262
    %v2301 = vpop.f32.mrf.mxu0
    %v2302 = vadd.f32 0.0, %v2301
    %v2303 = vpop.f32.mrf.mxu0
    %2304 = vdwg.mxu0
    %v2306 = vrot.slane %v2302, 2
    %v2308 = vadd.f32 %v2125, %v2306
    %v2309 = vxor.u32 %v2308, 2147483648
    %v2310 = vmul.f32 %v2309, 1.442695
    %v2311 = vpow.pop %v2310
    %v2312 = vadd.f32 %v2311, 1.0
    %v2313 = vrcp.pop %v2312
    %v2314 = vmul.f32 1.0, %v2313
    %v2315 = vtanh.pop %v2308
    %v2316 = vmul.f32 %v2314, 0.0
    %2318 = vrot.lane.b32.xlu0 %v2315, 64
    %v2319 = vpop.permute.xlu0 %2318
    %v2321 = vmul.f32 %v2314, %v2319
    %2323 = vrot.lane.b32.xlu0 %v2321, 32
    %v2324 = vpop.permute.xlu0 %2323
    %v2326 = vadd.f32 %v2316, %v2324
    %v2327 = vtanh.pop %v2326
    %2329 = vrot.lane.b32.xlu0 %v2327, 64
    %v2330 = vpop.permute.xlu0 %2329
    %v2332 = vmul.f32 %v2314, %v2330
    %2334 = vrot.lane.b32.xlu0 %v2332, 64
    %v2335 = vpop.permute.xlu0 %2334
    %2337 = vst.msk [vmem:[#allocation2 + $0x8] sm:$0xc0] %vm467, %v2335
    %v2338 = vsel %vm169, %v2232, 0
    %2340 = vmatprep.subr.mxu0 0.0
    %2341 = vmatpush1.msra.mxu0 0.0
    %2342 = vmatprep.subr.mxu0 0.0
    %2343 = vmatpush1.msra.mxu0 0.0
    %2344 = vmatprep.subr.mxu0 0.0
    %2345 = vmatpush1.msra.mxu0 0.0
    %2346 = vmatprep.subr.mxu0 0.0
    %2347 = vmatpush1.msra.mxu0 0.0
    %2348 = vmatprep.subr.mxu0 0.0
    %2349 = vmatpush1.msra.mxu0 0.0
    %2350 = vmatprep.subr.mxu0 0.0
    %2351 = vmatpush1.msra.mxu0 0.0
    %2352 = vmatprep.subr.mxu0 0.0
    %2353 = vmatpush1.msra.mxu0 0.0
    %2354 = vmatprep.subr.mxu0 0.0
    %2355 = vmatpush1.msra.mxu0 0.0
    %2356 = vmatprep.subr.mxu0 0.0
    %2357 = vmatpush1.msra.mxu0 0.0
    %2358 = vmatprep.subr.mxu0 0.0
    %2359 = vmatpush1.msra.mxu0 0.0
    %2360 = vmatprep.subr.mxu0 0.0
    %2361 = vmatpush1.msra.mxu0 0.0
    %2362 = vmatprep.subr.mxu0 0.0
    %2363 = vmatpush1.msra.mxu0 0.0
    %2364 = vmatprep.subr.mxu0 0.0
    %2365 = vmatpush1.msra.mxu0 %v2130
    %2366 = vmatprep.subr.mxu0 0.0
    %2367 = vmatpush1.msra.mxu0 %v2129
    %2368 = vmatprep.subr.mxu0 0.0
    %2369 = vmatpush1.msra.mxu0 %v2128
    %2370 = vmatprep.subr.mxu0 0.0
    %2371 = vmatpush1.msra.mxu0 %v2127
    %2372 = vmatprep.subr.mxu0 0.0
    %2373 = vmatpush2.msra.mxu0 0.0
    %2374 = vmatprep.subr.mxu0 0.0
    %2375 = vmatpush2.msra.mxu0 0.0
    %2376 = vmatprep.subr.mxu0 0.0
    %2377 = vmatpush2.msra.mxu0 0.0
    %2378 = vmatprep.subr.mxu0 0.0
    %2379 = vmatpush2.msra.mxu0 0.0
    %2380 = vmatprep.subr.mxu0 0.0
    %2381 = vmatpush2.msra.mxu0 0.0
    %2382 = vmatprep.subr.mxu0 0.0
    %2383 = vmatpush2.msra.mxu0 0.0
    %2384 = vmatprep.subr.mxu0 0.0
    %2385 = vmatpush2.msra.mxu0 0.0
    %2386 = vmatprep.subr.mxu0 0.0
    %2387 = vmatpush2.msra.mxu0 0.0
    %2388 = vmatprep.subr.mxu0 0.0
    %2389 = vmatpush2.msra.mxu0 0.0
    %2390 = vmatprep.subr.mxu0 0.0
    %2391 = vmatpush2.msra.mxu0 0.0
    %2392 = vmatprep.subr.mxu0 0.0
    %2393 = vmatpush2.msra.mxu0 0.0
    %2394 = vmatprep.subr.mxu0 0.0
    %2395 = vmatpush2.msra.mxu0 0.0
    %2396 = vmatprep.subr.mxu0 0.0
    %2397 = vmatpush2.msra.mxu0 0.0
    %2398 = vmatprep.subr.mxu0 0.0
    %2399 = vmatpush2.msra.mxu0 0.0
    %2400 = vmatprep.subr.mxu0 0.0
    %2401 = vmatpush2.msra.mxu0 0.0
    %2402 = vmatprep.subr.mxu0 0.0
    %2403 = vmatpush2.msra.mxu0 0.0
    %2404 = vmatprep.mubr.f32.mxu0 0.0
    %2405 = vmatmul.mubr.f32.gmra.mxu0 %v2338
    %v2406 = vpop.f32.mrf.mxu0
    %v2407 = vadd.f32 0.0, %v2406
    %v2408 = vpop.f32.mrf.mxu0
    %2409 = vdwg.mxu0
    %v2411 = vrot.slane %v2407, 6
    %v2413 = vadd.f32 %v2117, %v2411
    %v2414 = vxor.u32 %v2413, 2147483648
    %v2415 = vmul.f32 %v2414, 1.442695
    %v2416 = vpow.pop %v2415
    %v2417 = vadd.f32 %v2416, 1.0
    %v2418 = vrcp.pop %v2417
    %v2419 = vmul.f32 1.0, %v2418
    %v2420 = vtanh.pop %v2413
    %v2422 = vrot.slane %v2223, 6
    %v2424 = vmul.f32 %v2419, %v2422
    %2426 = vrot.lane.b32.xlu0 %v2420, 64
    %v2427 = vpop.permute.xlu0 %2426
    %v2429 = vmul.f32 %v2419, %v2427
    %2431 = vrot.lane.b32.xlu0 %v2429, 32
    %v2432 = vpop.permute.xlu0 %2431
    %v2434 = vadd.f32 %v2424, %v2432
    %v2435 = vtanh.pop %v2434
    %2437 = vrot.lane.b32.xlu0 %v2435, 64
    %v2438 = vpop.permute.xlu0 %2437
    %v2440 = vmul.f32 %v2419, %v2438
    %2442 = vrot.lane.b32.xlu0 %v2440, 32
    %v2443 = vpop.permute.xlu0 %2442
    %2445 = vst.msk [vmem:[#allocation2] sm:$0xc] %vm576, %v2443
    %v2446 = vrot.slane %v2332, 6
    %2447 = vrot.lane.b32.xlu0 %v2446, 32
    %v2448 = vpop.permute.xlu0 %2447
    %v2449 = vsel %vm169, %v2448, 0
    %2451 = vmatprep.subr.mxu0 0.0
    %2452 = vmatpush1.msra.mxu0 0.0
    %2453 = vmatprep.subr.mxu0 0.0
    %2454 = vmatpush1.msra.mxu0 0.0
    %2455 = vmatprep.subr.mxu0 0.0
    %2456 = vmatpush1.msra.mxu0 0.0
    %2457 = vmatprep.subr.mxu0 0.0
    %2458 = vmatpush1.msra.mxu0 0.0
    %2459 = vmatprep.subr.mxu0 0.0
    %2460 = vmatpush1.msra.mxu0 0.0
    %2461 = vmatprep.subr.mxu0 0.0
    %2462 = vmatpush1.msra.mxu0 0.0
    %2463 = vmatprep.subr.mxu0 0.0
    %2464 = vmatpush1.msra.mxu0 0.0
    %2465 = vmatprep.subr.mxu0 0.0
    %2466 = vmatpush1.msra.mxu0 0.0
    %2467 = vmatprep.subr.mxu0 0.0
    %2468 = vmatpush1.msra.mxu0 0.0
    %2469 = vmatprep.subr.mxu0 0.0
    %2470 = vmatpush1.msra.mxu0 0.0
    %2471 = vmatprep.subr.mxu0 0.0
    %2472 = vmatpush1.msra.mxu0 0.0
    %2473 = vmatprep.subr.mxu0 0.0
    %2474 = vmatpush1.msra.mxu0 0.0
    %2475 = vmatprep.subr.mxu0 0.0
    %2476 = vmatpush1.msra.mxu0 %v2134
    %2477 = vmatprep.subr.mxu0 0.0
    %2478 = vmatpush1.msra.mxu0 %v2133
    %2479 = vmatprep.subr.mxu0 0.0
    %2480 = vmatpush1.msra.mxu0 %v2132
    %2481 = vmatprep.subr.mxu0 0.0
    %2482 = vmatpush1.msra.mxu0 %v2131
    %2483 = vmatprep.subr.mxu0 0.0
    %2484 = vmatpush2.msra.mxu0 0.0
    %2485 = vmatprep.subr.mxu0 0.0
    %2486 = vmatpush2.msra.mxu0 0.0
    %2487 = vmatprep.subr.mxu0 0.0
    %2488 = vmatpush2.msra.mxu0 0.0
    %2489 = vmatprep.subr.mxu0 0.0
    %2490 = vmatpush2.msra.mxu0 0.0
    %2491 = vmatprep.subr.mxu0 0.0
    %2492 = vmatpush2.msra.mxu0 0.0
    %2493 = vmatprep.subr.mxu0 0.0
    %2494 = vmatpush2.msra.mxu0 0.0
    %2495 = vmatprep.subr.mxu0 0.0
    %2496 = vmatpush2.msra.mxu0 0.0
    %2497 = vmatprep.subr.mxu0 0.0
    %2498 = vmatpush2.msra.mxu0 0.0
    %2499 = vmatprep.subr.mxu0 0.0
    %2500 = vmatpush2.msra.mxu0 0.0
    %2501 = vmatprep.subr.mxu0 0.0
    %2502 = vmatpush2.msra.mxu0 0.0
    %2503 = vmatprep.subr.mxu0 0.0
    %2504 = vmatpush2.msra.mxu0 0.0
    %2505 = vmatprep.subr.mxu0 0.0
    %2506 = vmatpush2.msra.mxu0 0.0
    %2507 = vmatprep.subr.mxu0 0.0
    %2508 = vmatpush2.msra.mxu0 0.0
    %2509 = vmatprep.subr.mxu0 0.0
    %2510 = vmatpush2.msra.mxu0 0.0
    %2511 = vmatprep.subr.mxu0 0.0
    %2512 = vmatpush2.msra.mxu0 0.0
    %2513 = vmatprep.subr.mxu0 0.0
    %2514 = vmatpush2.msra.mxu0 0.0
    %2515 = vmatprep.mubr.f32.mxu0 0.0
    %2516 = vmatmul.mubr.f32.gmra.mxu0 %v2449
    %v2517 = vpop.f32.mrf.mxu0
    %v2518 = vadd.f32 0.0, %v2517
    %v2519 = vpop.f32.mrf.mxu0
    %2520 = vdwg.mxu0
    %v2522 = vrot.slane %v2518, 4
    %v2524 = vadd.f32 %v2125, %v2522
    %v2525 = vxor.u32 %v2524, 2147483648
    %v2526 = vmul.f32 %v2525, 1.442695
    %v2527 = vpow.pop %v2526
    %v2528 = vadd.f32 %v2527, 1.0
    %v2529 = vrcp.pop %v2528
    %v2530 = vmul.f32 1.0, %v2529
    %v2531 = vtanh.pop %v2524
    %v2533 = vrot.slane %v2326, 2
    %v2535 = vmul.f32 %v2530, %v2533
    %2537 = vrot.lane.b32.xlu0 %v2531, 64
    %v2538 = vpop.permute.xlu0 %2537
    %v2540 = vmul.f32 %v2530, %v2538
    %2542 = vrot.lane.b32.xlu0 %v2540, 32
    %v2543 = vpop.permute.xlu0 %2542
    %v2545 = vadd.f32 %v2535, %v2543
    %v2546 = vtanh.pop %v2545
    %2548 = vrot.lane.b32.xlu0 %v2546, 64
    %v2549 = vpop.permute.xlu0 %2548
    %v2551 = vmul.f32 %v2530, %v2549
    %2553 = vrot.lane.b32.xlu0 %v2551, 64
    %v2554 = vpop.permute.xlu0 %2553
    %2556 = vst.msk [vmem:[#allocation2 + $0x8] sm:$0x30] %vm688, %v2554
    %v2557 = vrot.slane %v2440, 2
    %2558 = vrot.lane.b32.xlu0 %v2557, 32
    %v2559 = vpop.permute.xlu0 %2558
    %v2560 = vsel %vm169, %v2559, 0
    %2562 = vmatprep.subr.mxu0 0.0
    %2563 = vmatpush1.msra.mxu0 0.0
    %2564 = vmatprep.subr.mxu0 0.0
    %2565 = vmatpush1.msra.mxu0 0.0
    %2566 = vmatprep.subr.mxu0 0.0
    %2567 = vmatpush1.msra.mxu0 0.0
    %2568 = vmatprep.subr.mxu0 0.0
    %2569 = vmatpush1.msra.mxu0 0.0
    %2570 = vmatprep.subr.mxu0 0.0
    %2571 = vmatpush1.msra.mxu0 0.0
    %2572 = vmatprep.subr.mxu0 0.0
    %2573 = vmatpush1.msra.mxu0 0.0
    %2574 = vmatprep.subr.mxu0 0.0
    %2575 = vmatpush1.msra.mxu0 0.0
    %2576 = vmatprep.subr.mxu0 0.0
    %2577 = vmatpush1.msra.mxu0 0.0
    %2578 = vmatprep.subr.mxu0 0.0
    %2579 = vmatpush1.msra.mxu0 0.0
    %2580 = vmatprep.subr.mxu0 0.0
    %2581 = vmatpush1.msra.mxu0 0.0
    %2582 = vmatprep.subr.mxu0 0.0
    %2583 = vmatpush1.msra.mxu0 0.0
    %2584 = vmatprep.subr.mxu0 0.0
    %2585 = vmatpush1.msra.mxu0 0.0
    %2586 = vmatprep.subr.mxu0 0.0
    %2587 = vmatpush1.msra.mxu0 %v2130
    %2588 = vmatprep.subr.mxu0 0.0
    %2589 = vmatpush1.msra.mxu0 %v2129
    %2590 = vmatprep.subr.mxu0 0.0
    %2591 = vmatpush1.msra.mxu0 %v2128
    %2592 = vmatprep.subr.mxu0 0.0
    %2593 = vmatpush1.msra.mxu0 %v2127
    %2594 = vmatprep.subr.mxu0 0.0
    %2595 = vmatpush2.msra.mxu0 0.0
    %2596 = vmatprep.subr.mxu0 0.0
    %2597 = vmatpush2.msra.mxu0 0.0
    %2598 = vmatprep.subr.mxu0 0.0
    %2599 = vmatpush2.msra.mxu0 0.0
    %2600 = vmatprep.subr.mxu0 0.0
    %2601 = vmatpush2.msra.mxu0 0.0
    %2602 = vmatprep.subr.mxu0 0.0
    %2603 = vmatpush2.msra.mxu0 0.0
    %2604 = vmatprep.subr.mxu0 0.0
    %2605 = vmatpush2.msra.mxu0 0.0
    %2606 = vmatprep.subr.mxu0 0.0
    %2607 = vmatpush2.msra.mxu0 0.0
    %2608 = vmatprep.subr.mxu0 0.0
    %2609 = vmatpush2.msra.mxu0 0.0
    %2610 = vmatprep.subr.mxu0 0.0
    %2611 = vmatpush2.msra.mxu0 0.0
    %2612 = vmatprep.subr.mxu0 0.0
    %2613 = vmatpush2.msra.mxu0 0.0
    %2614 = vmatprep.subr.mxu0 0.0
    %2615 = vmatpush2.msra.mxu0 0.0
    %2616 = vmatprep.subr.mxu0 0.0
    %2617 = vmatpush2.msra.mxu0 0.0
    %2618 = vmatprep.subr.mxu0 0.0
    %2619 = vmatpush2.msra.mxu0 0.0
    %2620 = vmatprep.subr.mxu0 0.0
    %2621 = vmatpush2.msra.mxu0 0.0
    %2622 = vmatprep.subr.mxu0 0.0
    %2623 = vmatpush2.msra.mxu0 0.0
    %2624 = vmatprep.subr.mxu0 0.0
    %2625 = vmatpush2.msra.mxu0 0.0
    %2626 = vmatprep.mubr.f32.mxu0 0.0
    %2627 = vmatmul.mubr.f32.gmra.mxu0 %v2560
    %v2628 = vpop.f32.mrf.mxu0
    %v2629 = vadd.f32 0.0, %v2628
    %v2630 = vpop.f32.mrf.mxu0
    %2631 = vdwg.mxu0
    %v2633 = vrot.slane %v2629, 4
    %v2635 = vadd.f32 %v2117, %v2633
    %v2636 = vxor.u32 %v2635, 2147483648
    %v2637 = vmul.f32 %v2636, 1.442695
    %v2638 = vpow.pop %v2637
    %v2639 = vadd.f32 %v2638, 1.0
    %v2640 = vrcp.pop %v2639
    %v2641 = vmul.f32 1.0, %v2640
    %v2642 = vtanh.pop %v2635
    %v2644 = vrot.slane %v2434, 6
    %v2646 = vmul.f32 %v2641, %v2644
    %2648 = vrot.lane.b32.xlu0 %v2642, 64
    %v2649 = vpop.permute.xlu0 %2648
    %v2651 = vmul.f32 %v2641, %v2649
    %2653 = vrot.lane.b32.xlu0 %v2651, 32
    %v2654 = vpop.permute.xlu0 %2653
    %v2656 = vadd.f32 %v2646, %v2654
    %v2657 = vtanh.pop %v2656
    %2659 = vrot.lane.b32.xlu0 %v2657, 64
    %v2660 = vpop.permute.xlu0 %2659
    %v2662 = vmul.f32 %v2641, %v2660
    %2664 = vrot.lane.b32.xlu0 %v2662, 32
    %v2665 = vpop.permute.xlu0 %2664
    %2667 = vst.msk [vmem:[#allocation2] sm:$0x30] %vm800, %v2665
    %v2668 = vrot.slane %v2551, 4
    %2669 = vrot.lane.b32.xlu0 %v2668, 32
    %v2670 = vpop.permute.xlu0 %2669
    %v2671 = vsel %vm169, %v2670, 0
    %2673 = vmatprep.subr.mxu0 0.0
    %2674 = vmatpush1.msra.mxu0 0.0
    %2675 = vmatprep.subr.mxu0 0.0
    %2676 = vmatpush1.msra.mxu0 0.0
    %2677 = vmatprep.subr.mxu0 0.0
    %2678 = vmatpush1.msra.mxu0 0.0
    %2679 = vmatprep.subr.mxu0 0.0
    %2680 = vmatpush1.msra.mxu0 0.0
    %2681 = vmatprep.subr.mxu0 0.0
    %2682 = vmatpush1.msra.mxu0 0.0
    %2683 = vmatprep.subr.mxu0 0.0
    %2684 = vmatpush1.msra.mxu0 0.0
    %2685 = vmatprep.subr.mxu0 0.0
    %2686 = vmatpush1.msra.mxu0 0.0
    %2687 = vmatprep.subr.mxu0 0.0
    %2688 = vmatpush1.msra.mxu0 0.0
    %2689 = vmatprep.subr.mxu0 0.0
    %2690 = vmatpush1.msra.mxu0 0.0
    %2691 = vmatprep.subr.mxu0 0.0
    %2692 = vmatpush1.msra.mxu0 0.0
    %2693 = vmatprep.subr.mxu0 0.0
    %2694 = vmatpush1.msra.mxu0 0.0
    %2695 = vmatprep.subr.mxu0 0.0
    %2696 = vmatpush1.msra.mxu0 0.0
    %2697 = vmatprep.subr.mxu0 0.0
    %2698 = vmatpush1.msra.mxu0 %v2134
    %2699 = vmatprep.subr.mxu0 0.0
    %2700 = vmatpush1.msra.mxu0 %v2133
    %2701 = vmatprep.subr.mxu0 0.0
    %2702 = vmatpush1.msra.mxu0 %v2132
    %2703 = vmatprep.subr.mxu0 0.0
    %2704 = vmatpush1.msra.mxu0 %v2131
    %2705 = vmatprep.subr.mxu0 0.0
    %2706 = vmatpush2.msra.mxu0 0.0
    %2707 = vmatprep.subr.mxu0 0.0
    %2708 = vmatpush2.msra.mxu0 0.0
    %2709 = vmatprep.subr.mxu0 0.0
    %2710 = vmatpush2.msra.mxu0 0.0
    %2711 = vmatprep.subr.mxu0 0.0
    %2712 = vmatpush2.msra.mxu0 0.0
    %2713 = vmatprep.subr.mxu0 0.0
    %2714 = vmatpush2.msra.mxu0 0.0
    %2715 = vmatprep.subr.mxu0 0.0
    %2716 = vmatpush2.msra.mxu0 0.0
    %2717 = vmatprep.subr.mxu0 0.0
    %2718 = vmatpush2.msra.mxu0 0.0
    %2719 = vmatprep.subr.mxu0 0.0
    %2720 = vmatpush2.msra.mxu0 0.0
    %2721 = vmatprep.subr.mxu0 0.0
    %2722 = vmatpush2.msra.mxu0 0.0
    %2723 = vmatprep.subr.mxu0 0.0
    %2724 = vmatpush2.msra.mxu0 0.0
    %2725 = vmatprep.subr.mxu0 0.0
    %2726 = vmatpush2.msra.mxu0 0.0
    %2727 = vmatprep.subr.mxu0 0.0
    %2728 = vmatpush2.msra.mxu0 0.0
    %2729 = vmatprep.subr.mxu0 0.0
    %2730 = vmatpush2.msra.mxu0 0.0
    %2731 = vmatprep.subr.mxu0 0.0
    %2732 = vmatpush2.msra.mxu0 0.0
    %2733 = vmatprep.subr.mxu0 0.0
    %2734 = vmatpush2.msra.mxu0 0.0
    %2735 = vmatprep.subr.mxu0 0.0
    %2736 = vmatpush2.msra.mxu0 0.0
    %2737 = vmatprep.mubr.f32.mxu0 0.0
    %2738 = vmatmul.mubr.f32.gmra.mxu0 %v2671
    %v2739 = vpop.f32.mrf.mxu0
    %v2740 = vadd.f32 0.0, %v2739
    %v2741 = vpop.f32.mrf.mxu0
    %2742 = vdwg.mxu0
    %v2744 = vrot.slane %v2740, 6
    %v2746 = vadd.f32 %v2125, %v2744
    %v2747 = vxor.u32 %v2746, 2147483648
    %v2748 = vmul.f32 %v2747, 1.442695
    %v2749 = vpow.pop %v2748
    %v2750 = vadd.f32 %v2749, 1.0
    %v2751 = vrcp.pop %v2750
    %v2752 = vmul.f32 1.0, %v2751
    %v2753 = vtanh.pop %v2746
    %v2755 = vrot.slane %v2545, 2
    %v2757 = vmul.f32 %v2752, %v2755
    %2759 = vrot.lane.b32.xlu0 %v2753, 64
    %v2760 = vpop.permute.xlu0 %2759
    %v2762 = vmul.f32 %v2752, %v2760
    %2764 = vrot.lane.b32.xlu0 %v2762, 32
    %v2765 = vpop.permute.xlu0 %2764
    %v2767 = vadd.f32 %v2757, %v2765
    %v2768 = vtanh.pop %v2767
    %2770 = vrot.lane.b32.xlu0 %v2768, 64
    %v2771 = vpop.permute.xlu0 %2770
    %v2773 = vmul.f32 %v2752, %v2771
    %2775 = vrot.lane.b32.xlu0 %v2773, 64
    %v2776 = vpop.permute.xlu0 %2775
    %2778 = vst.msk [vmem:[#allocation2 + $0x8] sm:$0xc] %vm912, %v2776
    %v2779 = vrot.slane %v2662, 4
    %2780 = vrot.lane.b32.xlu0 %v2779, 32
    %v2781 = vpop.permute.xlu0 %2780
    %v2782 = vsel %vm169, %v2781, 0
    %2784 = vmatprep.subr.mxu0 0.0
    %2785 = vmatpush1.msra.mxu0 0.0
    %2786 = vmatprep.subr.mxu0 0.0
    %2787 = vmatpush1.msra.mxu0 0.0
    %2788 = vmatprep.subr.mxu0 0.0
    %2789 = vmatpush1.msra.mxu0 0.0
    %2790 = vmatprep.subr.mxu0 0.0
    %2791 = vmatpush1.msra.mxu0 0.0
    %2792 = vmatprep.subr.mxu0 0.0
    %2793 = vmatpush1.msra.mxu0 0.0
    %2794 = vmatprep.subr.mxu0 0.0
    %2795 = vmatpush1.msra.mxu0 0.0
    %2796 = vmatprep.subr.mxu0 0.0
    %2797 = vmatpush1.msra.mxu0 0.0
    %2798 = vmatprep.subr.mxu0 0.0
    %2799 = vmatpush1.msra.mxu0 0.0
    %2800 = vmatprep.subr.mxu0 0.0
    %2801 = vmatpush1.msra.mxu0 0.0
    %2802 = vmatprep.subr.mxu0 0.0
    %2803 = vmatpush1.msra.mxu0 0.0
    %2804 = vmatprep.subr.mxu0 0.0
    %2805 = vmatpush1.msra.mxu0 0.0
    %2806 = vmatprep.subr.mxu0 0.0
    %2807 = vmatpush1.msra.mxu0 0.0
    %2808 = vmatprep.subr.mxu0 0.0
    %2809 = vmatpush1.msra.mxu0 %v2130
    %2810 = vmatprep.subr.mxu0 0.0
    %2811 = vmatpush1.msra.mxu0 %v2129
    %2812 = vmatprep.subr.mxu0 0.0
    %2813 = vmatpush1.msra.mxu0 %v2128
    %2814 = vmatprep.subr.mxu0 0.0
    %2815 = vmatpush1.msra.mxu0 %v2127
    %2816 = vmatprep.subr.mxu0 0.0
    %2817 = vmatpush2.msra.mxu0 0.0
    %2818 = vmatprep.subr.mxu0 0.0
    %2819 = vmatpush2.msra.mxu0 0.0
    %2820 = vmatprep.subr.mxu0 0.0
    %2821 = vmatpush2.msra.mxu0 0.0
    %2822 = vmatprep.subr.mxu0 0.0
    %2823 = vmatpush2.msra.mxu0 0.0
    %2824 = vmatprep.subr.mxu0 0.0
    %2825 = vmatpush2.msra.mxu0 0.0
    %2826 = vmatprep.subr.mxu0 0.0
    %2827 = vmatpush2.msra.mxu0 0.0
    %2828 = vmatprep.subr.mxu0 0.0
    %2829 = vmatpush2.msra.mxu0 0.0
    %2830 = vmatprep.subr.mxu0 0.0
    %2831 = vmatpush2.msra.mxu0 0.0
    %2832 = vmatprep.subr.mxu0 0.0
    %2833 = vmatpush2.msra.mxu0 0.0
    %2834 = vmatprep.subr.mxu0 0.0
    %2835 = vmatpush2.msra.mxu0 0.0
    %2836 = vmatprep.subr.mxu0 0.0
    %2837 = vmatpush2.msra.mxu0 0.0
    %2838 = vmatprep.subr.mxu0 0.0
    %2839 = vmatpush2.msra.mxu0 0.0
    %2840 = vmatprep.subr.mxu0 0.0
    %2841 = vmatpush2.msra.mxu0 0.0
    %2842 = vmatprep.subr.mxu0 0.0
    %2843 = vmatpush2.msra.mxu0 0.0
    %2844 = vmatprep.subr.mxu0 0.0
    %2845 = vmatpush2.msra.mxu0 0.0
    %2846 = vmatprep.subr.mxu0 0.0
    %2847 = vmatpush2.msra.mxu0 0.0
    %2848 = vmatprep.mubr.f32.mxu0 0.0
    %2849 = vmatmul.mubr.f32.gmra.mxu0 %v2782
    %v2850 = vpop.f32.mrf.mxu0
    %v2851 = vadd.f32 0.0, %v2850
    %v2852 = vpop.f32.mrf.mxu0
    %2853 = vdwg.mxu0
    %v2855 = vrot.slane %v2851, 2
    %v2857 = vadd.f32 %v2117, %v2855
    %v2858 = vxor.u32 %v2857, 2147483648
    %v2859 = vmul.f32 %v2858, 1.442695
    %v2860 = vpow.pop %v2859
    %v2861 = vadd.f32 %v2860, 1.0
    %v2862 = vrcp.pop %v2861
    %v2863 = vmul.f32 1.0, %v2862
    %v2864 = vtanh.pop %v2857
    %v2866 = vrot.slane %v2656, 6
    %v2868 = vmul.f32 %v2863, %v2866
    %2870 = vrot.lane.b32.xlu0 %v2864, 64
    %v2871 = vpop.permute.xlu0 %2870
    %v2873 = vmul.f32 %v2863, %v2871
    %2875 = vrot.lane.b32.xlu0 %v2873, 32
    %v2876 = vpop.permute.xlu0 %2875
    %v2878 = vadd.f32 %v2868, %v2876
    %v2879 = vtanh.pop %v2878
    %2881 = vrot.lane.b32.xlu0 %v2879, 64
    %v2882 = vpop.permute.xlu0 %2881
    %v2884 = vmul.f32 %v2863, %v2882
    %2886 = vrot.lane.b32.xlu0 %v2884, 32
    %v2887 = vpop.permute.xlu0 %2886
    %2889 = vst.msk [vmem:[#allocation2] sm:$0xc0] %vm1024, %v2887
    %v2890 = vrot.slane %v2773, 2
    %2891 = vrot.lane.b32.xlu0 %v2890, 32
    %v2892 = vpop.permute.xlu0 %2891
    %v2893 = vsel %vm169, %v2892, 0
    %2895 = vmatprep.subr.mxu0 0.0
    %2896 = vmatpush1.msra.mxu0 0.0
    %2897 = vmatprep.subr.mxu0 0.0
    %2898 = vmatpush1.msra.mxu0 0.0
    %2899 = vmatprep.subr.mxu0 0.0
    %2900 = vmatpush1.msra.mxu0 0.0
    %2901 = vmatprep.subr.mxu0 0.0
    %2902 = vmatpush1.msra.mxu0 0.0
    %2903 = vmatprep.subr.mxu0 0.0
    %2904 = vmatpush1.msra.mxu0 0.0
    %2905 = vmatprep.subr.mxu0 0.0
    %2906 = vmatpush1.msra.mxu0 0.0
    %2907 = vmatprep.subr.mxu0 0.0
    %2908 = vmatpush1.msra.mxu0 0.0
    %2909 = vmatprep.subr.mxu0 0.0
    %2910 = vmatpush1.msra.mxu0 0.0
    %2911 = vmatprep.subr.mxu0 0.0
    %2912 = vmatpush1.msra.mxu0 0.0
    %2913 = vmatprep.subr.mxu0 0.0
    %2914 = vmatpush1.msra.mxu0 0.0
    %2915 = vmatprep.subr.mxu0 0.0
    %2916 = vmatpush1.msra.mxu0 0.0
    %2917 = vmatprep.subr.mxu0 0.0
    %2918 = vmatpush1.msra.mxu0 0.0
    %2919 = vmatprep.subr.mxu0 0.0
    %2920 = vmatpush1.msra.mxu0 %v2134
    %2921 = vmatprep.subr.mxu0 0.0
    %2922 = vmatpush1.msra.mxu0 %v2133
    %2923 = vmatprep.subr.mxu0 0.0
    %2924 = vmatpush1.msra.mxu0 %v2132
    %2925 = vmatprep.subr.mxu0 0.0
    %2926 = vmatpush1.msra.mxu0 %v2131
    %2927 = vmatprep.subr.mxu0 0.0
    %2928 = vmatpush2.msra.mxu0 0.0
    %2929 = vmatprep.subr.mxu0 0.0
    %2930 = vmatpush2.msra.mxu0 0.0
    %2931 = vmatprep.subr.mxu0 0.0
    %2932 = vmatpush2.msra.mxu0 0.0
    %2933 = vmatprep.subr.mxu0 0.0
    %2934 = vmatpush2.msra.mxu0 0.0
    %2935 = vmatprep.subr.mxu0 0.0
    %2936 = vmatpush2.msra.mxu0 0.0
    %2937 = vmatprep.subr.mxu0 0.0
    %2938 = vmatpush2.msra.mxu0 0.0
    %2939 = vmatprep.subr.mxu0 0.0
    %2940 = vmatpush2.msra.mxu0 0.0
    %2941 = vmatprep.subr.mxu0 0.0
    %2942 = vmatpush2.msra.mxu0 0.0
    %2943 = vmatprep.subr.mxu0 0.0
    %2944 = vmatpush2.msra.mxu0 0.0
    %2945 = vmatprep.subr.mxu0 0.0
    %2946 = vmatpush2.msra.mxu0 0.0
    %2947 = vmatprep.subr.mxu0 0.0
    %2948 = vmatpush2.msra.mxu0 0.0
    %2949 = vmatprep.subr.mxu0 0.0
    %2950 = vmatpush2.msra.mxu0 0.0
    %2951 = vmatprep.subr.mxu0 0.0
    %2952 = vmatpush2.msra.mxu0 0.0
    %2953 = vmatprep.subr.mxu0 0.0
    %2954 = vmatpush2.msra.mxu0 0.0
    %2955 = vmatprep.subr.mxu0 0.0
    %2956 = vmatpush2.msra.mxu0 0.0
    %2957 = vmatprep.subr.mxu0 0.0
    %2958 = vmatpush2.msra.mxu0 0.0
    %2959 = vmatprep.mubr.f32.mxu0 0.0
    %2960 = vmatmul.mubr.f32.gmra.mxu0 %v2893
    %v2961 = vpop.f32.mrf.mxu0
    %v2962 = vadd.f32 0.0, %v2961
    %v2963 = vpop.f32.mrf.mxu0
    %2964 = vdwg.mxu0
    %v2965 = vadd.f32 %v2125, %v2962
    %v2966 = vxor.u32 %v2965, 2147483648
    %v2967 = vmul.f32 %v2966, 1.442695
    %v2968 = vpow.pop %v2967
    %v2969 = vadd.f32 %v2968, 1.0
    %v2970 = vrcp.pop %v2969
    %v2971 = vmul.f32 1.0, %v2970
    %v2972 = vtanh.pop %v2965
    %v2974 = vrot.slane %v2767, 2
    %v2976 = vmul.f32 %v2971, %v2974
    %2978 = vrot.lane.b32.xlu0 %v2972, 64
    %v2979 = vpop.permute.xlu0 %2978
    %v2981 = vmul.f32 %v2971, %v2979
    %2983 = vrot.lane.b32.xlu0 %v2981, 32
    %v2984 = vpop.permute.xlu0 %2983
    %v2986 = vadd.f32 %v2976, %v2984
    %v2987 = vtanh.pop %v2986
    %2989 = vrot.lane.b32.xlu0 %v2987, 64
    %v2990 = vpop.permute.xlu0 %2989
    %v2992 = vmul.f32 %v2971, %v2990
    %2994 = vrot.lane.b32.xlu0 %v2992, 64
    %v2995 = vpop.permute.xlu0 %2994
    %2997 = vst.msk [vmem:[#allocation2 + $0x8] sm:$0x3] %vm1133, %v2995
    %v2998 = vrot.slane %v2884, 6
    %2999 = vrot.lane.b32.xlu0 %v2998, 32
    %v3000 = vpop.permute.xlu0 %2999
    %v3001 = vsel %vm169, %v3000, 0
    %3003 = vmatprep.subr.mxu0 0.0
    %3004 = vmatpush1.msra.mxu0 0.0
    %3005 = vmatprep.subr.mxu0 0.0
    %3006 = vmatpush1.msra.mxu0 0.0
    %3007 = vmatprep.subr.mxu0 0.0
    %3008 = vmatpush1.msra.mxu0 0.0
    %3009 = vmatprep.subr.mxu0 0.0
    %3010 = vmatpush1.msra.mxu0 0.0
    %3011 = vmatprep.subr.mxu0 0.0
    %3012 = vmatpush1.msra.mxu0 0.0
    %3013 = vmatprep.subr.mxu0 0.0
    %3014 = vmatpush1.msra.mxu0 0.0
    %3015 = vmatprep.subr.mxu0 0.0
    %3016 = vmatpush1.msra.mxu0 0.0
    %3017 = vmatprep.subr.mxu0 0.0
    %3018 = vmatpush1.msra.mxu0 0.0
    %3019 = vmatprep.subr.mxu0 0.0
    %3020 = vmatpush1.msra.mxu0 0.0
    %3021 = vmatprep.subr.mxu0 0.0
    %3022 = vmatpush1.msra.mxu0 0.0
    %3023 = vmatprep.subr.mxu0 0.0
    %3024 = vmatpush1.msra.mxu0 0.0
    %3025 = vmatprep.subr.mxu0 0.0
    %3026 = vmatpush1.msra.mxu0 0.0
    %3027 = vmatprep.subr.mxu0 0.0
    %3028 = vmatpush1.msra.mxu0 %v2130
    %3029 = vmatprep.subr.mxu0 0.0
    %3030 = vmatpush1.msra.mxu0 %v2129
    %3031 = vmatprep.subr.mxu0 0.0
    %3032 = vmatpush1.msra.mxu0 %v2128
    %3033 = vmatprep.subr.mxu0 0.0
    %3034 = vmatpush1.msra.mxu0 %v2127
    %3035 = vmatprep.subr.mxu0 0.0
    %3036 = vmatpush2.msra.mxu0 0.0
    %3037 = vmatprep.subr.mxu0 0.0
    %3038 = vmatpush2.msra.mxu0 0.0
    %3039 = vmatprep.subr.mxu0 0.0
    %3040 = vmatpush2.msra.mxu0 0.0
    %3041 = vmatprep.subr.mxu0 0.0
    %3042 = vmatpush2.msra.mxu0 0.0
    %3043 = vmatprep.subr.mxu0 0.0
    %3044 = vmatpush2.msra.mxu0 0.0
    %3045 = vmatprep.subr.mxu0 0.0
    %3046 = vmatpush2.msra.mxu0 0.0
    %3047 = vmatprep.subr.mxu0 0.0
    %3048 = vmatpush2.msra.mxu0 0.0
    %3049 = vmatprep.subr.mxu0 0.0
    %3050 = vmatpush2.msra.mxu0 0.0
    %3051 = vmatprep.subr.mxu0 0.0
    %3052 = vmatpush2.msra.mxu0 0.0
    %3053 = vmatprep.subr.mxu0 0.0
    %3054 = vmatpush2.msra.mxu0 0.0
    %3055 = vmatprep.subr.mxu0 0.0
    %3056 = vmatpush2.msra.mxu0 0.0
    %3057 = vmatprep.subr.mxu0 0.0
    %3058 = vmatpush2.msra.mxu0 0.0
    %3059 = vmatprep.subr.mxu0 0.0
    %3060 = vmatpush2.msra.mxu0 0.0
    %3061 = vmatprep.subr.mxu0 0.0
    %3062 = vmatpush2.msra.mxu0 0.0
    %3063 = vmatprep.subr.mxu0 0.0
    %3064 = vmatpush2.msra.mxu0 0.0
    %3065 = vmatprep.subr.mxu0 0.0
    %3066 = vmatpush2.msra.mxu0 0.0
    %3067 = vmatprep.mubr.f32.mxu0 0.0
    %3068 = vmatmul.mubr.f32.gmra.mxu0 %v3001
    %v3069 = vpop.f32.mrf.mxu0
    %v3070 = vadd.f32 0.0, %v3069
    %v3071 = vpop.f32.mrf.mxu0
    %3072 = vdwg.mxu0
    %v3073 = vadd.f32 %v2123, %v3070
    %v3074 = vxor.u32 %v3073, 2147483648
    %v3075 = vmul.f32 %v3074, 1.442695
    %v3076 = vpow.pop %v3075
    %v3077 = vadd.f32 %v3076, 1.0
    %v3078 = vrcp.pop %v3077
    %v3079 = vmul.f32 1.0, %v3078
    %v3080 = vtanh.pop %v3073
    %v3082 = vrot.slane %v2878, 6
    %v3084 = vmul.f32 %v3079, %v3082
    %3086 = vrot.lane.b32.xlu0 %v3080, 64
    %v3087 = vpop.permute.xlu0 %3086
    %v3089 = vmul.f32 %v3079, %v3087
    %3091 = vrot.lane.b32.xlu0 %v3089, 32
    %v3092 = vpop.permute.xlu0 %3091
    %v3094 = vadd.f32 %v3084, %v3092
    %v3095 = vtanh.pop %v3094
    %3097 = vrot.lane.b32.xlu0 %v3095, 64
    %v3098 = vpop.permute.xlu0 %3097
    %v3100 = vmul.f32 %v3079, %v3098
    %3102 = vrot.lane.b32.xlu0 %v3100, 32
    %v3103 = vpop.permute.xlu0 %3102
    %3105 = vst.msk [vmem:[#allocation2 + $0x8] sm:$0x3] %vm363, %v3103
    %3106 = vrot.lane.b32.xlu0 %v2992, 32
    %v3107 = vpop.permute.xlu0 %3106
    %v3108 = vsel %vm169, %v3107, 0
    %3110 = vmatprep.subr.mxu0 0.0
    %3111 = vmatpush1.msra.mxu0 0.0
    %3112 = vmatprep.subr.mxu0 0.0
    %3113 = vmatpush1.msra.mxu0 0.0
    %3114 = vmatprep.subr.mxu0 0.0
    %3115 = vmatpush1.msra.mxu0 0.0
    %3116 = vmatprep.subr.mxu0 0.0
    %3117 = vmatpush1.msra.mxu0 0.0
    %3118 = vmatprep.subr.mxu0 0.0
    %3119 = vmatpush1.msra.mxu0 0.0
    %3120 = vmatprep.subr.mxu0 0.0
    %3121 = vmatpush1.msra.mxu0 0.0
    %3122 = vmatprep.subr.mxu0 0.0
    %3123 = vmatpush1.msra.mxu0 0.0
    %3124 = vmatprep.subr.mxu0 0.0
    %3125 = vmatpush1.msra.mxu0 0.0
    %3126 = vmatprep.subr.mxu0 0.0
    %3127 = vmatpush1.msra.mxu0 0.0
    %3128 = vmatprep.subr.mxu0 0.0
    %3129 = vmatpush1.msra.mxu0 0.0
    %3130 = vmatprep.subr.mxu0 0.0
    %3131 = vmatpush1.msra.mxu0 0.0
    %3132 = vmatprep.subr.mxu0 0.0
    %3133 = vmatpush1.msra.mxu0 0.0
    %3134 = vmatprep.subr.mxu0 0.0
    %3135 = vmatpush1.msra.mxu0 %v2134
    %3136 = vmatprep.subr.mxu0 0.0
    %3137 = vmatpush1.msra.mxu0 %v2133
    %3138 = vmatprep.subr.mxu0 0.0
    %3139 = vmatpush1.msra.mxu0 %v2132
    %3140 = vmatprep.subr.mxu0 0.0
    %3141 = vmatpush1.msra.mxu0 %v2131
    %3142 = vmatprep.subr.mxu0 0.0
    %3143 = vmatpush2.msra.mxu0 0.0
    %3144 = vmatprep.subr.mxu0 0.0
    %3145 = vmatpush2.msra.mxu0 0.0
    %3146 = vmatprep.subr.mxu0 0.0
    %3147 = vmatpush2.msra.mxu0 0.0
    %3148 = vmatprep.subr.mxu0 0.0
    %3149 = vmatpush2.msra.mxu0 0.0
    %3150 = vmatprep.subr.mxu0 0.0
    %3151 = vmatpush2.msra.mxu0 0.0
    %3152 = vmatprep.subr.mxu0 0.0
    %3153 = vmatpush2.msra.mxu0 0.0
    %3154 = vmatprep.subr.mxu0 0.0
    %3155 = vmatpush2.msra.mxu0 0.0
    %3156 = vmatprep.subr.mxu0 0.0
    %3157 = vmatpush2.msra.mxu0 0.0
    %3158 = vmatprep.subr.mxu0 0.0
    %3159 = vmatpush2.msra.mxu0 0.0
    %3160 = vmatprep.subr.mxu0 0.0
    %3161 = vmatpush2.msra.mxu0 0.0
    %3162 = vmatprep.subr.mxu0 0.0
    %3163 = vmatpush2.msra.mxu0 0.0
    %3164 = vmatprep.subr.mxu0 0.0
    %3165 = vmatpush2.msra.mxu0 0.0
    %3166 = vmatprep.subr.mxu0 0.0
    %3167 = vmatpush2.msra.mxu0 0.0
    %3168 = vmatprep.subr.mxu0 0.0
    %3169 = vmatpush2.msra.mxu0 0.0
    %3170 = vmatprep.subr.mxu0 0.0
    %3171 = vmatpush2.msra.mxu0 0.0
    %3172 = vmatprep.subr.mxu0 0.0
    %3173 = vmatpush2.msra.mxu0 0.0
    %3174 = vmatprep.mubr.f32.mxu0 0.0
    %3175 = vmatmul.mubr.f32.gmra.mxu0 %v3108
    %v3176 = vpop.f32.mrf.mxu0
    %v3177 = vadd.f32 0.0, %v3176
    %v3178 = vpop.f32.mrf.mxu0
    %3179 = vdwg.mxu0
    %v3181 = vrot.slane %v3177, 2
    %v3183 = vadd.f32 %v2119, %v3181
    %v3184 = vxor.u32 %v3183, 2147483648
    %v3185 = vmul.f32 %v3184, 1.442695
    %v3186 = vpow.pop %v3185
    %v3187 = vadd.f32 %v3186, 1.0
    %v3188 = vrcp.pop %v3187
    %v3189 = vmul.f32 1.0, %v3188
    %v3190 = vtanh.pop %v3183
    %v3192 = vrot.slane %v2986, 2
    %v3194 = vmul.f32 %v3189, %v3192
    %3196 = vrot.lane.b32.xlu0 %v3190, 64
    %v3197 = vpop.permute.xlu0 %3196
    %v3199 = vmul.f32 %v3189, %v3197
    %3201 = vrot.lane.b32.xlu0 %v3199, 32
    %v3202 = vpop.permute.xlu0 %3201
    %v3204 = vadd.f32 %v3194, %v3202
    %v3205 = vtanh.pop %v3204
    %3207 = vrot.lane.b32.xlu0 %v3205, 64
    %v3208 = vpop.permute.xlu0 %3207
    %v3210 = vmul.f32 %v3189, %v3208
    %3212 = vrot.lane.b32.xlu0 %v3210, 64
    %v3213 = vpop.permute.xlu0 %3212
    %3215 = vst.msk [vmem:[#allocation2] sm:$0xc0] %vm467, %v3213
    %v3216 = vsel %vm169, %v3103, 0
    %3218 = vmatprep.subr.mxu0 0.0
    %3219 = vmatpush1.msra.mxu0 0.0
    %3220 = vmatprep.subr.mxu0 0.0
    %3221 = vmatpush1.msra.mxu0 0.0
    %3222 = vmatprep.subr.mxu0 0.0
    %3223 = vmatpush1.msra.mxu0 0.0
    %3224 = vmatprep.subr.mxu0 0.0
    %3225 = vmatpush1.msra.mxu0 0.0
    %3226 = vmatprep.subr.mxu0 0.0
    %3227 = vmatpush1.msra.mxu0 0.0
    %3228 = vmatprep.subr.mxu0 0.0
    %3229 = vmatpush1.msra.mxu0 0.0
    %3230 = vmatprep.subr.mxu0 0.0
    %3231 = vmatpush1.msra.mxu0 0.0
    %3232 = vmatprep.subr.mxu0 0.0
    %3233 = vmatpush1.msra.mxu0 0.0
    %3234 = vmatprep.subr.mxu0 0.0
    %3235 = vmatpush1.msra.mxu0 0.0
    %3236 = vmatprep.subr.mxu0 0.0
    %3237 = vmatpush1.msra.mxu0 0.0
    %3238 = vmatprep.subr.mxu0 0.0
    %3239 = vmatpush1.msra.mxu0 0.0
    %3240 = vmatprep.subr.mxu0 0.0
    %3241 = vmatpush1.msra.mxu0 0.0
    %3242 = vmatprep.subr.mxu0 0.0
    %3243 = vmatpush1.msra.mxu0 %v2130
    %3244 = vmatprep.subr.mxu0 0.0
    %3245 = vmatpush1.msra.mxu0 %v2129
    %3246 = vmatprep.subr.mxu0 0.0
    %3247 = vmatpush1.msra.mxu0 %v2128
    %3248 = vmatprep.subr.mxu0 0.0
    %3249 = vmatpush1.msra.mxu0 %v2127
    %3250 = vmatprep.subr.mxu0 0.0
    %3251 = vmatpush2.msra.mxu0 0.0
    %3252 = vmatprep.subr.mxu0 0.0
    %3253 = vmatpush2.msra.mxu0 0.0
    %3254 = vmatprep.subr.mxu0 0.0
    %3255 = vmatpush2.msra.mxu0 0.0
    %3256 = vmatprep.subr.mxu0 0.0
    %3257 = vmatpush2.msra.mxu0 0.0
    %3258 = vmatprep.subr.mxu0 0.0
    %3259 = vmatpush2.msra.mxu0 0.0
    %3260 = vmatprep.subr.mxu0 0.0
    %3261 = vmatpush2.msra.mxu0 0.0
    %3262 = vmatprep.subr.mxu0 0.0
    %3263 = vmatpush2.msra.mxu0 0.0
    %3264 = vmatprep.subr.mxu0 0.0
    %3265 = vmatpush2.msra.mxu0 0.0
    %3266 = vmatprep.subr.mxu0 0.0
    %3267 = vmatpush2.msra.mxu0 0.0
    %3268 = vmatprep.subr.mxu0 0.0
    %3269 = vmatpush2.msra.mxu0 0.0
    %3270 = vmatprep.subr.mxu0 0.0
    %3271 = vmatpush2.msra.mxu0 0.0
    %3272 = vmatprep.subr.mxu0 0.0
    %3273 = vmatpush2.msra.mxu0 0.0
    %3274 = vmatprep.subr.mxu0 0.0
    %3275 = vmatpush2.msra.mxu0 0.0
    %3276 = vmatprep.subr.mxu0 0.0
    %3277 = vmatpush2.msra.mxu0 0.0
    %3278 = vmatprep.subr.mxu0 0.0
    %3279 = vmatpush2.msra.mxu0 0.0
    %3280 = vmatprep.subr.mxu0 0.0
    %3281 = vmatpush2.msra.mxu0 0.0
    %3282 = vmatprep.mubr.f32.mxu0 0.0
    %3283 = vmatmul.mubr.f32.gmra.mxu0 %v3216
    %v3284 = vpop.f32.mrf.mxu0
    %v3285 = vadd.f32 0.0, %v3284
    %v3286 = vpop.f32.mrf.mxu0
    %3287 = vdwg.mxu0
    %v3289 = vrot.slane %v3285, 6
    %v3291 = vadd.f32 %v2123, %v3289
    %v3292 = vxor.u32 %v3291, 2147483648
    %v3293 = vmul.f32 %v3292, 1.442695
    %v3294 = vpow.pop %v3293
    %v3295 = vadd.f32 %v3294, 1.0
    %v3296 = vrcp.pop %v3295
    %v3297 = vmul.f32 1.0, %v3296
    %v3298 = vtanh.pop %v3291
    %v3300 = vrot.slane %v3094, 6
    %v3302 = vmul.f32 %v3297, %v3300
    %3304 = vrot.lane.b32.xlu0 %v3298, 64
    %v3305 = vpop.permute.xlu0 %3304
    %v3307 = vmul.f32 %v3297, %v3305
    %3309 = vrot.lane.b32.xlu0 %v3307, 32
    %v3310 = vpop.permute.xlu0 %3309
    %v3312 = vadd.f32 %v3302, %v3310
    %v3313 = vtanh.pop %v3312
    %3315 = vrot.lane.b32.xlu0 %v3313, 64
    %v3316 = vpop.permute.xlu0 %3315
    %v3318 = vmul.f32 %v3297, %v3316
    %3320 = vrot.lane.b32.xlu0 %v3318, 32
    %v3321 = vpop.permute.xlu0 %3320
    %3323 = vst.msk [vmem:[#allocation2 + $0x8] sm:$0xc] %vm576, %v3321
    %v3324 = vrot.slane %v3210, 6
    %3325 = vrot.lane.b32.xlu0 %v3324, 32
    %v3326 = vpop.permute.xlu0 %3325
    %v3327 = vsel %vm169, %v3326, 0
    %3329 = vmatprep.subr.mxu0 0.0
    %3330 = vmatpush1.msra.mxu0 0.0
    %3331 = vmatprep.subr.mxu0 0.0
    %3332 = vmatpush1.msra.mxu0 0.0
    %3333 = vmatprep.subr.mxu0 0.0
    %3334 = vmatpush1.msra.mxu0 0.0
    %3335 = vmatprep.subr.mxu0 0.0
    %3336 = vmatpush1.msra.mxu0 0.0
    %3337 = vmatprep.subr.mxu0 0.0
    %3338 = vmatpush1.msra.mxu0 0.0
    %3339 = vmatprep.subr.mxu0 0.0
    %3340 = vmatpush1.msra.mxu0 0.0
    %3341 = vmatprep.subr.mxu0 0.0
    %3342 = vmatpush1.msra.mxu0 0.0
    %3343 = vmatprep.subr.mxu0 0.0
    %3344 = vmatpush1.msra.mxu0 0.0
    %3345 = vmatprep.subr.mxu0 0.0
    %3346 = vmatpush1.msra.mxu0 0.0
    %3347 = vmatprep.subr.mxu0 0.0
    %3348 = vmatpush1.msra.mxu0 0.0
    %3349 = vmatprep.subr.mxu0 0.0
    %3350 = vmatpush1.msra.mxu0 0.0
    %3351 = vmatprep.subr.mxu0 0.0
    %3352 = vmatpush1.msra.mxu0 0.0
    %3353 = vmatprep.subr.mxu0 0.0
    %3354 = vmatpush1.msra.mxu0 %v2134
    %3355 = vmatprep.subr.mxu0 0.0
    %3356 = vmatpush1.msra.mxu0 %v2133
    %3357 = vmatprep.subr.mxu0 0.0
    %3358 = vmatpush1.msra.mxu0 %v2132
    %3359 = vmatprep.subr.mxu0 0.0
    %3360 = vmatpush1.msra.mxu0 %v2131
    %3361 = vmatprep.subr.mxu0 0.0
    %3362 = vmatpush2.msra.mxu0 0.0
    %3363 = vmatprep.subr.mxu0 0.0
    %3364 = vmatpush2.msra.mxu0 0.0
    %3365 = vmatprep.subr.mxu0 0.0
    %3366 = vmatpush2.msra.mxu0 0.0
    %3367 = vmatprep.subr.mxu0 0.0
    %3368 = vmatpush2.msra.mxu0 0.0
    %3369 = vmatprep.subr.mxu0 0.0
    %3370 = vmatpush2.msra.mxu0 0.0
    %3371 = vmatprep.subr.mxu0 0.0
    %3372 = vmatpush2.msra.mxu0 0.0
    %3373 = vmatprep.subr.mxu0 0.0
    %3374 = vmatpush2.msra.mxu0 0.0
    %3375 = vmatprep.subr.mxu0 0.0
    %3376 = vmatpush2.msra.mxu0 0.0
    %3377 = vmatprep.subr.mxu0 0.0
    %3378 = vmatpush2.msra.mxu0 0.0
    %3379 = vmatprep.subr.mxu0 0.0
    %3380 = vmatpush2.msra.mxu0 0.0
    %3381 = vmatprep.subr.mxu0 0.0
    %3382 = vmatpush2.msra.mxu0 0.0
    %3383 = vmatprep.subr.mxu0 0.0
    %3384 = vmatpush2.msra.mxu0 0.0
    %3385 = vmatprep.subr.mxu0 0.0
    %3386 = vmatpush2.msra.mxu0 0.0
    %3387 = vmatprep.subr.mxu0 0.0
    %3388 = vmatpush2.msra.mxu0 0.0
    %3389 = vmatprep.subr.mxu0 0.0
    %3390 = vmatpush2.msra.mxu0 0.0
    %3391 = vmatprep.subr.mxu0 0.0
    %3392 = vmatpush2.msra.mxu0 0.0
    %3393 = vmatprep.mubr.f32.mxu0 0.0
    %3394 = vmatmul.mubr.f32.gmra.mxu0 %v3327
    %v3395 = vpop.f32.mrf.mxu0
    %v3396 = vadd.f32 0.0, %v3395
    %v3397 = vpop.f32.mrf.mxu0
    %3398 = vdwg.mxu0
    %v3400 = vrot.slane %v3396, 4
    %v3402 = vadd.f32 %v2119, %v3400
    %v3403 = vxor.u32 %v3402, 2147483648
    %v3404 = vmul.f32 %v3403, 1.442695
    %v3405 = vpow.pop %v3404
    %v3406 = vadd.f32 %v3405, 1.0
    %v3407 = vrcp.pop %v3406
    %v3408 = vmul.f32 1.0, %v3407
    %v3409 = vtanh.pop %v3402
    %v3411 = vrot.slane %v3204, 2
    %v3413 = vmul.f32 %v3408, %v3411
    %3415 = vrot.lane.b32.xlu0 %v3409, 64
    %v3416 = vpop.permute.xlu0 %3415
    %v3418 = vmul.f32 %v3408, %v3416
    %3420 = vrot.lane.b32.xlu0 %v3418, 32
    %v3421 = vpop.permute.xlu0 %3420
    %v3423 = vadd.f32 %v3413, %v3421
    %v3424 = vtanh.pop %v3423
    %3426 = vrot.lane.b32.xlu0 %v3424, 64
    %v3427 = vpop.permute.xlu0 %3426
    %v3429 = vmul.f32 %v3408, %v3427
    %3431 = vrot.lane.b32.xlu0 %v3429, 64
    %v3432 = vpop.permute.xlu0 %3431
    %3434 = vst.msk [vmem:[#allocation2] sm:$0x30] %vm688, %v3432
    %v3435 = vrot.slane %v3318, 2
    %3436 = vrot.lane.b32.xlu0 %v3435, 32
    %v3437 = vpop.permute.xlu0 %3436
    %v3438 = vsel %vm169, %v3437, 0
    %3440 = vmatprep.subr.mxu0 0.0
    %3441 = vmatpush1.msra.mxu0 0.0
    %3442 = vmatprep.subr.mxu0 0.0
    %3443 = vmatpush1.msra.mxu0 0.0
    %3444 = vmatprep.subr.mxu0 0.0
    %3445 = vmatpush1.msra.mxu0 0.0
    %3446 = vmatprep.subr.mxu0 0.0
    %3447 = vmatpush1.msra.mxu0 0.0
    %3448 = vmatprep.subr.mxu0 0.0
    %3449 = vmatpush1.msra.mxu0 0.0
    %3450 = vmatprep.subr.mxu0 0.0
    %3451 = vmatpush1.msra.mxu0 0.0
    %3452 = vmatprep.subr.mxu0 0.0
    %3453 = vmatpush1.msra.mxu0 0.0
    %3454 = vmatprep.subr.mxu0 0.0
    %3455 = vmatpush1.msra.mxu0 0.0
    %3456 = vmatprep.subr.mxu0 0.0
    %3457 = vmatpush1.msra.mxu0 0.0
    %3458 = vmatprep.subr.mxu0 0.0
    %3459 = vmatpush1.msra.mxu0 0.0
    %3460 = vmatprep.subr.mxu0 0.0
    %3461 = vmatpush1.msra.mxu0 0.0
    %3462 = vmatprep.subr.mxu0 0.0
    %3463 = vmatpush1.msra.mxu0 0.0
    %3464 = vmatprep.subr.mxu0 0.0
    %3465 = vmatpush1.msra.mxu0 %v2130
    %3466 = vmatprep.subr.mxu0 0.0
    %3467 = vmatpush1.msra.mxu0 %v2129
    %3468 = vmatprep.subr.mxu0 0.0
    %3469 = vmatpush1.msra.mxu0 %v2128
    %3470 = vmatprep.subr.mxu0 0.0
    %3471 = vmatpush1.msra.mxu0 %v2127
    %3472 = vmatprep.subr.mxu0 0.0
    %3473 = vmatpush2.msra.mxu0 0.0
    %3474 = vmatprep.subr.mxu0 0.0
    %3475 = vmatpush2.msra.mxu0 0.0
    %3476 = vmatprep.subr.mxu0 0.0
    %3477 = vmatpush2.msra.mxu0 0.0
    %3478 = vmatprep.subr.mxu0 0.0
    %3479 = vmatpush2.msra.mxu0 0.0
    %3480 = vmatprep.subr.mxu0 0.0
    %3481 = vmatpush2.msra.mxu0 0.0
    %3482 = vmatprep.subr.mxu0 0.0
    %3483 = vmatpush2.msra.mxu0 0.0
    %3484 = vmatprep.subr.mxu0 0.0
    %3485 = vmatpush2.msra.mxu0 0.0
    %3486 = vmatprep.subr.mxu0 0.0
    %3487 = vmatpush2.msra.mxu0 0.0
    %3488 = vmatprep.subr.mxu0 0.0
    %3489 = vmatpush2.msra.mxu0 0.0
    %3490 = vmatprep.subr.mxu0 0.0
    %3491 = vmatpush2.msra.mxu0 0.0
    %3492 = vmatprep.subr.mxu0 0.0
    %3493 = vmatpush2.msra.mxu0 0.0
    %3494 = vmatprep.subr.mxu0 0.0
    %3495 = vmatpush2.msra.mxu0 0.0
    %3496 = vmatprep.subr.mxu0 0.0
    %3497 = vmatpush2.msra.mxu0 0.0
    %3498 = vmatprep.subr.mxu0 0.0
    %3499 = vmatpush2.msra.mxu0 0.0
    %3500 = vmatprep.subr.mxu0 0.0
    %3501 = vmatpush2.msra.mxu0 0.0
    %3502 = vmatprep.subr.mxu0 0.0
    %3503 = vmatpush2.msra.mxu0 0.0
    %3504 = vmatprep.mubr.f32.mxu0 0.0
    %3505 = vmatmul.mubr.f32.gmra.mxu0 %v3438
    %v3506 = vpop.f32.mrf.mxu0
    %v3507 = vadd.f32 0.0, %v3506
    %v3508 = vpop.f32.mrf.mxu0
    %3509 = vdwg.mxu0
    %v3511 = vrot.slane %v3507, 4
    %v3513 = vadd.f32 %v2123, %v3511
    %v3514 = vxor.u32 %v3513, 2147483648
    %v3515 = vmul.f32 %v3514, 1.442695
    %v3516 = vpow.pop %v3515
    %v3517 = vadd.f32 %v3516, 1.0
    %v3518 = vrcp.pop %v3517
    %v3519 = vmul.f32 1.0, %v3518
    %v3520 = vtanh.pop %v3513
    %v3522 = vrot.slane %v3312, 6
    %v3524 = vmul.f32 %v3519, %v3522
    %3526 = vrot.lane.b32.xlu0 %v3520, 64
    %v3527 = vpop.permute.xlu0 %3526
    %v3529 = vmul.f32 %v3519, %v3527
    %3531 = vrot.lane.b32.xlu0 %v3529, 32
    %v3532 = vpop.permute.xlu0 %3531
    %v3534 = vadd.f32 %v3524, %v3532
    %v3535 = vtanh.pop %v3534
    %3537 = vrot.lane.b32.xlu0 %v3535, 64
    %v3538 = vpop.permute.xlu0 %3537
    %v3540 = vmul.f32 %v3519, %v3538
    %3542 = vrot.lane.b32.xlu0 %v3540, 32
    %v3543 = vpop.permute.xlu0 %3542
    %3545 = vst.msk [vmem:[#allocation2 + $0x8] sm:$0x30] %vm800, %v3543
    %v3546 = vrot.slane %v3429, 4
    %3547 = vrot.lane.b32.xlu0 %v3546, 32
    %v3548 = vpop.permute.xlu0 %3547
    %v3549 = vsel %vm169, %v3548, 0
    %3551 = vmatprep.subr.mxu0 0.0
    %3552 = vmatpush1.msra.mxu0 0.0
    %3553 = vmatprep.subr.mxu0 0.0
    %3554 = vmatpush1.msra.mxu0 0.0
    %3555 = vmatprep.subr.mxu0 0.0
    %3556 = vmatpush1.msra.mxu0 0.0
    %3557 = vmatprep.subr.mxu0 0.0
    %3558 = vmatpush1.msra.mxu0 0.0
    %3559 = vmatprep.subr.mxu0 0.0
    %3560 = vmatpush1.msra.mxu0 0.0
    %3561 = vmatprep.subr.mxu0 0.0
    %3562 = vmatpush1.msra.mxu0 0.0
    %3563 = vmatprep.subr.mxu0 0.0
    %3564 = vmatpush1.msra.mxu0 0.0
    %3565 = vmatprep.subr.mxu0 0.0
    %3566 = vmatpush1.msra.mxu0 0.0
    %3567 = vmatprep.subr.mxu0 0.0
    %3568 = vmatpush1.msra.mxu0 0.0
    %3569 = vmatprep.subr.mxu0 0.0
    %3570 = vmatpush1.msra.mxu0 0.0
    %3571 = vmatprep.subr.mxu0 0.0
    %3572 = vmatpush1.msra.mxu0 0.0
    %3573 = vmatprep.subr.mxu0 0.0
    %3574 = vmatpush1.msra.mxu0 0.0
    %3575 = vmatprep.subr.mxu0 0.0
    %3576 = vmatpush1.msra.mxu0 %v2134
    %3577 = vmatprep.subr.mxu0 0.0
    %3578 = vmatpush1.msra.mxu0 %v2133
    %3579 = vmatprep.subr.mxu0 0.0
    %3580 = vmatpush1.msra.mxu0 %v2132
    %3581 = vmatprep.subr.mxu0 0.0
    %3582 = vmatpush1.msra.mxu0 %v2131
    %3583 = vmatprep.subr.mxu0 0.0
    %3584 = vmatpush2.msra.mxu0 0.0
    %3585 = vmatprep.subr.mxu0 0.0
    %3586 = vmatpush2.msra.mxu0 0.0
    %3587 = vmatprep.subr.mxu0 0.0
    %3588 = vmatpush2.msra.mxu0 0.0
    %3589 = vmatprep.subr.mxu0 0.0
    %3590 = vmatpush2.msra.mxu0 0.0
    %3591 = vmatprep.subr.mxu0 0.0
    %3592 = vmatpush2.msra.mxu0 0.0
    %3593 = vmatprep.subr.mxu0 0.0
    %3594 = vmatpush2.msra.mxu0 0.0
    %3595 = vmatprep.subr.mxu0 0.0
    %3596 = vmatpush2.msra.mxu0 0.0
    %3597 = vmatprep.subr.mxu0 0.0
    %3598 = vmatpush2.msra.mxu0 0.0
    %3599 = vmatprep.subr.mxu0 0.0
    %3600 = vmatpush2.msra.mxu0 0.0
    %3601 = vmatprep.subr.mxu0 0.0
    %3602 = vmatpush2.msra.mxu0 0.0
    %3603 = vmatprep.subr.mxu0 0.0
    %3604 = vmatpush2.msra.mxu0 0.0
    %3605 = vmatprep.subr.mxu0 0.0
    %3606 = vmatpush2.msra.mxu0 0.0
    %3607 = vmatprep.subr.mxu0 0.0
    %3608 = vmatpush2.msra.mxu0 0.0
    %3609 = vmatprep.subr.mxu0 0.0
    %3610 = vmatpush2.msra.mxu0 0.0
    %3611 = vmatprep.subr.mxu0 0.0
    %3612 = vmatpush2.msra.mxu0 0.0
    %3613 = vmatprep.subr.mxu0 0.0
    %3614 = vmatpush2.msra.mxu0 0.0
    %3615 = vmatprep.mubr.f32.mxu0 0.0
    %3616 = vmatmul.mubr.f32.gmra.mxu0 %v3549
    %v3617 = vpop.f32.mrf.mxu0
    %v3618 = vadd.f32 0.0, %v3617
    %v3619 = vpop.f32.mrf.mxu0
    %3620 = vdwg.mxu0
    %v3622 = vrot.slane %v3618, 6
    %v3624 = vadd.f32 %v2119, %v3622
    %v3625 = vxor.u32 %v3624, 2147483648
    %v3626 = vmul.f32 %v3625, 1.442695
    %v3627 = vpow.pop %v3626
    %v3628 = vadd.f32 %v3627, 1.0
    %v3629 = vrcp.pop %v3628
    %v3630 = vmul.f32 1.0, %v3629
    %v3631 = vtanh.pop %v3624
    %v3633 = vrot.slane %v3423, 2
    %v3635 = vmul.f32 %v3630, %v3633
    %3637 = vrot.lane.b32.xlu0 %v3631, 64
    %v3638 = vpop.permute.xlu0 %3637
    %v3640 = vmul.f32 %v3630, %v3638
    %3642 = vrot.lane.b32.xlu0 %v3640, 32
    %v3643 = vpop.permute.xlu0 %3642
    %v3645 = vadd.f32 %v3635, %v3643
    %v3646 = vtanh.pop %v3645
    %3648 = vrot.lane.b32.xlu0 %v3646, 64
    %v3649 = vpop.permute.xlu0 %3648
    %v3651 = vmul.f32 %v3630, %v3649
    %3653 = vrot.lane.b32.xlu0 %v3651, 64
    %v3654 = vpop.permute.xlu0 %3653
    %3656 = vst.msk [vmem:[#allocation2] sm:$0xc] %vm912, %v3654
    %v3657 = vrot.slane %v3540, 4
    %3658 = vrot.lane.b32.xlu0 %v3657, 32
    %v3659 = vpop.permute.xlu0 %3658
    %v3660 = vsel %vm169, %v3659, 0
    %3662 = vmatprep.subr.mxu0 0.0
    %3663 = vmatpush1.msra.mxu0 0.0
    %3664 = vmatprep.subr.mxu0 0.0
    %3665 = vmatpush1.msra.mxu0 0.0
    %3666 = vmatprep.subr.mxu0 0.0
    %3667 = vmatpush1.msra.mxu0 0.0
    %3668 = vmatprep.subr.mxu0 0.0
    %3669 = vmatpush1.msra.mxu0 0.0
    %3670 = vmatprep.subr.mxu0 0.0
    %3671 = vmatpush1.msra.mxu0 0.0
    %3672 = vmatprep.subr.mxu0 0.0
    %3673 = vmatpush1.msra.mxu0 0.0
    %3674 = vmatprep.subr.mxu0 0.0
    %3675 = vmatpush1.msra.mxu0 0.0
    %3676 = vmatprep.subr.mxu0 0.0
    %3677 = vmatpush1.msra.mxu0 0.0
    %3678 = vmatprep.subr.mxu0 0.0
    %3679 = vmatpush1.msra.mxu0 0.0
    %3680 = vmatprep.subr.mxu0 0.0
    %3681 = vmatpush1.msra.mxu0 0.0
    %3682 = vmatprep.subr.mxu0 0.0
    %3683 = vmatpush1.msra.mxu0 0.0
    %3684 = vmatprep.subr.mxu0 0.0
    %3685 = vmatpush1.msra.mxu0 0.0
    %3686 = vmatprep.subr.mxu0 0.0
    %3687 = vmatpush1.msra.mxu0 %v2130
    %3688 = vmatprep.subr.mxu0 0.0
    %3689 = vmatpush1.msra.mxu0 %v2129
    %3690 = vmatprep.subr.mxu0 0.0
    %3691 = vmatpush1.msra.mxu0 %v2128
    %3692 = vmatprep.subr.mxu0 0.0
    %3693 = vmatpush1.msra.mxu0 %v2127
    %3694 = vmatprep.subr.mxu0 0.0
    %3695 = vmatpush2.msra.mxu0 0.0
    %3696 = vmatprep.subr.mxu0 0.0
    %3697 = vmatpush2.msra.mxu0 0.0
    %3698 = vmatprep.subr.mxu0 0.0
    %3699 = vmatpush2.msra.mxu0 0.0
    %3700 = vmatprep.subr.mxu0 0.0
    %3701 = vmatpush2.msra.mxu0 0.0
    %3702 = vmatprep.subr.mxu0 0.0
    %3703 = vmatpush2.msra.mxu0 0.0
    %3704 = vmatprep.subr.mxu0 0.0
    %3705 = vmatpush2.msra.mxu0 0.0
    %3706 = vmatprep.subr.mxu0 0.0
    %3707 = vmatpush2.msra.mxu0 0.0
    %3708 = vmatprep.subr.mxu0 0.0
    %3709 = vmatpush2.msra.mxu0 0.0
    %3710 = vmatprep.subr.mxu0 0.0
    %3711 = vmatpush2.msra.mxu0 0.0
    %3712 = vmatprep.subr.mxu0 0.0
    %3713 = vmatpush2.msra.mxu0 0.0
    %3714 = vmatprep.subr.mxu0 0.0
    %3715 = vmatpush2.msra.mxu0 0.0
    %3716 = vmatprep.subr.mxu0 0.0
    %3717 = vmatpush2.msra.mxu0 0.0
    %3718 = vmatprep.subr.mxu0 0.0
    %3719 = vmatpush2.msra.mxu0 0.0
    %3720 = vmatprep.subr.mxu0 0.0
    %3721 = vmatpush2.msra.mxu0 0.0
    %3722 = vmatprep.subr.mxu0 0.0
    %3723 = vmatpush2.msra.mxu0 0.0
    %3724 = vmatprep.subr.mxu0 0.0
    %3725 = vmatpush2.msra.mxu0 0.0
    %3726 = vmatprep.mubr.f32.mxu0 0.0
    %3727 = vmatmul.mubr.f32.gmra.mxu0 %v3660
    %v3728 = vpop.f32.mrf.mxu0
    %v3729 = vadd.f32 0.0, %v3728
    %v3730 = vpop.f32.mrf.mxu0
    %3731 = vdwg.mxu0
    %v3733 = vrot.slane %v3729, 2
    %v3735 = vadd.f32 %v2123, %v3733
    %v3736 = vxor.u32 %v3735, 2147483648
    %v3737 = vmul.f32 %v3736, 1.442695
    %v3738 = vpow.pop %v3737
    %v3739 = vadd.f32 %v3738, 1.0
    %v3740 = vrcp.pop %v3739
    %v3741 = vmul.f32 1.0, %v3740
    %v3742 = vtanh.pop %v3735
    %v3744 = vrot.slane %v3534, 6
    %v3746 = vmul.f32 %v3741, %v3744
    %3748 = vrot.lane.b32.xlu0 %v3742, 64
    %v3749 = vpop.permute.xlu0 %3748
    %v3751 = vmul.f32 %v3741, %v3749
    %3753 = vrot.lane.b32.xlu0 %v3751, 32
    %v3754 = vpop.permute.xlu0 %3753
    %v3756 = vadd.f32 %v3746, %v3754
    %v3757 = vtanh.pop %v3756
    %3759 = vrot.lane.b32.xlu0 %v3757, 64
    %v3760 = vpop.permute.xlu0 %3759
    %v3762 = vmul.f32 %v3741, %v3760
    %3764 = vrot.lane.b32.xlu0 %v3762, 32
    %v3765 = vpop.permute.xlu0 %3764
    %3767 = vst.msk [vmem:[#allocation2 + $0x8] sm:$0xc0] %vm1024, %v3765
    %v3768 = vrot.slane %v3651, 2
    %3769 = vrot.lane.b32.xlu0 %v3768, 32
    %v3770 = vpop.permute.xlu0 %3769
    %v3771 = vsel %vm169, %v3770, 0
    %3773 = vmatprep.subr.mxu0 0.0
    %3774 = vmatpush1.msra.mxu0 0.0
    %3775 = vmatprep.subr.mxu0 0.0
    %3776 = vmatpush1.msra.mxu0 0.0
    %3777 = vmatprep.subr.mxu0 0.0
    %3778 = vmatpush1.msra.mxu0 0.0
    %3779 = vmatprep.subr.mxu0 0.0
    %3780 = vmatpush1.msra.mxu0 0.0
    %3781 = vmatprep.subr.mxu0 0.0
    %3782 = vmatpush1.msra.mxu0 0.0
    %3783 = vmatprep.subr.mxu0 0.0
    %3784 = vmatpush1.msra.mxu0 0.0
    %3785 = vmatprep.subr.mxu0 0.0
    %3786 = vmatpush1.msra.mxu0 0.0
    %3787 = vmatprep.subr.mxu0 0.0
    %3788 = vmatpush1.msra.mxu0 0.0
    %3789 = vmatprep.subr.mxu0 0.0
    %3790 = vmatpush1.msra.mxu0 0.0
    %3791 = vmatprep.subr.mxu0 0.0
    %3792 = vmatpush1.msra.mxu0 0.0
    %3793 = vmatprep.subr.mxu0 0.0
    %3794 = vmatpush1.msra.mxu0 0.0
    %3795 = vmatprep.subr.mxu0 0.0
    %3796 = vmatpush1.msra.mxu0 0.0
    %3797 = vmatprep.subr.mxu0 0.0
    %3798 = vmatpush1.msra.mxu0 %v2134
    %3799 = vmatprep.subr.mxu0 0.0
    %3800 = vmatpush1.msra.mxu0 %v2133
    %3801 = vmatprep.subr.mxu0 0.0
    %3802 = vmatpush1.msra.mxu0 %v2132
    %3803 = vmatprep.subr.mxu0 0.0
    %3804 = vmatpush1.msra.mxu0 %v2131
    %3805 = vmatprep.subr.mxu0 0.0
    %3806 = vmatpush2.msra.mxu0 0.0
    %3807 = vmatprep.subr.mxu0 0.0
    %3808 = vmatpush2.msra.mxu0 0.0
    %3809 = vmatprep.subr.mxu0 0.0
    %3810 = vmatpush2.msra.mxu0 0.0
    %3811 = vmatprep.subr.mxu0 0.0
    %3812 = vmatpush2.msra.mxu0 0.0
    %3813 = vmatprep.subr.mxu0 0.0
    %3814 = vmatpush2.msra.mxu0 0.0
    %3815 = vmatprep.subr.mxu0 0.0
    %3816 = vmatpush2.msra.mxu0 0.0
    %3817 = vmatprep.subr.mxu0 0.0
    %3818 = vmatpush2.msra.mxu0 0.0
    %3819 = vmatprep.subr.mxu0 0.0
    %3820 = vmatpush2.msra.mxu0 0.0
    %3821 = vmatprep.subr.mxu0 0.0
    %3822 = vmatpush2.msra.mxu0 0.0
    %3823 = vmatprep.subr.mxu0 0.0
    %3824 = vmatpush2.msra.mxu0 0.0
    %3825 = vmatprep.subr.mxu0 0.0
    %3826 = vmatpush2.msra.mxu0 0.0
    %3827 = vmatprep.subr.mxu0 0.0
    %3828 = vmatpush2.msra.mxu0 0.0
    %3829 = vmatprep.subr.mxu0 0.0
    %3830 = vmatpush2.msra.mxu0 0.0
    %3831 = vmatprep.subr.mxu0 0.0
    %3832 = vmatpush2.msra.mxu0 0.0
    %3833 = vmatprep.subr.mxu0 0.0
    %3834 = vmatpush2.msra.mxu0 0.0
    %3835 = vmatprep.subr.mxu0 0.0
    %3836 = vmatpush2.msra.mxu0 0.0
    %3837 = vmatprep.mubr.f32.mxu0 0.0
    %3838 = vmatmul.mubr.f32.gmra.mxu0 %v3771
    %v3839 = vpop.f32.mrf.mxu0
    %v3840 = vadd.f32 0.0, %v3839
    %v3841 = vpop.f32.mrf.mxu0
    %3842 = vdwg.mxu0
    %v3843 = vadd.f32 %v2119, %v3840
    %v3844 = vxor.u32 %v3843, 2147483648
    %v3845 = vmul.f32 %v3844, 1.442695
    %v3846 = vpow.pop %v3845
    %v3847 = vadd.f32 %v3846, 1.0
    %v3848 = vrcp.pop %v3847
    %v3849 = vmul.f32 1.0, %v3848
    %v3850 = vtanh.pop %v3843
    %v3852 = vrot.slane %v3645, 2
    %v3854 = vmul.f32 %v3849, %v3852
    %3856 = vrot.lane.b32.xlu0 %v3850, 64
    %v3857 = vpop.permute.xlu0 %3856
    %v3859 = vmul.f32 %v3849, %v3857
    %3861 = vrot.lane.b32.xlu0 %v3859, 32
    %v3862 = vpop.permute.xlu0 %3861
    %v3864 = vadd.f32 %v3854, %v3862
    %v3865 = vtanh.pop %v3864
    %3867 = vrot.lane.b32.xlu0 %v3865, 64
    %v3868 = vpop.permute.xlu0 %3867
    %v3870 = vmul.f32 %v3849, %v3868
    %3872 = vrot.lane.b32.xlu0 %v3870, 64
    %v3873 = vpop.permute.xlu0 %3872
    %3875 = vst.msk [vmem:[#allocation2] sm:$0x3] %vm1133, %v3873
    %v3876 = vld [vmem:[%s10] sm:$0xff]
    %v3877 = vld [vmem:[%s10 + $0x8] sm:$0xff]
    %v3878 = vld [vmem:[%s10 + $0x10] sm:$0xff]
    %v3879 = vld [vmem:[%s10 + $0x18] sm:$0xff]
    %v3880 = vld [vmem:[%s10 + $0x20] sm:$0xff]
    %v3881 = vld [vmem:[%s10 + $0x28] sm:$0xff]
    %v3882 = vld [vmem:[%s10 + $0x30] sm:$0xff]
    %v3883 = vld [vmem:[%s10 + $0x38] sm:$0xff]
    %v3884 = vld [vmem:[%s10 + $0x40] sm:$0xff]
    %v3885 = vld [vmem:[%s10 + $0x48] sm:$0xff]
    %v3886 = vld [vmem:[%s10 + $0x50] sm:$0xff]
    %v3887 = vld [vmem:[%s10 + $0x58] sm:$0xff]
    %v3888 = vld [vmem:[%s10 + $0x60] sm:$0xff]
    %v3889 = vld [vmem:[%s10 + $0x68] sm:$0xff]
    %v3890 = vld [vmem:[%s10 + $0x70] sm:$0xff]
    %v3891 = vld [vmem:[%s10 + $0x78] sm:$0xff]
    %v3892 = vld [vmem:[#allocation2] sm:$0x3]
    %v3893 = vld [vmem:[#allocation2 + $0xe] sm:$0x3]
    %3895 = vrot.lane.b32.xlu0 %v3892, 96
    %v3896 = vpop.permute.xlu0 %3895
    %v3897 = vsel %vm169, %v3896, 0
    %3899 = vmatprep.subr.mxu0 0.0
    %3900 = vmatpush1.msra.mxu0 0.0
    %3901 = vmatprep.subr.mxu0 0.0
    %3902 = vmatpush1.msra.mxu0 0.0
    %3903 = vmatprep.subr.mxu0 0.0
    %3904 = vmatpush1.msra.mxu0 0.0
    %3905 = vmatprep.subr.mxu0 0.0
    %3906 = vmatpush1.msra.mxu0 0.0
    %3907 = vmatprep.subr.mxu0 0.0
    %3908 = vmatpush1.msra.mxu0 0.0
    %3909 = vmatprep.subr.mxu0 0.0
    %3910 = vmatpush1.msra.mxu0 0.0
    %3911 = vmatprep.subr.mxu0 0.0
    %3912 = vmatpush1.msra.mxu0 0.0
    %3913 = vmatprep.subr.mxu0 0.0
    %3914 = vmatpush1.msra.mxu0 0.0
    %3915 = vmatprep.subr.mxu0 0.0
    %3916 = vmatpush1.msra.mxu0 0.0
    %3917 = vmatprep.subr.mxu0 0.0
    %3918 = vmatpush1.msra.mxu0 0.0
    %3919 = vmatprep.subr.mxu0 0.0
    %3920 = vmatpush1.msra.mxu0 0.0
    %3921 = vmatprep.subr.mxu0 0.0
    %3922 = vmatpush1.msra.mxu0 0.0
    %3923 = vmatprep.subr.mxu0 0.0
    %3924 = vmatpush1.msra.mxu0 %v3883
    %3925 = vmatprep.subr.mxu0 0.0
    %3926 = vmatpush1.msra.mxu0 %v3882
    %3927 = vmatprep.subr.mxu0 0.0
    %3928 = vmatpush1.msra.mxu0 %v3881
    %3929 = vmatprep.subr.mxu0 0.0
    %3930 = vmatpush1.msra.mxu0 %v3880
    %3931 = vmatprep.subr.mxu0 0.0
    %3932 = vmatpush2.msra.mxu0 0.0
    %3933 = vmatprep.subr.mxu0 0.0
    %3934 = vmatpush2.msra.mxu0 0.0
    %3935 = vmatprep.subr.mxu0 0.0
    %3936 = vmatpush2.msra.mxu0 0.0
    %3937 = vmatprep.subr.mxu0 0.0
    %3938 = vmatpush2.msra.mxu0 0.0
    %3939 = vmatprep.subr.mxu0 0.0
    %3940 = vmatpush2.msra.mxu0 0.0
    %3941 = vmatprep.subr.mxu0 0.0
    %3942 = vmatpush2.msra.mxu0 0.0
    %3943 = vmatprep.subr.mxu0 0.0
    %3944 = vmatpush2.msra.mxu0 0.0
    %3945 = vmatprep.subr.mxu0 0.0
    %3946 = vmatpush2.msra.mxu0 0.0
    %3947 = vmatprep.subr.mxu0 0.0
    %3948 = vmatpush2.msra.mxu0 0.0
    %3949 = vmatprep.subr.mxu0 0.0
    %3950 = vmatpush2.msra.mxu0 0.0
    %3951 = vmatprep.subr.mxu0 0.0
    %3952 = vmatpush2.msra.mxu0 0.0
    %3953 = vmatprep.subr.mxu0 0.0
    %3954 = vmatpush2.msra.mxu0 0.0
    %3955 = vmatprep.subr.mxu0 0.0
    %3956 = vmatpush2.msra.mxu0 0.0
    %3957 = vmatprep.subr.mxu0 0.0
    %3958 = vmatpush2.msra.mxu0 0.0
    %3959 = vmatprep.subr.mxu0 0.0
    %3960 = vmatpush2.msra.mxu0 0.0
    %3961 = vmatprep.subr.mxu0 0.0
    %3962 = vmatpush2.msra.mxu0 0.0
    %3963 = vmatprep.mubr.f32.mxu0 0.0
    %3964 = vmatmul.mubr.f32.gmra.mxu0 %v3897
    %v3965 = vpop.f32.mrf.mxu0
    %v3966 = vadd.f32 0.0, %v3965
    %v3967 = vpop.f32.mrf.mxu0
    %3968 = vdwg.mxu0
    %v3969 = vsel %vm169, %v3892, 0
    %3971 = vmatprep.subr.mxu0 0.0
    %3972 = vmatpush1.msra.mxu0 0.0
    %3973 = vmatprep.subr.mxu0 0.0
    %3974 = vmatpush1.msra.mxu0 0.0
    %3975 = vmatprep.subr.mxu0 0.0
    %3976 = vmatpush1.msra.mxu0 0.0
    %3977 = vmatprep.subr.mxu0 0.0
    %3978 = vmatpush1.msra.mxu0 0.0
    %3979 = vmatprep.subr.mxu0 0.0
    %3980 = vmatpush1.msra.mxu0 0.0
    %3981 = vmatprep.subr.mxu0 0.0
    %3982 = vmatpush1.msra.mxu0 0.0
    %3983 = vmatprep.subr.mxu0 0.0
    %3984 = vmatpush1.msra.mxu0 0.0
    %3985 = vmatprep.subr.mxu0 0.0
    %3986 = vmatpush1.msra.mxu0 0.0
    %3987 = vmatprep.subr.mxu0 0.0
    %3988 = vmatpush1.msra.mxu0 0.0
    %3989 = vmatprep.subr.mxu0 0.0
    %3990 = vmatpush1.msra.mxu0 0.0
    %3991 = vmatprep.subr.mxu0 0.0
    %3992 = vmatpush1.msra.mxu0 0.0
    %3993 = vmatprep.subr.mxu0 0.0
    %3994 = vmatpush1.msra.mxu0 0.0
    %3995 = vmatprep.subr.mxu0 0.0
    %3996 = vmatpush1.msra.mxu0 %v3879
    %3997 = vmatprep.subr.mxu0 0.0
    %3998 = vmatpush1.msra.mxu0 %v3878
    %3999 = vmatprep.subr.mxu0 0.0
    %4000 = vmatpush1.msra.mxu0 %v3877
    %4001 = vmatprep.subr.mxu0 0.0
    %4002 = vmatpush1.msra.mxu0 %v3876
    %4003 = vmatprep.subr.mxu0 0.0
    %4004 = vmatpush2.msra.mxu0 0.0
    %4005 = vmatprep.subr.mxu0 0.0
    %4006 = vmatpush2.msra.mxu0 0.0
    %4007 = vmatprep.subr.mxu0 0.0
    %4008 = vmatpush2.msra.mxu0 0.0
    %4009 = vmatprep.subr.mxu0 0.0
    %4010 = vmatpush2.msra.mxu0 0.0
    %4011 = vmatprep.subr.mxu0 0.0
    %4012 = vmatpush2.msra.mxu0 0.0
    %4013 = vmatprep.subr.mxu0 0.0
    %4014 = vmatpush2.msra.mxu0 0.0
    %4015 = vmatprep.subr.mxu0 0.0
    %4016 = vmatpush2.msra.mxu0 0.0
    %4017 = vmatprep.subr.mxu0 0.0
    %4018 = vmatpush2.msra.mxu0 0.0
    %4019 = vmatprep.subr.mxu0 0.0
    %4020 = vmatpush2.msra.mxu0 0.0
    %4021 = vmatprep.subr.mxu0 0.0
    %4022 = vmatpush2.msra.mxu0 0.0
    %4023 = vmatprep.subr.mxu0 0.0
    %4024 = vmatpush2.msra.mxu0 0.0
    %4025 = vmatprep.subr.mxu0 0.0
    %4026 = vmatpush2.msra.mxu0 0.0
    %4027 = vmatprep.subr.mxu0 0.0
    %4028 = vmatpush2.msra.mxu0 0.0
    %4029 = vmatprep.subr.mxu0 0.0
    %4030 = vmatpush2.msra.mxu0 0.0
    %4031 = vmatprep.subr.mxu0 0.0
    %4032 = vmatpush2.msra.mxu0 0.0
    %4033 = vmatprep.subr.mxu0 0.0
    %4034 = vmatpush2.msra.mxu0 0.0
    %4035 = vmatprep.mubr.f32.mxu0 0.0
    %4036 = vmatmul.mubr.f32.gmra.mxu0 %v3969
    %v4037 = vpop.f32.mrf.mxu0
    %v4038 = vadd.f32 %v3966, %v4037
    %v4039 = vpop.f32.mrf.mxu0
    %4040 = vdwg.mxu0
    %v4042 = vsel %vm169, %v3893, 0
    %4044 = vmatprep.subr.mxu0 0.0
    %4045 = vmatpush1.msra.mxu0 0.0
    %4046 = vmatprep.subr.mxu0 0.0
    %4047 = vmatpush1.msra.mxu0 0.0
    %4048 = vmatprep.subr.mxu0 0.0
    %4049 = vmatpush1.msra.mxu0 0.0
    %4050 = vmatprep.subr.mxu0 0.0
    %4051 = vmatpush1.msra.mxu0 0.0
    %4052 = vmatprep.subr.mxu0 0.0
    %4053 = vmatpush1.msra.mxu0 0.0
    %4054 = vmatprep.subr.mxu0 0.0
    %4055 = vmatpush1.msra.mxu0 0.0
    %4056 = vmatprep.subr.mxu0 0.0
    %4057 = vmatpush1.msra.mxu0 0.0
    %4058 = vmatprep.subr.mxu0 0.0
    %4059 = vmatpush1.msra.mxu0 0.0
    %4060 = vmatprep.subr.mxu0 0.0
    %4061 = vmatpush1.msra.mxu0 0.0
    %4062 = vmatprep.subr.mxu0 0.0
    %4063 = vmatpush1.msra.mxu0 0.0
    %4064 = vmatprep.subr.mxu0 0.0
    %4065 = vmatpush1.msra.mxu0 0.0
    %4066 = vmatprep.subr.mxu0 0.0
    %4067 = vmatpush1.msra.mxu0 0.0
    %4068 = vmatprep.subr.mxu0 0.0
    %4069 = vmatpush1.msra.mxu0 %v3887
    %4070 = vmatprep.subr.mxu0 0.0
    %4071 = vmatpush1.msra.mxu0 %v3886
    %4072 = vmatprep.subr.mxu0 0.0
    %4073 = vmatpush1.msra.mxu0 %v3885
    %4074 = vmatprep.subr.mxu0 0.0
    %4075 = vmatpush1.msra.mxu0 %v3884
    %4076 = vmatprep.subr.mxu0 0.0
    %4077 = vmatpush2.msra.mxu0 0.0
    %4078 = vmatprep.subr.mxu0 0.0
    %4079 = vmatpush2.msra.mxu0 0.0
    %4080 = vmatprep.subr.mxu0 0.0
    %4081 = vmatpush2.msra.mxu0 0.0
    %4082 = vmatprep.subr.mxu0 0.0
    %4083 = vmatpush2.msra.mxu0 0.0
    %4084 = vmatprep.subr.mxu0 0.0
    %4085 = vmatpush2.msra.mxu0 0.0
    %4086 = vmatprep.subr.mxu0 0.0
    %4087 = vmatpush2.msra.mxu0 0.0
    %4088 = vmatprep.subr.mxu0 0.0
    %4089 = vmatpush2.msra.mxu0 0.0
    %4090 = vmatprep.subr.mxu0 0.0
    %4091 = vmatpush2.msra.mxu0 0.0
    %4092 = vmatprep.subr.mxu0 0.0
    %4093 = vmatpush2.msra.mxu0 0.0
    %4094 = vmatprep.subr.mxu0 0.0
    %4095 = vmatpush2.msra.mxu0 0.0
    %4096 = vmatprep.subr.mxu0 0.0
    %4097 = vmatpush2.msra.mxu0 0.0
    %4098 = vmatprep.subr.mxu0 0.0
    %4099 = vmatpush2.msra.mxu0 0.0
    %4100 = vmatprep.subr.mxu0 0.0
    %4101 = vmatpush2.msra.mxu0 0.0
    %4102 = vmatprep.subr.mxu0 0.0
    %4103 = vmatpush2.msra.mxu0 0.0
    %4104 = vmatprep.subr.mxu0 0.0
    %4105 = vmatpush2.msra.mxu0 0.0
    %4106 = vmatprep.subr.mxu0 0.0
    %4107 = vmatpush2.msra.mxu0 0.0
    %4108 = vmatprep.mubr.f32.mxu0 0.0
    %4109 = vmatmul.mubr.f32.gmra.mxu0 %v4042
    %v4110 = vpop.f32.mrf.mxu0
    %v4111 = vadd.f32 0.0, %v4110
    %v4112 = vpop.f32.mrf.mxu0
    %4113 = vdwg.mxu0
    %v4114 = vadd.f32 %v4038, %v4111
    %4115 = vrot.lane.b32.xlu0 %v3893, 96
    %v4116 = vpop.permute.xlu0 %4115
    %v4117 = vsel %vm169, %v4116, 0
    %4119 = vmatprep.subr.mxu0 0.0
    %4120 = vmatpush1.msra.mxu0 0.0
    %4121 = vmatprep.subr.mxu0 0.0
    %4122 = vmatpush1.msra.mxu0 0.0
    %4123 = vmatprep.subr.mxu0 0.0
    %4124 = vmatpush1.msra.mxu0 0.0
    %4125 = vmatprep.subr.mxu0 0.0
    %4126 = vmatpush1.msra.mxu0 0.0
    %4127 = vmatprep.subr.mxu0 0.0
    %4128 = vmatpush1.msra.mxu0 0.0
    %4129 = vmatprep.subr.mxu0 0.0
    %4130 = vmatpush1.msra.mxu0 0.0
    %4131 = vmatprep.subr.mxu0 0.0
    %4132 = vmatpush1.msra.mxu0 0.0
    %4133 = vmatprep.subr.mxu0 0.0
    %4134 = vmatpush1.msra.mxu0 0.0
    %4135 = vmatprep.subr.mxu0 0.0
    %4136 = vmatpush1.msra.mxu0 0.0
    %4137 = vmatprep.subr.mxu0 0.0
    %4138 = vmatpush1.msra.mxu0 0.0
    %4139 = vmatprep.subr.mxu0 0.0
    %4140 = vmatpush1.msra.mxu0 0.0
    %4141 = vmatprep.subr.mxu0 0.0
    %4142 = vmatpush1.msra.mxu0 0.0
    %4143 = vmatprep.subr.mxu0 0.0
    %4144 = vmatpush1.msra.mxu0 %v3891
    %4145 = vmatprep.subr.mxu0 0.0
    %4146 = vmatpush1.msra.mxu0 %v3890
    %4147 = vmatprep.subr.mxu0 0.0
    %4148 = vmatpush1.msra.mxu0 %v3889
    %4149 = vmatprep.subr.mxu0 0.0
    %4150 = vmatpush1.msra.mxu0 %v3888
    %4151 = vmatprep.subr.mxu0 0.0
    %4152 = vmatpush2.msra.mxu0 0.0
    %4153 = vmatprep.subr.mxu0 0.0
    %4154 = vmatpush2.msra.mxu0 0.0
    %4155 = vmatprep.subr.mxu0 0.0
    %4156 = vmatpush2.msra.mxu0 0.0
    %4157 = vmatprep.subr.mxu0 0.0
    %4158 = vmatpush2.msra.mxu0 0.0
    %4159 = vmatprep.subr.mxu0 0.0
    %4160 = vmatpush2.msra.mxu0 0.0
    %4161 = vmatprep.subr.mxu0 0.0
    %4162 = vmatpush2.msra.mxu0 0.0
    %4163 = vmatprep.subr.mxu0 0.0
    %4164 = vmatpush2.msra.mxu0 0.0
    %4165 = vmatprep.subr.mxu0 0.0
    %4166 = vmatpush2.msra.mxu0 0.0
    %4167 = vmatprep.subr.mxu0 0.0
    %4168 = vmatpush2.msra.mxu0 0.0
    %4169 = vmatprep.subr.mxu0 0.0
    %4170 = vmatpush2.msra.mxu0 0.0
    %4171 = vmatprep.subr.mxu0 0.0
    %4172 = vmatpush2.msra.mxu0 0.0
    %4173 = vmatprep.subr.mxu0 0.0
    %4174 = vmatpush2.msra.mxu0 0.0
    %4175 = vmatprep.subr.mxu0 0.0
    %4176 = vmatpush2.msra.mxu0 0.0
    %4177 = vmatprep.subr.mxu0 0.0
    %4178 = vmatpush2.msra.mxu0 0.0
    %4179 = vmatprep.subr.mxu0 0.0
    %4180 = vmatpush2.msra.mxu0 0.0
    %4181 = vmatprep.subr.mxu0 0.0
    %4182 = vmatpush2.msra.mxu0 0.0
    %4183 = vmatprep.mubr.f32.mxu0 0.0
    %4184 = vmatmul.mubr.f32.gmra.mxu0 %v4117
    %v4185 = vpop.f32.mrf.mxu0
    %v4186 = vadd.f32 0.0, %v4185
    %v4187 = vpop.f32.mrf.mxu0
    %4188 = vdwg.mxu0
    %v4189 = vadd.f32 %v4114, %v4186
    %v4190 = vld [vmem:[%s11] sm:$0x1]
    %v4192 = vlaneseq
    %v4193 = vshrl.u32 %v4192, 7
    %v4194 = vsub.s32 0, %v4193
    %v4195 = vrot.slane %v4190, %v4194
    %v4197 = vadd.f32 %v4189, %v4195
    %vm4198 = vcmask 9216
    %4199 = vst.msk [vmem:[#allocation3] sm:$0x3] %vm4198, %v4197
    // Predicated region
    $region50: #{birnn_forward_pallas.1} parent=1 // pred_check
      _
    $region51: #{birnn_forward_pallas.1} parent=1 // pred_check_branch
      %4201 = sbr.rel (0) target = $region53
    $region52: #{birnn_forward_pallas.1} parent=1 // pred_region
      %s4203 = ssub.s32 32, 32
      %4204 = vsyncadd [#allocation4], %s4203
      %s4206 = sshll.u32 [#allocation3], 4
      %s4207 = int_to_ptr.vmem [resolvable:$true] %s4206
      %4209 = dma.vmem_to_hbm [thread:$0]  %s4207, 32, %s12, [#allocation4]
    $region53: #{birnn_forward_pallas.1} parent=1 // pred_fallthru
      _
    // Predicated region
    $region54: #{birnn_forward_pallas.1} parent=1 // pred_check
      _
    $region55: #{birnn_forward_pallas.1} parent=1 // pred_check_branch
      %4211 = sbr.rel (0) target = $region57
    $region56: #{birnn_forward_pallas.1} parent=1 // pred_region
      %4212 = dma.done [#allocation4], 32
    $region57: #{birnn_forward_pallas.1} parent=1 // pred_fallthru
      _
    %4213 = vsyncpa [#allocation4], 1

</llo_original>
